<compile_context>
chip_gen: v7x
topology: tpu7x:2x2x1
jax: 0.10.0
libtpu: 0.0.40
codegen_flags: <defaults>
</compile_context>

<pallas_src>
import numpy as np
import jax
import jax.numpy as jnp
from jax.experimental import pallas as pl
from jax.experimental.pallas import tpu as pltpu

# ----------------------------- model config -----------------------------
D          = 16          # data dimension d
EMB        = 256         # Fourier embedding size
HID        = 512         # hidden width (hidden_dims = [512, 512, 512, 512])
NUM_BLOCKS = 3           # len(hidden_dims) - 1 residual blocks
GROUPS     = 32          # min(32, 512 // 4)
GROUP_SZ   = HID // GROUPS
FOURIER_SCALE = 16.0
GN_EPS     = 1e-5
BATCH      = 8


# ----------------------------- Pallas kernel -----------------------------
def _silu(x):
    return x * jax.nn.sigmoid(x)


def _group_norm(u, gdown, gup, gamma, beta):
    # u: (B, HID) f32.  gdown: (HID, GROUPS) group-mean matrix, gup: (GROUPS, HID)
    # broadcast matrix.  mu and E[x^2] are computed in ONE fused matmul chain by
    # stacking [u; u*u] along the sublane axis.  All stats in f32 for stability.
    b = u.shape[0]
    s = jnp.concatenate([u, u * u], axis=0)                              # (2B, HID)
    grp = jnp.dot(s, gdown, preferred_element_type=jnp.float32)          # (2B, GROUPS)
    stats = jnp.dot(grp, gup, preferred_element_type=jnp.float32)        # (2B, HID)
    mu, ex2 = stats[:b], stats[b:]
    var = jnp.maximum(ex2 - mu * mu, 0.0)                                # guard cancellation
    return (u - mu) * jax.lax.rsqrt(var + GN_EPS) * gamma + beta


def score_net_kernel(
    t_ref, x_ref, freqs_ref,
    w_xt_ref, b_xt_ref, gdown_ref, gup_ref,
    w1_ref, b1_ref, g1_ref, be1_ref,      # current block: first Linear + GroupNorm
    w2_ref, b2_ref, g2_ref, be2_ref,      # current block: second Linear + GroupNorm
    w_out_ref, b_out_ref,
    o_ref,
    h_ref,                                # VMEM scratch: hidden state carried across blocks
):
    i = pl.program_id(0)

    # ---- prologue (block 0 only): Fourier embedding + fused input/time projection ----
    @pl.when(i == 0)
    def _():
        scaled = t_ref[...] * freqs_ref[...]                              # (B, EMB//2)
        t_emb = jnp.concatenate([jnp.sin(scaled), jnp.cos(scaled)], axis=-1)  # (B, EMB)
        xt = jnp.concatenate([t_emb, x_ref[...]], axis=-1)                # (B, EMB + D)
        h0 = jnp.dot(xt.astype(jnp.bfloat16), w_xt_ref[...],
                     preferred_element_type=jnp.float32) + b_xt_ref[...]
        h_ref[...] = _silu(h0)

    gdown = gdown_ref[...]
    gup = gup_ref[...]

    # ---- one residual block per grid step ----
    h = h_ref[...]
    u = jnp.dot(h.astype(jnp.bfloat16), w1_ref[...],
                preferred_element_type=jnp.float32) + b1_ref[...]
    u = _silu(_group_norm(u, gdown, gup, g1_ref[...], be1_ref[...]))
    u = jnp.dot(u.astype(jnp.bfloat16), w2_ref[...],
                preferred_element_type=jnp.float32) + b2_ref[...]
    u = _group_norm(u, gdown, gup, g2_ref[...], be2_ref[...])
    h = _silu(u + h)
    h_ref[...] = h

    # ---- epilogue (last block): output projection ----
    @pl.when(i == pl.num_programs(0) - 1)
    def _():
        out = jnp.dot(h.astype(jnp.bfloat16), w_out_ref[...],
                      preferred_element_type=jnp.float32) + b_out_ref[...]
        o_ref[...] = out.astype(o_ref.dtype)


def score_network_forward(x, t, params):
    """x: (B, D) f32, t: (B,) f32 -> (B, D) f32"""
    B = x.shape[0]
    t2 = t.reshape(B, 1).astype(jnp.float32)

    def resident(a):
        nd = a.ndim
        return pl.BlockSpec(a.shape, lambda i: (0,) * nd)

    # per-block weights: one (HID, HID) / (1, HID) slab DMA'd per grid step
    blk_w = pl.BlockSpec((None, HID, HID), lambda i: (i, 0, 0))
    blk_v = pl.BlockSpec((None, 1, HID), lambda i: (i, 0, 0))

    inputs = [
        t2, x, params["freqs"],
        params["w_xt"], params["b_xt"], params["gdown"], params["gup"],
        params["w1"], params["b1"], params["g1"], params["be1"],
        params["w2"], params["b2"], params["g2"], params["be2"],
        params["w_out"], params["b_out"],
    ]
    in_specs = [
        resident(t2), resident(x), resident(params["freqs"]),
        resident(params["w_xt"]), resident(params["b_xt"]),
        resident(params["gdown"]), resident(params["gup"]),
        blk_w, blk_v, blk_v, blk_v,
        blk_w, blk_v, blk_v, blk_v,
        resident(params["w_out"]), resident(params["b_out"]),
    ]

    return pl.pallas_call(
        score_net_kernel,
        out_shape=jax.ShapeDtypeStruct((B, D), jnp.float32),
        grid_spec=pltpu.PrefetchScalarGridSpec(
            num_scalar_prefetch=0,
            grid=(NUM_BLOCKS,),
            in_specs=in_specs,
            out_specs=pl.BlockSpec((B, D), lambda i: (0, 0)),
            scratch_shapes=[pltpu.VMEM((B, HID), jnp.float32)],
        ),
        compiler_params=pltpu.CompilerParams(
            dimension_semantics=("arbitrary",),          # sequential: carried hidden state
            vmem_limit_bytes=32 * 1024 * 1024,           # fits v7x's 64 MiB VMEM/TC
        ),
    )(*inputs)


# ----------------------------- parameter init -----------------------------
def xavier_uniform(key, fan_in, fan_out):
    bound = np.sqrt(6.0 / (fan_in + fan_out))
    return jax.random.uniform(key, (fan_in, fan_out), jnp.float32, -bound, bound)


def init_params(key):
    keys = jax.random.split(key, 3 + 2 * NUM_BLOCKS)
    p = {}

    # Precomputed, pre-scaled Fourier frequencies (1, EMB//2)
    half = EMB // 2
    freqs = np.exp(-np.log(10000.0) * np.arange(half, dtype=np.float64) / half) * FOURIER_SCALE
    p["freqs"] = jnp.asarray(freqs[None, :], jnp.float32)

    # Fused [time_proj; input_proj] weight: rows 0..EMB-1 = w_t, rows EMB.. = w_in.
    w_t = xavier_uniform(keys[0], EMB, HID)
    w_in = xavier_uniform(keys[1], D, HID)
    p["w_xt"] = jnp.concatenate([w_t, w_in], axis=0).astype(jnp.bfloat16)   # (EMB+D, HID)
    p["b_xt"] = jnp.zeros((1, HID), jnp.float32)                            # b_in + b_t (both zero)

    w1, w2 = [], []
    for i in range(NUM_BLOCKS):
        w1.append(xavier_uniform(keys[2 + 2 * i], HID, HID))
        w2.append(xavier_uniform(keys[3 + 2 * i], HID, HID))
    p["w1"] = jnp.stack(w1).astype(jnp.bfloat16)           # (NB, HID, HID)
    p["w2"] = jnp.stack(w2).astype(jnp.bfloat16)
    p["b1"] = jnp.zeros((NUM_BLOCKS, 1, HID), jnp.float32)
    p["b2"] = jnp.zeros((NUM_BLOCKS, 1, HID), jnp.float32)
    # GroupNorm affine params (PyTorch default init: weight=1, bias=0)
    p["g1"] = jnp.ones((NUM_BLOCKS, 1, HID), jnp.float32)
    p["be1"] = jnp.zeros((NUM_BLOCKS, 1, HID), jnp.float32)
    p["g2"] = jnp.ones((NUM_BLOCKS, 1, HID), jnp.float32)
    p["be2"] = jnp.zeros((NUM_BLOCKS, 1, HID), jnp.float32)

    p["w_out"] = xavier_uniform(keys[2 + 2 * NUM_BLOCKS], HID, D).astype(jnp.bfloat16)
    p["b_out"] = jnp.zeros((1, D), jnp.float32)

    # Rank-32 factorization of the GroupNorm block-diagonal averaging matrix.
    # gdown: (HID, GROUPS) group-mean; gup: (GROUPS, HID) broadcast.  Kept f32 (tiny, exact).
    p["gdown"] = jnp.asarray(
        np.kron(np.eye(GROUPS), np.ones((GROUP_SZ, 1)) / GROUP_SZ), jnp.float32)
    p["gup"] = jnp.asarray(
        np.kron(np.eye(GROUPS), np.ones((1, GROUP_SZ))), jnp.float32)
    return p


# ----------------------------- pure-JAX reference -----------------------------
def reference_forward(x, t, p):
    """Mirrors the kernel's numerics: bf16 weights + bf16-rounded matmul inputs,
    f32 accumulation and f32 SiLU / GroupNorm (PyTorch GroupNorm semantics)."""
    def silu(v):
        return v * jax.nn.sigmoid(v)

    def rnd(v):  # bf16 rounding applied at matmul inputs, matching the kernel
        return v.astype(jnp.bfloat16).astype(jnp.float32)

    def lin(h, w, b):
        return rnd(h) @ w.astype(jnp.float32) + b

    def gnorm(v, gamma, beta):
        B = v.shape[0]
        vg = v.reshape(B, GROUPS, GROUP_SZ)
        mu = vg.mean(axis=-1, keepdims=True)
        var = ((vg - mu) ** 2).mean(axis=-1, keepdims=True)
        vn = ((vg - mu) * jax.lax.rsqrt(var + GN_EPS)).reshape(B, HID)
        return vn * gamma + beta

    scaled = t[:, None] * p["freqs"]
    t_emb = jnp.concatenate([jnp.sin(scaled), jnp.cos(scaled)], axis=-1)
    xt = jnp.concatenate([t_emb, x], axis=-1)
    h = silu(lin(xt, p["w_xt"], p["b_xt"]))
    for i in range(NUM_BLOCKS):
        r = h
        u = lin(h, p["w1"][i], p["b1"][i])
        u = silu(gnorm(u, p["g1"][i], p["be1"][i]))
        u = lin(u, p["w2"][i], p["b2"][i])
        u = gnorm(u, p["g2"][i], p["be2"][i])
        h = silu(u + r)
    return lin(h, p["w_out"], p["b_out"])


# ----------------------------- main -----------------------------
if __name__ == "__main__":
    key = jax.random.PRNGKey(0)
    k_param, k_x, k_t = jax.random.split(key, 3)

    params = init_params(k_param)
    x = jax.random.normal(k_x, (BATCH, D), jnp.float32)
    t = jax.random.uniform(k_t, (BATCH,), jnp.float32)

    out = score_network_forward(x, t, params)
    out = jax.block_until_ready(out)

    ref = reference_forward(x, t, params)
    assert out.shape == (BATCH, D)
    np.testing.assert_allclose(np.asarray(out), np.asarray(ref), rtol=2e-3, atol=2e-3)

    print("KERNEL_OK")
</pallas_src>

<mosaic_0001>
module attributes {stable_mosaic.version = 11 : i64} {
  func.func @score_net_kernel(%arg0: i32, %arg1: memref<8x1xf32, #tpu.memory_space<vmem>>, %arg2: memref<8x16xf32, #tpu.memory_space<vmem>>, %arg3: memref<1x128xf32, #tpu.memory_space<vmem>>, %arg4: memref<272x512xbf16, #tpu.memory_space<vmem>>, %arg5: memref<1x512xf32, #tpu.memory_space<vmem>>, %arg6: memref<512x32xf32, #tpu.memory_space<vmem>>, %arg7: memref<32x512xf32, #tpu.memory_space<vmem>>, %arg8: memref<1x512x512xbf16, #tpu.memory_space<vmem>>, %arg9: memref<1x1x512xf32, #tpu.memory_space<vmem>>, %arg10: memref<1x1x512xf32, #tpu.memory_space<vmem>>, %arg11: memref<1x1x512xf32, #tpu.memory_space<vmem>>, %arg12: memref<1x512x512xbf16, #tpu.memory_space<vmem>>, %arg13: memref<1x1x512xf32, #tpu.memory_space<vmem>>, %arg14: memref<1x1x512xf32, #tpu.memory_space<vmem>>, %arg15: memref<1x1x512xf32, #tpu.memory_space<vmem>>, %arg16: memref<512x16xbf16, #tpu.memory_space<vmem>>, %arg17: memref<1x16xf32, #tpu.memory_space<vmem>>, %arg18: memref<8x16xf32, #tpu.memory_space<vmem>>, %arg19: memref<8x512xf32, #tpu.memory_space<vmem>>) attributes {dimension_semantics = [#tpu.dimension_semantics<arbitrary>], iteration_bounds = array<i64: 3>, scalar_prefetch = 0 : i64, scratch_operands = 1 : i64, tpu.core_type = #tpu.core_type<tc>, window_params = [{pipeline_mode = #tpu.pipeline_mode<synchronous>, transform_indices = @transform_0, window_bounds = array<i64: 8, 1>}, {pipeline_mode = #tpu.pipeline_mode<synchronous>, transform_indices = @transform_1, window_bounds = array<i64: 8, 16>}, {pipeline_mode = #tpu.pipeline_mode<synchronous>, transform_indices = @transform_2, window_bounds = array<i64: 1, 128>}, {pipeline_mode = #tpu.pipeline_mode<synchronous>, transform_indices = @transform_3, window_bounds = array<i64: 272, 512>}, {pipeline_mode = #tpu.pipeline_mode<synchronous>, transform_indices = @transform_4, window_bounds = array<i64: 1, 512>}, {pipeline_mode = #tpu.pipeline_mode<synchronous>, transform_indices = @transform_5, window_bounds = array<i64: 512, 32>}, {pipeline_mode = #tpu.pipeline_mode<synchronous>, transform_indices = @transform_6, window_bounds = array<i64: 32, 512>}, {transform_indices = @transform_7, window_bounds = array<i64: 1, 512, 512>}, {transform_indices = @transform_8, window_bounds = array<i64: 1, 1, 512>}, {transform_indices = @transform_9, window_bounds = array<i64: 1, 1, 512>}, {transform_indices = @transform_10, window_bounds = array<i64: 1, 1, 512>}, {transform_indices = @transform_11, window_bounds = array<i64: 1, 512, 512>}, {transform_indices = @transform_12, window_bounds = array<i64: 1, 1, 512>}, {transform_indices = @transform_13, window_bounds = array<i64: 1, 1, 512>}, {transform_indices = @transform_14, window_bounds = array<i64: 1, 1, 512>}, {pipeline_mode = #tpu.pipeline_mode<synchronous>, transform_indices = @transform_15, window_bounds = array<i64: 512, 16>}, {pipeline_mode = #tpu.pipeline_mode<synchronous>, transform_indices = @transform_16, window_bounds = array<i64: 1, 16>}, {pipeline_mode = #tpu.pipeline_mode<synchronous>, transform_indices = @transform_17, window_bounds = array<i64: 8, 16>}]} {
    %c0_i32 = arith.constant 0 : i32
    %0 = arith.cmpi eq, %arg0, %c0_i32 : i32
    %1 = arith.extui %0 : i1 to i32
    %c0_i32_0 = arith.constant 0 : i32
    %2 = arith.cmpi ne, %1, %c0_i32_0 : i32
    scf.if %2 {
      %c0_44 = arith.constant 0 : index
      %c0_45 = arith.constant 0 : index
      %85 = vector.load %arg1[%c0_44, %c0_45] : memref<8x1xf32, #tpu.memory_space<vmem>>, vector<8x1xf32>
      %c0_46 = arith.constant 0 : index
      %c0_47 = arith.constant 0 : index
      %86 = vector.load %arg3[%c0_46, %c0_47] : memref<1x128xf32, #tpu.memory_space<vmem>>, vector<1x128xf32>
      %87 = vector.broadcast %85 : vector<8x1xf32> to vector<8x128xf32>
      %88 = vector.broadcast %86 : vector<1x128xf32> to vector<8x128xf32>
      %89 = arith.mulf %87, %88 : vector<8x128xf32>
      %90 = math.sin %89 : vector<8x128xf32>
      %91 = math.cos %89 : vector<8x128xf32>
      %92 = tpu.concatenate %90, %91 in 1 : vector<8x128xf32>, vector<8x128xf32> -> vector<8x256xf32>
      %c0_48 = arith.constant 0 : index
      %c0_49 = arith.constant 0 : index
      %93 = vector.load %arg2[%c0_48, %c0_49] : memref<8x16xf32, #tpu.memory_space<vmem>>, vector<8x16xf32>
      %94 = tpu.concatenate %92, %93 in 1 : vector<8x256xf32>, vector<8x16xf32> -> vector<8x272xf32>
      %95 = arith.truncf %94 : vector<8x272xf32> to vector<8x272xbf16>
      %c0_50 = arith.constant 0 : index
      %c0_51 = arith.constant 0 : index
      %96 = vector.load %arg4[%c0_50, %c0_51] : memref<272x512xbf16, #tpu.memory_space<vmem>>, vector<272x512xbf16>
      %cst_52 = arith.constant dense<0.000000e+00> : vector<8x512xf32>
      %97 = tpu.matmul %95, %96, %cst_52 {dimension_numbers = #tpu.dot_dimension_numbers<[1], [0], [0], [1], [0, 0, 1, 1], [], []>} : vector<8x272xbf16>, vector<272x512xbf16>, vector<8x512xf32> -> vector<8x512xf32>
      %c0_53 = arith.constant 0 : index
      %c0_54 = arith.constant 0 : index
      %98 = vector.load %arg5[%c0_53, %c0_54] : memref<1x512xf32, #tpu.memory_space<vmem>>, vector<1x512xf32>
      %99 = vector.broadcast %98 : vector<1x512xf32> to vector<8x512xf32>
      %100 = arith.addf %97, %99 : vector<8x512xf32>
      %101 = arith.negf %100 : vector<8x512xf32>
      %102 = math.exp %101 : vector<8x512xf32>
      %cst_55 = arith.constant 1.000000e+00 : f32
      %103 = vector.broadcast %cst_55 : f32 to vector<8x512xf32>
      %104 = arith.addf %103, %102 : vector<8x512xf32>
      %105 = arith.divf %103, %104 : vector<8x512xf32>
      %106 = arith.mulf %100, %105 : vector<8x512xf32>
      %c0_56 = arith.constant 0 : index
      %c0_57 = arith.constant 0 : index
      %107 = vector.load %arg19[%c0_56, %c0_57] : memref<8x512xf32, #tpu.memory_space<vmem>>, vector<8x512xf32>
      tpu.vector_store %arg19[%c0_56, %c0_57], %106 {strides = array<i32>} : memref<8x512xf32, #tpu.memory_space<vmem>>, vector<8x512xf32>,
    } else {
    }
    %c0 = arith.constant 0 : index
    %c0_1 = arith.constant 0 : index
    %3 = vector.load %arg6[%c0, %c0_1] : memref<512x32xf32, #tpu.memory_space<vmem>>, vector<512x32xf32>
    %c0_2 = arith.constant 0 : index
    %c0_3 = arith.constant 0 : index
    %4 = vector.load %arg7[%c0_2, %c0_3] : memref<32x512xf32, #tpu.memory_space<vmem>>, vector<32x512xf32>
    %c0_4 = arith.constant 0 : index
    %c0_5 = arith.constant 0 : index
    %5 = vector.load %arg19[%c0_4, %c0_5] : memref<8x512xf32, #tpu.memory_space<vmem>>, vector<8x512xf32>
    %6 = arith.truncf %5 : vector<8x512xf32> to vector<8x512xbf16>
    %c0_6 = arith.constant 0 : index
    %c0_7 = arith.constant 0 : index
    %c0_8 = arith.constant 0 : index
    %7 = vector.load %arg8[%c0_6, %c0_7, %c0_8] : memref<1x512x512xbf16, #tpu.memory_space<vmem>>, vector<1x512x512xbf16>
    %8 = vector.shape_cast %7 : vector<1x512x512xbf16> to vector<512x512xbf16>
    %cst = arith.constant dense<0.000000e+00> : vector<8x512xf32>
    %9 = tpu.matmul %6, %8, %cst {dimension_numbers = #tpu.dot_dimension_numbers<[1], [0], [0], [1], [0, 0, 1, 1], [], []>} : vector<8x512xbf16>, vector<512x512xbf16>, vector<8x512xf32> -> vector<8x512xf32>
    %c0_9 = arith.constant 0 : index
    %c0_10 = arith.constant 0 : index
    %c0_11 = arith.constant 0 : index
    %10 = vector.load %arg9[%c0_9, %c0_10, %c0_11] : memref<1x1x512xf32, #tpu.memory_space<vmem>>, vector<1x1x512xf32>
    %11 = vector.shape_cast %10 : vector<1x1x512xf32> to vector<1x512xf32>
    %12 = vector.broadcast %11 : vector<1x512xf32> to vector<8x512xf32>
    %13 = arith.addf %9, %12 : vector<8x512xf32>
    %c0_12 = arith.constant 0 : index
    %c0_13 = arith.constant 0 : index
    %c0_14 = arith.constant 0 : index
    %14 = vector.load %arg10[%c0_12, %c0_13, %c0_14] : memref<1x1x512xf32, #tpu.memory_space<vmem>>, vector<1x1x512xf32>
    %15 = vector.shape_cast %14 : vector<1x1x512xf32> to vector<1x512xf32>
    %c0_15 = arith.constant 0 : index
    %c0_16 = arith.constant 0 : index
    %c0_17 = arith.constant 0 : index
    %16 = vector.load %arg11[%c0_15, %c0_16, %c0_17] : memref<1x1x512xf32, #tpu.memory_space<vmem>>, vector<1x1x512xf32>
    %17 = vector.shape_cast %16 : vector<1x1x512xf32> to vector<1x512xf32>
    %18 = arith.mulf %13, %13 : vector<8x512xf32>
    %19 = tpu.concatenate %13, %18 in 0 : vector<8x512xf32>, vector<8x512xf32> -> vector<16x512xf32>
    %cst_18 = arith.constant dense<0.000000e+00> : vector<16x32xf32>
    %20 = tpu.matmul %19, %3, %cst_18 {dimension_numbers = #tpu.dot_dimension_numbers<[1], [0], [0], [1], [0, 0, 1, 1], [], []>} : vector<16x512xf32>, vector<512x32xf32>, vector<16x32xf32> -> vector<16x32xf32>
    %cst_19 = arith.constant dense<0.000000e+00> : vector<16x512xf32>
    %21 = tpu.matmul %20, %4, %cst_19 {dimension_numbers = #tpu.dot_dimension_numbers<[1], [0], [0], [1], [0, 0, 1, 1], [], []>} : vector<16x32xf32>, vector<32x512xf32>, vector<16x512xf32> -> vector<16x512xf32>
    %22 = vector.extract_strided_slice %21 {offsets = [0, 0], sizes = [8, 512], strides = [1, 1]} : vector<16x512xf32> to vector<8x512xf32>
    %23 = vector.extract_strided_slice %21 {offsets = [8, 0], sizes = [8, 512], strides = [1, 1]} : vector<16x512xf32> to vector<8x512xf32>
    %24 = arith.mulf %22, %22 : vector<8x512xf32>
    %25 = arith.subf %23, %24 : vector<8x512xf32>
    %cst_20 = arith.constant 0.000000e+00 : f32
    %26 = vector.broadcast %cst_20 : f32 to vector<8x512xf32>
    %27 = arith.maximumf %25, %26 : vector<8x512xf32>
    %28 = arith.subf %13, %22 : vector<8x512xf32>
    %cst_21 = arith.constant 9.99999974E-6 : f32
    %29 = vector.broadcast %cst_21 : f32 to vector<8x512xf32>
    %30 = arith.addf %27, %29 : vector<8x512xf32>
    %31 = math.rsqrt %30 : vector<8x512xf32>
    %32 = arith.mulf %28, %31 : vector<8x512xf32>
    %33 = vector.broadcast %15 : vector<1x512xf32> to vector<8x512xf32>
    %34 = arith.mulf %32, %33 : vector<8x512xf32>
    %35 = vector.broadcast %17 : vector<1x512xf32> to vector<8x512xf32>
    %36 = arith.addf %34, %35 : vector<8x512xf32>
    %37 = arith.negf %36 : vector<8x512xf32>
    %38 = math.exp %37 : vector<8x512xf32>
    %cst_22 = arith.constant 1.000000e+00 : f32
    %39 = vector.broadcast %cst_22 : f32 to vector<8x512xf32>
    %40 = arith.addf %39, %38 : vector<8x512xf32>
    %41 = arith.divf %39, %40 : vector<8x512xf32>
    %42 = arith.mulf %36, %41 : vector<8x512xf32>
    %43 = arith.truncf %42 : vector<8x512xf32> to vector<8x512xbf16>
    %c0_23 = arith.constant 0 : index
    %c0_24 = arith.constant 0 : index
    %c0_25 = arith.constant 0 : index
    %44 = vector.load %arg12[%c0_23, %c0_24, %c0_25] : memref<1x512x512xbf16, #tpu.memory_space<vmem>>, vector<1x512x512xbf16>
    %45 = vector.shape_cast %44 : vector<1x512x512xbf16> to vector<512x512xbf16>
    %cst_26 = arith.constant dense<0.000000e+00> : vector<8x512xf32>
    %46 = tpu.matmul %43, %45, %cst_26 {dimension_numbers = #tpu.dot_dimension_numbers<[1], [0], [0], [1], [0, 0, 1, 1], [], []>} : vector<8x512xbf16>, vector<512x512xbf16>, vector<8x512xf32> -> vector<8x512xf32>
    %c0_27 = arith.constant 0 : index
    %c0_28 = arith.constant 0 : index
    %c0_29 = arith.constant 0 : index
    %47 = vector.load %arg13[%c0_27, %c0_28, %c0_29] : memref<1x1x512xf32, #tpu.memory_space<vmem>>, vector<1x1x512xf32>
    %48 = vector.shape_cast %47 : vector<1x1x512xf32> to vector<1x512xf32>
    %49 = vector.broadcast %48 : vector<1x512xf32> to vector<8x512xf32>
    %50 = arith.addf %46, %49 : vector<8x512xf32>
    %c0_30 = arith.constant 0 : index
    %c0_31 = arith.constant 0 : index
    %c0_32 = arith.constant 0 : index
    %51 = vector.load %arg14[%c0_30, %c0_31, %c0_32] : memref<1x1x512xf32, #tpu.memory_space<vmem>>, vector<1x1x512xf32>
    %52 = vector.shape_cast %51 : vector<1x1x512xf32> to vector<1x512xf32>
    %c0_33 = arith.constant 0 : index
    %c0_34 = arith.constant 0 : index
    %c0_35 = arith.constant 0 : index
    %53 = vector.load %arg15[%c0_33, %c0_34, %c0_35] : memref<1x1x512xf32, #tpu.memory_space<vmem>>, vector<1x1x512xf32>
    %54 = vector.shape_cast %53 : vector<1x1x512xf32> to vector<1x512xf32>
    %55 = arith.mulf %50, %50 : vector<8x512xf32>
    %56 = tpu.concatenate %50, %55 in 0 : vector<8x512xf32>, vector<8x512xf32> -> vector<16x512xf32>
    %cst_36 = arith.constant dense<0.000000e+00> : vector<16x32xf32>
    %57 = tpu.matmul %56, %3, %cst_36 {dimension_numbers = #tpu.dot_dimension_numbers<[1], [0], [0], [1], [0, 0, 1, 1], [], []>} : vector<16x512xf32>, vector<512x32xf32>, vector<16x32xf32> -> vector<16x32xf32>
    %cst_37 = arith.constant dense<0.000000e+00> : vector<16x512xf32>
    %58 = tpu.matmul %57, %4, %cst_37 {dimension_numbers = #tpu.dot_dimension_numbers<[1], [0], [0], [1], [0, 0, 1, 1], [], []>} : vector<16x32xf32>, vector<32x512xf32>, vector<16x512xf32> -> vector<16x512xf32>
    %59 = vector.extract_strided_slice %58 {offsets = [0, 0], sizes = [8, 512], strides = [1, 1]} : vector<16x512xf32> to vector<8x512xf32>
    %60 = vector.extract_strided_slice %58 {offsets = [8, 0], sizes = [8, 512], strides = [1, 1]} : vector<16x512xf32> to vector<8x512xf32>
    %61 = arith.mulf %59, %59 : vector<8x512xf32>
    %62 = arith.subf %60, %61 : vector<8x512xf32>
    %cst_38 = arith.constant 0.000000e+00 : f32
    %63 = vector.broadcast %cst_38 : f32 to vector<8x512xf32>
    %64 = arith.maximumf %62, %63 : vector<8x512xf32>
    %65 = arith.subf %50, %59 : vector<8x512xf32>
    %cst_39 = arith.constant 9.99999974E-6 : f32
    %66 = vector.broadcast %cst_39 : f32 to vector<8x512xf32>
    %67 = arith.addf %64, %66 : vector<8x512xf32>
    %68 = math.rsqrt %67 : vector<8x512xf32>
    %69 = arith.mulf %65, %68 : vector<8x512xf32>
    %70 = vector.broadcast %52 : vector<1x512xf32> to vector<8x512xf32>
    %71 = arith.mulf %69, %70 : vector<8x512xf32>
    %72 = vector.broadcast %54 : vector<1x512xf32> to vector<8x512xf32>
    %73 = arith.addf %71, %72 : vector<8x512xf32>
    %74 = arith.addf %73, %5 : vector<8x512xf32>
    %75 = arith.negf %74 : vector<8x512xf32>
    %76 = math.exp %75 : vector<8x512xf32>
    %cst_40 = arith.constant 1.000000e+00 : f32
    %77 = vector.broadcast %cst_40 : f32 to vector<8x512xf32>
    %78 = arith.addf %77, %76 : vector<8x512xf32>
    %79 = arith.divf %77, %78 : vector<8x512xf32>
    %80 = arith.mulf %74, %79 : vector<8x512xf32>
    %c0_41 = arith.constant 0 : index
    %c0_42 = arith.constant 0 : index
    %81 = vector.load %arg19[%c0_41, %c0_42] : memref<8x512xf32, #tpu.memory_space<vmem>>, vector<8x512xf32>
    tpu.vector_store %arg19[%c0_41, %c0_42], %80 {strides = array<i32>} : memref<8x512xf32, #tpu.memory_space<vmem>>, vector<8x512xf32>,
    %c2_i32 = arith.constant 2 : i32
    %82 = arith.cmpi eq, %arg0, %c2_i32 : i32
    %83 = arith.extui %82 : i1 to i32
    %c0_i32_43 = arith.constant 0 : i32
    %84 = arith.cmpi ne, %83, %c0_i32_43 : i32
    scf.if %84 {
      %85 = arith.truncf %80 : vector<8x512xf32> to vector<8x512xbf16>
      %c0_44 = arith.constant 0 : index
      %c0_45 = arith.constant 0 : index
      %86 = vector.load %arg16[%c0_44, %c0_45] : memref<512x16xbf16, #tpu.memory_space<vmem>>, vector<512x16xbf16>
      %cst_46 = arith.constant dense<0.000000e+00> : vector<8x16xf32>
      %87 = tpu.matmul %85, %86, %cst_46 {dimension_numbers = #tpu.dot_dimension_numbers<[1], [0], [0], [1], [0, 0, 1, 1], [], []>} : vector<8x512xbf16>, vector<512x16xbf16>, vector<8x16xf32> -> vector<8x16xf32>
      %c0_47 = arith.constant 0 : index
      %c0_48 = arith.constant 0 : index
      %88 = vector.load %arg17[%c0_47, %c0_48] : memref<1x16xf32, #tpu.memory_space<vmem>>, vector<1x16xf32>
      %89 = vector.broadcast %88 : vector<1x16xf32> to vector<8x16xf32>
      %90 = arith.addf %87, %89 : vector<8x16xf32>
      %c0_49 = arith.constant 0 : index
      %c0_50 = arith.constant 0 : index
      %91 = vector.load %arg18[%c0_49, %c0_50] : memref<8x16xf32, #tpu.memory_space<vmem>>, vector<8x16xf32>
      tpu.vector_store %arg18[%c0_49, %c0_50], %90 {strides = array<i32>} : memref<8x16xf32, #tpu.memory_space<vmem>>, vector<8x16xf32>,
    } else {
    }
    return
  }
  func.func @transform_0(%arg0: i32) -> (i32, i32) {
    %c0_i32 = arith.constant 0 : i32
    %c0_i32_0 = arith.constant 0 : i32
    %c0_i32_1 = arith.constant 0 : i32
    return %c0_i32, %c0_i32_0 : i32, i32
  }
  func.func @transform_1(%arg0: i32) -> (i32, i32) {
    %c0_i32 = arith.constant 0 : i32
    %c0_i32_0 = arith.constant 0 : i32
    %c0_i32_1 = arith.constant 0 : i32
    return %c0_i32, %c0_i32_0 : i32, i32
  }
  func.func @transform_2(%arg0: i32) -> (i32, i32) {
    %c0_i32 = arith.constant 0 : i32
    %c0_i32_0 = arith.constant 0 : i32
    %c0_i32_1 = arith.constant 0 : i32
    return %c0_i32, %c0_i32_0 : i32, i32
  }
  func.func @transform_3(%arg0: i32) -> (i32, i32) {
    %c0_i32 = arith.constant 0 : i32
    %c0_i32_0 = arith.constant 0 : i32
    %c0_i32_1 = arith.constant 0 : i32
    return %c0_i32, %c0_i32_0 : i32, i32
  }
  func.func @transform_4(%arg0: i32) -> (i32, i32) {
    %c0_i32 = arith.constant 0 : i32
    %c0_i32_0 = arith.constant 0 : i32
    %c0_i32_1 = arith.constant 0 : i32
    return %c0_i32, %c0_i32_0 : i32, i32
  }
  func.func @transform_5(%arg0: i32) -> (i32, i32) {
    %c0_i32 = arith.constant 0 : i32
    %c0_i32_0 = arith.constant 0 : i32
    %c0_i32_1 = arith.constant 0 : i32
    return %c0_i32, %c0_i32_0 : i32, i32
  }
  func.func @transform_6(%arg0: i32) -> (i32, i32) {
    %c0_i32 = arith.constant 0 : i32
    %c0_i32_0 = arith.constant 0 : i32
    %c0_i32_1 = arith.constant 0 : i32
    return %c0_i32, %c0_i32_0 : i32, i32
  }
  func.func @transform_7(%arg0: i32) -> (i32, i32, i32) {
    %c0_i32 = arith.constant 0 : i32
    %c0_i32_0 = arith.constant 0 : i32
    %c0_i32_1 = arith.constant 0 : i32
    return %arg0, %c0_i32, %c0_i32_0 : i32, i32, i32
  }
  func.func @transform_8(%arg0: i32) -> (i32, i32, i32) {
    %c0_i32 = arith.constant 0 : i32
    %c0_i32_0 = arith.constant 0 : i32
    %c0_i32_1 = arith.constant 0 : i32
    return %arg0, %c0_i32, %c0_i32_0 : i32, i32, i32
  }
  func.func @transform_9(%arg0: i32) -> (i32, i32, i32) {
    %c0_i32 = arith.constant 0 : i32
    %c0_i32_0 = arith.constant 0 : i32
    %c0_i32_1 = arith.constant 0 : i32
    return %arg0, %c0_i32, %c0_i32_0 : i32, i32, i32
  }
  func.func @transform_10(%arg0: i32) -> (i32, i32, i32) {
    %c0_i32 = arith.constant 0 : i32
    %c0_i32_0 = arith.constant 0 : i32
    %c0_i32_1 = arith.constant 0 : i32
    return %arg0, %c0_i32, %c0_i32_0 : i32, i32, i32
  }
  func.func @transform_11(%arg0: i32) -> (i32, i32, i32) {
    %c0_i32 = arith.constant 0 : i32
    %c0_i32_0 = arith.constant 0 : i32
    %c0_i32_1 = arith.constant 0 : i32
    return %arg0, %c0_i32, %c0_i32_0 : i32, i32, i32
  }
  func.func @transform_12(%arg0: i32) -> (i32, i32, i32) {
    %c0_i32 = arith.constant 0 : i32
    %c0_i32_0 = arith.constant 0 : i32
    %c0_i32_1 = arith.constant 0 : i32
    return %arg0, %c0_i32, %c0_i32_0 : i32, i32, i32
  }
  func.func @transform_13(%arg0: i32) -> (i32, i32, i32) {
    %c0_i32 = arith.constant 0 : i32
    %c0_i32_0 = arith.constant 0 : i32
    %c0_i32_1 = arith.constant 0 : i32
    return %arg0, %c0_i32, %c0_i32_0 : i32, i32, i32
  }
  func.func @transform_14(%arg0: i32) -> (i32, i32, i32) {
    %c0_i32 = arith.constant 0 : i32
    %c0_i32_0 = arith.constant 0 : i32
    %c0_i32_1 = arith.constant 0 : i32
    return %arg0, %c0_i32, %c0_i32_0 : i32, i32, i32
  }
  func.func @transform_15(%arg0: i32) -> (i32, i32) {
    %c0_i32 = arith.constant 0 : i32
    %c0_i32_0 = arith.constant 0 : i32
    %c0_i32_1 = arith.constant 0 : i32
    return %c0_i32, %c0_i32_0 : i32, i32
  }
  func.func @transform_16(%arg0: i32) -> (i32, i32) {
    %c0_i32 = arith.constant 0 : i32
    %c0_i32_0 = arith.constant 0 : i32
    %c0_i32_1 = arith.constant 0 : i32
    return %c0_i32, %c0_i32_0 : i32, i32
  }
  func.func @transform_17(%arg0: i32) -> (i32, i32) {
    %c0_i32 = arith.constant 0 : i32
    %c0_i32_0 = arith.constant 0 : i32
    %c0_i32_1 = arith.constant 0 : i32
    return %c0_i32, %c0_i32_0 : i32, i32
  }
}

</mosaic_0001>

<llo_original>
// kernel: tpu_custom_call.1
$region0: #{tpu_custom_call.1}
  #allocation0 [shape = 'u32[]', space=smem, size = 0x4, offset = 0x4, fixed_abs, tag = 'smem constant byte address 0x4 - core index']
  #allocation1 [shape = 'u32[144,128]{1,0:T(1,128)}', space=vmem, size = 0x12000, scoped, tag = 'internal scratch']
  #allocation2 [shape = 'f32[8,512]{1,0:T(8,128)}', space=vmem, size = 0x4000, scoped, tag = 'scratch operand']
  %s0 = inlined_call_operand.vmem [shape: f32[8,1], index: 0, kind: input, shape index: {}]
  %s1 = inlined_call_operand.hbm [shape: f32[8,16], index: 1, kind: input, shape index: {}]
  %s2 = inlined_call_operand.hbm [shape: f32[1,128], index: 2, kind: input, shape index: {}]
  %s3 = inlined_call_operand.hbm [shape: bf16[272,512], index: 3, kind: input, shape index: {}]
  %s4 = inlined_call_operand.hbm [shape: f32[1,512], index: 4, kind: input, shape index: {}]
  %s5 = inlined_call_operand.vmem [shape: f32[512,32], index: 5, kind: input, shape index: {}]
  %s6 = inlined_call_operand.hbm [shape: f32[32,512], index: 6, kind: input, shape index: {}]
  %s7 = inlined_call_operand.hbm [shape: bf16[3,512,512], index: 7, kind: input, shape index: {}]
  %s8 = inlined_call_operand.hbm [shape: f32[3,1,512], index: 8, kind: input, shape index: {}]
  %s9 = inlined_call_operand.hbm [shape: f32[3,1,512], index: 9, kind: input, shape index: {}]
  %s10 = inlined_call_operand.hbm [shape: f32[3,1,512], index: 10, kind: input, shape index: {}]
  %s11 = inlined_call_operand.hbm [shape: bf16[3,512,512], index: 11, kind: input, shape index: {}]
  %s12 = inlined_call_operand.hbm [shape: f32[3,1,512], index: 12, kind: input, shape index: {}]
  %s13 = inlined_call_operand.hbm [shape: f32[3,1,512], index: 13, kind: input, shape index: {}]
  %s14 = inlined_call_operand.hbm [shape: f32[3,1,512], index: 14, kind: input, shape index: {}]
  %s15 = inlined_call_operand.vmem [shape: bf16[512,16], index: 15, kind: input, shape index: {}]
  %s16 = inlined_call_operand.hbm [shape: f32[1,16], index: 16, kind: input, shape index: {}]
  %s17 = inlined_call_operand.hbm [shape: f32[8,16], index: 17, kind: output, shape index: {}]
  %s18 = sld [smem:[#allocation0]]
  $region165: #{tpu_custom_call.1} parent=0
    _
  %s20 = ssub.s32 1, %s18
  %s21 = scalar_select 0, %s20, %s18
  $region1: #{tpu_custom_call.1} parent=0
    #allocation3 [shape = 'u8[4096]{0}', space=vmem, size = 0x1000, scoped, tag = 'input window, operand 1, single buffered']
    #allocation4 [shape = 's32[2]{0}', space=sflag, size = 0x8, scoped, tag = 'scoped memory for tpu_custom_call.1']
    #allocation5 [shape = 's32[2]{0}', space=sflag, size = 0x8, scoped, tag = 'scoped memory for tpu_custom_call.1']
    #allocation6 [shape = 'u8[512]{0}', space=vmem, size = 0x400, scoped, tag = 'input window, operand 2, single buffered']
    #allocation7 [shape = 's32[1]{0}', space=sflag, size = 0x4, scoped, tag = 'scoped memory for tpu_custom_call.1']
    #allocation8 [shape = 'u8[278528]{0}', space=vmem, size = 0x44000, scoped, tag = 'input window, operand 3, single buffered']
    #allocation9 [shape = 'u8[2048]{0}', space=vmem, size = 0x800, scoped, tag = 'input window, operand 4, single buffered']
    #allocation10 [shape = 's32[1]{0}', space=sflag, size = 0x4, scoped, tag = 'scoped memory for tpu_custom_call.1']
    #allocation11 [shape = 'u8[65536]{0}', space=vmem, size = 0x10000, scoped, tag = 'input window, operand 6, single buffered']
    #allocation12 [shape = 'u8[1048576]{0}', space=vmem, size = 0x100000, scoped, tag = 'input window, operand 7']
    #allocation13 [shape = 's32[2]{0}', space=sflag, size = 0x8, scoped, tag = 'scoped memory for tpu_custom_call.1']
    #allocation14 [shape = 'u8[4096]{0}', space=vmem, size = 0x1000, scoped, tag = 'input window, operand 8']
    #allocation15 [shape = 'u8[4096]{0}', space=vmem, size = 0x1000, scoped, tag = 'input window, operand 9']
    #allocation16 [shape = 's32[2]{0}', space=sflag, size = 0x8, scoped, tag = 'scoped memory for tpu_custom_call.1']
    #allocation17 [shape = 'u8[4096]{0}', space=vmem, size = 0x1000, scoped, tag = 'input window, operand 10']
    #allocation18 [shape = 'u8[1048576]{0}', space=vmem, size = 0x100000, scoped, tag = 'input window, operand 11']
    #allocation19 [shape = 's32[2]{0}', space=sflag, size = 0x8, scoped, tag = 'scoped memory for tpu_custom_call.1']
    #allocation20 [shape = 'u8[4096]{0}', space=vmem, size = 0x1000, scoped, tag = 'input window, operand 12']
    #allocation21 [shape = 'u8[4096]{0}', space=vmem, size = 0x1000, scoped, tag = 'input window, operand 13']
    #allocation22 [shape = 's32[2]{0}', space=sflag, size = 0x8, scoped, tag = 'scoped memory for tpu_custom_call.1']
    #allocation23 [shape = 'u8[4096]{0}', space=vmem, size = 0x1000, scoped, tag = 'input window, operand 14']
    #allocation24 [shape = 'u8[512]{0}', space=vmem, size = 0x400, scoped, tag = 'input window, operand 16, single buffered']
    #allocation25 [shape = 's32[1]{0}', space=sflag, size = 0x4, scoped, tag = 'scoped memory for tpu_custom_call.1']
    #allocation26 [shape = 'u8[4096]{0}', space=vmem, size = 0x1000, scoped, tag = 'output window, operand 0, single buffered']
    %22 = vsyncpa [#allocation4], 0
    %23 = vsyncpa [#allocation7], 0
    %24 = vsyncpa [#allocation10], 0
    %25 = vsyncpa [#allocation13], 0
    %s26 = scalar_lea.sflag [#allocation13], 1
    %27 = vsyncpa %s26, 0
    %28 = vsyncpa [#allocation16], 0
    %s29 = scalar_lea.sflag [#allocation16], 1
    %30 = vsyncpa %s29, 0
    %31 = vsyncpa [#allocation19], 0
    %s32 = scalar_lea.sflag [#allocation19], 1
    %33 = vsyncpa %s32, 0
    %34 = vsyncpa [#allocation22], 0
    %s35 = scalar_lea.sflag [#allocation22], 1
    %36 = vsyncpa %s35, 0
    %37 = vsyncpa [#allocation25], 0
    %38 = vsyncpa [#allocation5], 0
    loop: start=0, step=1, limit=5
    $region2: #{tpu_custom_call.1} parent=1 // loop_pre_header
      _
    $region3: #{tpu_custom_call.1} parent=1 // loop_header
      %s40 = sphi 0, %s44
      %p41 = scmp.ge.s32.totalorder %s40, 5
      %s48 = sphi 0, %s48
      %s50 = sphi 0, %s48
      %s51 = sphi 0, %s50
      %s65 = sphi 0, %s51
      %s69 = sphi 0, %s69
      %s71 = sphi 0, %s69
      %s72 = sphi 0, %s71
      %s86 = sphi 0, %s72
      %s90 = sphi 0, %s90
      %s92 = sphi 0, %s90
      %s93 = sphi 0, %s92
      %s107 = sphi 0, %s93
      %s111 = sphi 0, %s111
      %s113 = sphi 0, %s111
      %s114 = sphi 0, %s113
      %s128 = sphi 0, %s114
      %s132 = sphi 0, %s132
      %s134 = sphi 0, %s132
      %s135 = sphi 0, %s134
      %s149 = sphi 0, %s135
      %s153 = sphi 0, %s153
      %s155 = sphi 0, %s153
      %s156 = sphi 0, %s155
      %s170 = sphi 0, %s156
      %s174 = sphi 0, %s174
      %s176 = sphi 0, %s174
      %s177 = sphi 0, %s176
      %s191 = sphi 0, %s177
      %s197 = sphi 0, %s199
      %s200 = sphi 0, %s197
      %s201 = sphi 0, %s200
      %s217 = sphi 0, %s201
      %s223 = sphi 0, %s225
      %s226 = sphi 0, %s223
      %s227 = sphi 0, %s226
      %s243 = sphi 0, %s227
      %s249 = sphi 0, %s251
      %s252 = sphi 0, %s249
      %s253 = sphi 0, %s252
      %s269 = sphi 0, %s253
      %s275 = sphi 0, %s277
      %s278 = sphi 0, %s275
      %s279 = sphi 0, %s278
      %s295 = sphi 0, %s279
      %s301 = sphi 0, %s303
      %s304 = sphi 0, %s301
      %s305 = sphi 0, %s304
      %s321 = sphi 0, %s305
      %s327 = sphi 0, %s329
      %s330 = sphi 0, %s327
      %s331 = sphi 0, %s330
      %s347 = sphi 0, %s331
      %s353 = sphi 0, %s355
      %s356 = sphi 0, %s353
      %s357 = sphi 0, %s356
      %s373 = sphi 0, %s357
      %s379 = sphi 0, %s381
      %s382 = sphi 0, %s379
      %s383 = sphi 0, %s382
      %s399 = sphi 0, %s383
      %s403 = sphi 0, %s403
      %s405 = sphi 0, %s403
      %s406 = sphi 0, %s405
      %s420 = sphi 0, %s406
      %s424 = sphi 0, %s424
      %s426 = sphi 0, %s424
      %s427 = sphi 0, %s426
      %s441 = sphi 0, %s427
      %s445 = sphi 0, %s445
      %s447 = sphi 0, %s445
      %s448 = sphi 0, %s447
      %s462 = sphi 0, %s448
    $region4: #{tpu_custom_call.1} parent=1 // loop_header_branch
      %43 = sbr.rel (%p41) target = $region8
    $region5: #{tpu_custom_call.1} parent=1 // loop_body
      %s45 = ssub.s32 %s40, 1
      %s46 = ssub.s32 %s40, 2
      %s47 = sadd.s32 %s40, 1
      %s49 = sadd.s32 %s48, 1
      %p52 = scmp.eq.s32.totalorder %s40, 2
      %p53 = scmp.ne.s32.totalorder %s48, %s50
      %p54 = scmp.eq.s32.totalorder %s40, 0
      %p55 = por %p53, %p54
      %p56 = scmp.ne.s32.totalorder %s48, %s50
      %p57 = scmp.eq.s32.totalorder %s45, 2
      %p58 = por %p56, %p57
      %p59 = scmp.ne.s32.totalorder %s50, %s51
      %p60 = scmp.eq.s32.totalorder %s45, 0
      %p61 = por %p59, %p60
      %p62 = scmp.ne.s32.totalorder %s50, %s51
      %p63 = scmp.eq.s32.totalorder %s46, 2
      %p64 = por %p62, %p63
      %p66 = scmp.ne.s32.totalorder %s51, %s65
      %p67 = scmp.eq.s32.totalorder %s46, 0
      %p68 = por %p66, %p67
      %s70 = sadd.s32 %s69, 1
      %p73 = scmp.eq.s32.totalorder %s40, 2
      %p74 = scmp.ne.s32.totalorder %s69, %s71
      %p75 = scmp.eq.s32.totalorder %s40, 0
      %p76 = por %p74, %p75
      %p77 = scmp.ne.s32.totalorder %s69, %s71
      %p78 = scmp.eq.s32.totalorder %s45, 2
      %p79 = por %p77, %p78
      %p80 = scmp.ne.s32.totalorder %s71, %s72
      %p81 = scmp.eq.s32.totalorder %s45, 0
      %p82 = por %p80, %p81
      %p83 = scmp.ne.s32.totalorder %s71, %s72
      %p84 = scmp.eq.s32.totalorder %s46, 2
      %p85 = por %p83, %p84
      %p87 = scmp.ne.s32.totalorder %s72, %s86
      %p88 = scmp.eq.s32.totalorder %s46, 0
      %p89 = por %p87, %p88
      %s91 = sadd.s32 %s90, 1
      %p94 = scmp.eq.s32.totalorder %s40, 2
      %p95 = scmp.ne.s32.totalorder %s90, %s92
      %p96 = scmp.eq.s32.totalorder %s40, 0
      %p97 = por %p95, %p96
      %p98 = scmp.ne.s32.totalorder %s90, %s92
      %p99 = scmp.eq.s32.totalorder %s45, 2
      %p100 = por %p98, %p99
      %p101 = scmp.ne.s32.totalorder %s92, %s93
      %p102 = scmp.eq.s32.totalorder %s45, 0
      %p103 = por %p101, %p102
      %p104 = scmp.ne.s32.totalorder %s92, %s93
      %p105 = scmp.eq.s32.totalorder %s46, 2
      %p106 = por %p104, %p105
      %p108 = scmp.ne.s32.totalorder %s93, %s107
      %p109 = scmp.eq.s32.totalorder %s46, 0
      %p110 = por %p108, %p109
      %s112 = sadd.s32 %s111, 1
      %p115 = scmp.eq.s32.totalorder %s40, 2
      %p116 = scmp.ne.s32.totalorder %s111, %s113
      %p117 = scmp.eq.s32.totalorder %s40, 0
      %p118 = por %p116, %p117
      %p119 = scmp.ne.s32.totalorder %s111, %s113
      %p120 = scmp.eq.s32.totalorder %s45, 2
      %p121 = por %p119, %p120
      %p122 = scmp.ne.s32.totalorder %s113, %s114
      %p123 = scmp.eq.s32.totalorder %s45, 0
      %p124 = por %p122, %p123
      %p125 = scmp.ne.s32.totalorder %s113, %s114
      %p126 = scmp.eq.s32.totalorder %s46, 2
      %p127 = por %p125, %p126
      %p129 = scmp.ne.s32.totalorder %s114, %s128
      %p130 = scmp.eq.s32.totalorder %s46, 0
      %p131 = por %p129, %p130
      %s133 = sadd.s32 %s132, 1
      %p136 = scmp.eq.s32.totalorder %s40, 2
      %p137 = scmp.ne.s32.totalorder %s132, %s134
      %p138 = scmp.eq.s32.totalorder %s40, 0
      %p139 = por %p137, %p138
      %p140 = scmp.ne.s32.totalorder %s132, %s134
      %p141 = scmp.eq.s32.totalorder %s45, 2
      %p142 = por %p140, %p141
      %p143 = scmp.ne.s32.totalorder %s134, %s135
      %p144 = scmp.eq.s32.totalorder %s45, 0
      %p145 = por %p143, %p144
      %p146 = scmp.ne.s32.totalorder %s134, %s135
      %p147 = scmp.eq.s32.totalorder %s46, 2
      %p148 = por %p146, %p147
      %p150 = scmp.ne.s32.totalorder %s135, %s149
      %p151 = scmp.eq.s32.totalorder %s46, 0
      %p152 = por %p150, %p151
      %s154 = sadd.s32 %s153, 1
      %p157 = scmp.eq.s32.totalorder %s40, 2
      %p158 = scmp.ne.s32.totalorder %s153, %s155
      %p159 = scmp.eq.s32.totalorder %s40, 0
      %p160 = por %p158, %p159
      %p161 = scmp.ne.s32.totalorder %s153, %s155
      %p162 = scmp.eq.s32.totalorder %s45, 2
      %p163 = por %p161, %p162
      %p164 = scmp.ne.s32.totalorder %s155, %s156
      %p165 = scmp.eq.s32.totalorder %s45, 0
      %p166 = por %p164, %p165
      %p167 = scmp.ne.s32.totalorder %s155, %s156
      %p168 = scmp.eq.s32.totalorder %s46, 2
      %p169 = por %p167, %p168
      %p171 = scmp.ne.s32.totalorder %s156, %s170
      %p172 = scmp.eq.s32.totalorder %s46, 0
      %p173 = por %p171, %p172
      %s175 = sadd.s32 %s174, 1
      %p178 = scmp.eq.s32.totalorder %s40, 2
      %p179 = scmp.ne.s32.totalorder %s174, %s176
      %p180 = scmp.eq.s32.totalorder %s40, 0
      %p181 = por %p179, %p180
      %p182 = scmp.ne.s32.totalorder %s174, %s176
      %p183 = scmp.eq.s32.totalorder %s45, 2
      %p184 = por %p182, %p183
      %p185 = scmp.ne.s32.totalorder %s176, %s177
      %p186 = scmp.eq.s32.totalorder %s45, 0
      %p187 = por %p185, %p186
      %p188 = scmp.ne.s32.totalorder %s176, %s177
      %p189 = scmp.eq.s32.totalorder %s46, 2
      %p190 = por %p188, %p189
      %p192 = scmp.ne.s32.totalorder %s177, %s191
      %p193 = scmp.eq.s32.totalorder %s46, 0
      %p194 = por %p192, %p193
      %s195 = ssub.s32 %s40, %s47
      %p196 = scmp.eq.s32.totalorder %s195, 0
      %s198 = sadd.s32 %s197, 1
      %s199 = scalar_select %p196, %s197, %s198
      %p202 = pneg %p196
      %p203 = scmp.eq.s32.totalorder %s40, 2
      %p204 = por %p202, %p203
      %p205 = scmp.ne.s32.totalorder %s197, %s200
      %p206 = scmp.eq.s32.totalorder %s40, 0
      %p207 = por %p205, %p206
      %p208 = scmp.ne.s32.totalorder %s197, %s200
      %p209 = scmp.eq.s32.totalorder %s45, 2
      %p210 = por %p208, %p209
      %p211 = scmp.ne.s32.totalorder %s200, %s201
      %p212 = scmp.eq.s32.totalorder %s45, 0
      %p213 = por %p211, %p212
      %p214 = scmp.ne.s32.totalorder %s200, %s201
      %p215 = scmp.eq.s32.totalorder %s46, 2
      %p216 = por %p214, %p215
      %p218 = scmp.ne.s32.totalorder %s201, %s217
      %p219 = scmp.eq.s32.totalorder %s46, 0
      %p220 = por %p218, %p219
      %s221 = ssub.s32 %s40, %s47
      %p222 = scmp.eq.s32.totalorder %s221, 0
      %s224 = sadd.s32 %s223, 1
      %s225 = scalar_select %p222, %s223, %s224
      %p228 = pneg %p222
      %p229 = scmp.eq.s32.totalorder %s40, 2
      %p230 = por %p228, %p229
      %p231 = scmp.ne.s32.totalorder %s223, %s226
      %p232 = scmp.eq.s32.totalorder %s40, 0
      %p233 = por %p231, %p232
      %p234 = scmp.ne.s32.totalorder %s223, %s226
      %p235 = scmp.eq.s32.totalorder %s45, 2
      %p236 = por %p234, %p235
      %p237 = scmp.ne.s32.totalorder %s226, %s227
      %p238 = scmp.eq.s32.totalorder %s45, 0
      %p239 = por %p237, %p238
      %p240 = scmp.ne.s32.totalorder %s226, %s227
      %p241 = scmp.eq.s32.totalorder %s46, 2
      %p242 = por %p240, %p241
      %p244 = scmp.ne.s32.totalorder %s227, %s243
      %p245 = scmp.eq.s32.totalorder %s46, 0
      %p246 = por %p244, %p245
      %s247 = ssub.s32 %s40, %s47
      %p248 = scmp.eq.s32.totalorder %s247, 0
      %s250 = sadd.s32 %s249, 1
      %s251 = scalar_select %p248, %s249, %s250
      %p254 = pneg %p248
      %p255 = scmp.eq.s32.totalorder %s40, 2
      %p256 = por %p254, %p255
      %p257 = scmp.ne.s32.totalorder %s249, %s252
      %p258 = scmp.eq.s32.totalorder %s40, 0
      %p259 = por %p257, %p258
      %p260 = scmp.ne.s32.totalorder %s249, %s252
      %p261 = scmp.eq.s32.totalorder %s45, 2
      %p262 = por %p260, %p261
      %p263 = scmp.ne.s32.totalorder %s252, %s253
      %p264 = scmp.eq.s32.totalorder %s45, 0
      %p265 = por %p263, %p264
      %p266 = scmp.ne.s32.totalorder %s252, %s253
      %p267 = scmp.eq.s32.totalorder %s46, 2
      %p268 = por %p266, %p267
      %p270 = scmp.ne.s32.totalorder %s253, %s269
      %p271 = scmp.eq.s32.totalorder %s46, 0
      %p272 = por %p270, %p271
      %s273 = ssub.s32 %s40, %s47
      %p274 = scmp.eq.s32.totalorder %s273, 0
      %s276 = sadd.s32 %s275, 1
      %s277 = scalar_select %p274, %s275, %s276
      %p280 = pneg %p274
      %p281 = scmp.eq.s32.totalorder %s40, 2
      %p282 = por %p280, %p281
      %p283 = scmp.ne.s32.totalorder %s275, %s278
      %p284 = scmp.eq.s32.totalorder %s40, 0
      %p285 = por %p283, %p284
      %p286 = scmp.ne.s32.totalorder %s275, %s278
      %p287 = scmp.eq.s32.totalorder %s45, 2
      %p288 = por %p286, %p287
      %p289 = scmp.ne.s32.totalorder %s278, %s279
      %p290 = scmp.eq.s32.totalorder %s45, 0
      %p291 = por %p289, %p290
      %p292 = scmp.ne.s32.totalorder %s278, %s279
      %p293 = scmp.eq.s32.totalorder %s46, 2
      %p294 = por %p292, %p293
      %p296 = scmp.ne.s32.totalorder %s279, %s295
      %p297 = scmp.eq.s32.totalorder %s46, 0
      %p298 = por %p296, %p297
      %s299 = ssub.s32 %s40, %s47
      %p300 = scmp.eq.s32.totalorder %s299, 0
      %s302 = sadd.s32 %s301, 1
      %s303 = scalar_select %p300, %s301, %s302
      %p306 = pneg %p300
      %p307 = scmp.eq.s32.totalorder %s40, 2
      %p308 = por %p306, %p307
      %p309 = scmp.ne.s32.totalorder %s301, %s304
      %p310 = scmp.eq.s32.totalorder %s40, 0
      %p311 = por %p309, %p310
      %p312 = scmp.ne.s32.totalorder %s301, %s304
      %p313 = scmp.eq.s32.totalorder %s45, 2
      %p314 = por %p312, %p313
      %p315 = scmp.ne.s32.totalorder %s304, %s305
      %p316 = scmp.eq.s32.totalorder %s45, 0
      %p317 = por %p315, %p316
      %p318 = scmp.ne.s32.totalorder %s304, %s305
      %p319 = scmp.eq.s32.totalorder %s46, 2
      %p320 = por %p318, %p319
      %p322 = scmp.ne.s32.totalorder %s305, %s321
      %p323 = scmp.eq.s32.totalorder %s46, 0
      %p324 = por %p322, %p323
      %s325 = ssub.s32 %s40, %s47
      %p326 = scmp.eq.s32.totalorder %s325, 0
      %s328 = sadd.s32 %s327, 1
      %s329 = scalar_select %p326, %s327, %s328
      %p332 = pneg %p326
      %p333 = scmp.eq.s32.totalorder %s40, 2
      %p334 = por %p332, %p333
      %p335 = scmp.ne.s32.totalorder %s327, %s330
      %p336 = scmp.eq.s32.totalorder %s40, 0
      %p337 = por %p335, %p336
      %p338 = scmp.ne.s32.totalorder %s327, %s330
      %p339 = scmp.eq.s32.totalorder %s45, 2
      %p340 = por %p338, %p339
      %p341 = scmp.ne.s32.totalorder %s330, %s331
      %p342 = scmp.eq.s32.totalorder %s45, 0
      %p343 = por %p341, %p342
      %p344 = scmp.ne.s32.totalorder %s330, %s331
      %p345 = scmp.eq.s32.totalorder %s46, 2
      %p346 = por %p344, %p345
      %p348 = scmp.ne.s32.totalorder %s331, %s347
      %p349 = scmp.eq.s32.totalorder %s46, 0
      %p350 = por %p348, %p349
      %s351 = ssub.s32 %s40, %s47
      %p352 = scmp.eq.s32.totalorder %s351, 0
      %s354 = sadd.s32 %s353, 1
      %s355 = scalar_select %p352, %s353, %s354
      %p358 = pneg %p352
      %p359 = scmp.eq.s32.totalorder %s40, 2
      %p360 = por %p358, %p359
      %p361 = scmp.ne.s32.totalorder %s353, %s356
      %p362 = scmp.eq.s32.totalorder %s40, 0
      %p363 = por %p361, %p362
      %p364 = scmp.ne.s32.totalorder %s353, %s356
      %p365 = scmp.eq.s32.totalorder %s45, 2
      %p366 = por %p364, %p365
      %p367 = scmp.ne.s32.totalorder %s356, %s357
      %p368 = scmp.eq.s32.totalorder %s45, 0
      %p369 = por %p367, %p368
      %p370 = scmp.ne.s32.totalorder %s356, %s357
      %p371 = scmp.eq.s32.totalorder %s46, 2
      %p372 = por %p370, %p371
      %p374 = scmp.ne.s32.totalorder %s357, %s373
      %p375 = scmp.eq.s32.totalorder %s46, 0
      %p376 = por %p374, %p375
      %s377 = ssub.s32 %s40, %s47
      %p378 = scmp.eq.s32.totalorder %s377, 0
      %s380 = sadd.s32 %s379, 1
      %s381 = scalar_select %p378, %s379, %s380
      %p384 = pneg %p378
      %p385 = scmp.eq.s32.totalorder %s40, 2
      %p386 = por %p384, %p385
      %p387 = scmp.ne.s32.totalorder %s379, %s382
      %p388 = scmp.eq.s32.totalorder %s40, 0
      %p389 = por %p387, %p388
      %p390 = scmp.ne.s32.totalorder %s379, %s382
      %p391 = scmp.eq.s32.totalorder %s45, 2
      %p392 = por %p390, %p391
      %p393 = scmp.ne.s32.totalorder %s382, %s383
      %p394 = scmp.eq.s32.totalorder %s45, 0
      %p395 = por %p393, %p394
      %p396 = scmp.ne.s32.totalorder %s382, %s383
      %p397 = scmp.eq.s32.totalorder %s46, 2
      %p398 = por %p396, %p397
      %p400 = scmp.ne.s32.totalorder %s383, %s399
      %p401 = scmp.eq.s32.totalorder %s46, 0
      %p402 = por %p400, %p401
      %s404 = sadd.s32 %s403, 1
      %p407 = scmp.eq.s32.totalorder %s40, 2
      %p408 = scmp.ne.s32.totalorder %s403, %s405
      %p409 = scmp.eq.s32.totalorder %s40, 0
      %p410 = por %p408, %p409
      %p411 = scmp.ne.s32.totalorder %s403, %s405
      %p412 = scmp.eq.s32.totalorder %s45, 2
      %p413 = por %p411, %p412
      %p414 = scmp.ne.s32.totalorder %s405, %s406
      %p415 = scmp.eq.s32.totalorder %s45, 0
      %p416 = por %p414, %p415
      %p417 = scmp.ne.s32.totalorder %s405, %s406
      %p418 = scmp.eq.s32.totalorder %s46, 2
      %p419 = por %p417, %p418
      %p421 = scmp.ne.s32.totalorder %s406, %s420
      %p422 = scmp.eq.s32.totalorder %s46, 0
      %p423 = por %p421, %p422
      %s425 = sadd.s32 %s424, 1
      %p428 = scmp.eq.s32.totalorder %s40, 2
      %p429 = scmp.ne.s32.totalorder %s424, %s426
      %p430 = scmp.eq.s32.totalorder %s40, 0
      %p431 = por %p429, %p430
      %p432 = scmp.ne.s32.totalorder %s424, %s426
      %p433 = scmp.eq.s32.totalorder %s45, 2
      %p434 = por %p432, %p433
      %p435 = scmp.ne.s32.totalorder %s426, %s427
      %p436 = scmp.eq.s32.totalorder %s45, 0
      %p437 = por %p435, %p436
      %p438 = scmp.ne.s32.totalorder %s426, %s427
      %p439 = scmp.eq.s32.totalorder %s46, 2
      %p440 = por %p438, %p439
      %p442 = scmp.ne.s32.totalorder %s427, %s441
      %p443 = scmp.eq.s32.totalorder %s46, 0
      %p444 = por %p442, %p443
      %s446 = sadd.s32 %s445, 1
      %p449 = scmp.eq.s32.totalorder %s40, 2
      %p450 = scmp.ne.s32.totalorder %s445, %s447
      %p451 = scmp.eq.s32.totalorder %s40, 0
      %p452 = por %p450, %p451
      %p453 = scmp.ne.s32.totalorder %s445, %s447
      %p454 = scmp.eq.s32.totalorder %s45, 2
      %p455 = por %p453, %p454
      %p456 = scmp.ne.s32.totalorder %s447, %s448
      %p457 = scmp.eq.s32.totalorder %s45, 0
      %p458 = por %p456, %p457
      %p459 = scmp.ne.s32.totalorder %s447, %s448
      %p460 = scmp.eq.s32.totalorder %s46, 2
      %p461 = por %p459, %p460
      %p463 = scmp.ne.s32.totalorder %s448, %s462
      %p464 = scmp.eq.s32.totalorder %s46, 0
      %p465 = por %p463, %p464
      %p466 = scmp.le.s32.totalorder 1, %s40
      %p467 = scmp.lt.s32.totalorder %s40, 4
      %p468 = pnand %p466, %p467
      %p469 = pneg %p468
      // Predicated region
      $region9: #{tpu_custom_call.1} parent=5 // pred_check
        _
      $region10: #{tpu_custom_call.1} parent=5 // pred_check_branch
        %471 = sbr.rel (%p468) target = $region12
      $region11: #{tpu_custom_call.1} parent=5 // pred_region
        %s472 = ssub.s32 %s40, 1
        // Predicated region
        $region13: #{tpu_custom_call.1} parent=11 // pred_check
          %p473 = pneg %p61
        $region14: #{tpu_custom_call.1} parent=11 // pred_check_branch
          %475 = sbr.rel (%p473) target = $region16
        $region15: #{tpu_custom_call.1} parent=11 // pred_region
          _
        $region16: #{tpu_custom_call.1} parent=11 // pred_fallthru
          _
        // Predicated region
        $region17: #{tpu_custom_call.1} parent=11 // pred_check
          %p476 = pneg %p82
        $region18: #{tpu_custom_call.1} parent=11 // pred_check_branch
          %478 = sbr.rel (%p476) target = $region20
        $region19: #{tpu_custom_call.1} parent=11 // pred_region
          %s480 = ssub.s32 128, 128
          %481 = vsyncadd [#allocation4], %s480
          %s483 = sshll.u32 [#allocation3], 4
          %s484 = int_to_ptr.vmem [resolvable:$true] %s483
          %486 = dma.hbm_to_vmem [thread:$0]  %s1, 128, %s484, [#allocation4]
        $region20: #{tpu_custom_call.1} parent=11 // pred_fallthru
          _
        // Predicated region
        $region21: #{tpu_custom_call.1} parent=11 // pred_check
          %p487 = pneg %p103
        $region22: #{tpu_custom_call.1} parent=11 // pred_check_branch
          %489 = sbr.rel (%p487) target = $region24
        $region23: #{tpu_custom_call.1} parent=11 // pred_region
          %s491 = ssub.s32 16, 16
          %492 = vsyncadd [#allocation7], %s491
          %s494 = sshll.u32 [#allocation6], 4
          %s495 = int_to_ptr.vmem [resolvable:$true] %s494
          %497 = dma.hbm_to_vmem [thread:$0]  %s2, 16, %s495, [#allocation7]
        $region24: #{tpu_custom_call.1} parent=11 // pred_fallthru
          _
        // Predicated region
        $region25: #{tpu_custom_call.1} parent=11 // pred_check
          %p498 = pneg %p124
        $region26: #{tpu_custom_call.1} parent=11 // pred_check_branch
          %500 = sbr.rel (%p498) target = $region28
        $region27: #{tpu_custom_call.1} parent=11 // pred_region
          %s502 = ssub.s32 8704, 8704
          %503 = vsyncadd [#allocation7], %s502
          %s504 = sshll.u32 [#allocation8], 4
          %s505 = int_to_ptr.vmem [resolvable:$true] %s504
          %510 = dma.hbm_to_vmem [thread:$0]  %s3, 8704, %s505, [#allocation7], 256, 256, 16
        $region28: #{tpu_custom_call.1} parent=11 // pred_fallthru
          _
        // Predicated region
        $region29: #{tpu_custom_call.1} parent=11 // pred_check
          %p511 = pneg %p145
        $region30: #{tpu_custom_call.1} parent=11 // pred_check_branch
          %513 = sbr.rel (%p511) target = $region32
        $region31: #{tpu_custom_call.1} parent=11 // pred_region
          %s515 = ssub.s32 64, 64
          %516 = vsyncadd [#allocation10], %s515
          %s518 = sshll.u32 [#allocation9], 4
          %s519 = int_to_ptr.vmem [resolvable:$true] %s518
          %521 = dma.hbm_to_vmem [thread:$0]  %s4, 64, %s519, [#allocation10]
        $region32: #{tpu_custom_call.1} parent=11 // pred_fallthru
          _
        // Predicated region
        $region33: #{tpu_custom_call.1} parent=11 // pred_check
          %p522 = pneg %p166
        $region34: #{tpu_custom_call.1} parent=11 // pred_check_branch
          %524 = sbr.rel (%p522) target = $region36
        $region35: #{tpu_custom_call.1} parent=11 // pred_region
          _
        $region36: #{tpu_custom_call.1} parent=11 // pred_fallthru
          _
        // Predicated region
        $region37: #{tpu_custom_call.1} parent=11 // pred_check
          %p525 = pneg %p187
        $region38: #{tpu_custom_call.1} parent=11 // pred_check_branch
          %527 = sbr.rel (%p525) target = $region40
        $region39: #{tpu_custom_call.1} parent=11 // pred_region
          %s529 = ssub.s32 2048, 2048
          %530 = vsyncadd [#allocation10], %s529
          %s531 = sshll.u32 [#allocation11], 4
          %s532 = int_to_ptr.vmem [resolvable:$true] %s531
          %537 = dma.hbm_to_vmem [thread:$0]  %s6, 2048, %s532, [#allocation10], 512, 512, 32
        $region40: #{tpu_custom_call.1} parent=11 // pred_fallthru
          _
        // Predicated region
        $region41: #{tpu_custom_call.1} parent=11 // pred_check
          %p538 = pneg %p416
        $region42: #{tpu_custom_call.1} parent=11 // pred_check_branch
          %540 = sbr.rel (%p538) target = $region44
        $region43: #{tpu_custom_call.1} parent=11 // pred_region
          _
        $region44: #{tpu_custom_call.1} parent=11 // pred_fallthru
          _
        // Predicated region
        $region45: #{tpu_custom_call.1} parent=11 // pred_check
          %p541 = pneg %p437
        $region46: #{tpu_custom_call.1} parent=11 // pred_check_branch
          %543 = sbr.rel (%p541) target = $region48
        $region47: #{tpu_custom_call.1} parent=11 // pred_region
          %s545 = ssub.s32 16, 16
          %546 = vsyncadd [#allocation25], %s545
          %s548 = sshll.u32 [#allocation24], 4
          %s549 = int_to_ptr.vmem [resolvable:$true] %s548
          %551 = dma.hbm_to_vmem [thread:$0]  %s16, 16, %s549, [#allocation25]
        $region48: #{tpu_custom_call.1} parent=11 // pred_fallthru
          _
      $region12: #{tpu_custom_call.1} parent=5 // pred_fallthru
        _
      %p552 = scmp.lt.s32.totalorder %s40, 3
      // Predicated region
      $region49: #{tpu_custom_call.1} parent=5 // pred_check
        %p553 = pneg %p552
      $region50: #{tpu_custom_call.1} parent=5 // pred_check_branch
        %555 = sbr.rel (%p553) target = $region52
      $region51: #{tpu_custom_call.1} parent=5 // pred_region
        // Predicated region
        $region53: #{tpu_custom_call.1} parent=51 // pred_check
          %p556 = pneg %p207
        $region54: #{tpu_custom_call.1} parent=51 // pred_check_branch
          %558 = sbr.rel (%p556) target = $region56
        $region55: #{tpu_custom_call.1} parent=51 // pred_region
          %s559 = sand.u32 %s40, 1
          %s560 = scalar_lea.sflag [#allocation13], %s559
          %s561 = sand.u32 %s197, 1
          %s562 = smul.addr %s561, 1024
          %s563 = scalar_lea.vmem [#allocation12], %s562
          %s565 = ssub.s32 16384, 16384
          %566 = vsyncadd %s560, %s565
          %s567 = smul.addr %s40, 256
          %s568 = smul.addr %s567, 64
          %s569 = scalar_lea.hbm %s7, %s568
          %s570 = sshll.u32 %s563, 4
          %s571 = int_to_ptr.vmem [resolvable:$true] %s570
          %576 = dma.hbm_to_vmem [thread:$0]  %s569, 16384, %s571, %s560, 256, 256, 16
        $region56: #{tpu_custom_call.1} parent=51 // pred_fallthru
          _
        // Predicated region
        $region57: #{tpu_custom_call.1} parent=51 // pred_check
          %p577 = pneg %p233
        $region58: #{tpu_custom_call.1} parent=51 // pred_check_branch
          %579 = sbr.rel (%p577) target = $region60
        $region59: #{tpu_custom_call.1} parent=51 // pred_region
          %s580 = sand.u32 %s40, 1
          %s581 = scalar_lea.sflag [#allocation13], %s580
          %s582 = sand.u32 %s223, 1
          %s583 = smul.addr %s582, 4
          %s584 = scalar_lea.vmem [#allocation14], %s583
          %s586 = ssub.s32 64, 64
          %587 = vsyncadd %s581, %s586
          %s588 = smul.addr %s40, 4
          %s589 = smul.addr %s588, 16
          %s590 = scalar_lea.hbm %s8, %s589
          %s592 = sshll.u32 %s584, 4
          %s593 = int_to_ptr.vmem [resolvable:$true] %s592
          %595 = dma.hbm_to_vmem [thread:$0]  %s590, 64, %s593, %s581
        $region60: #{tpu_custom_call.1} parent=51 // pred_fallthru
          _
        // Predicated region
        $region61: #{tpu_custom_call.1} parent=51 // pred_check
          %p596 = pneg %p259
        $region62: #{tpu_custom_call.1} parent=51 // pred_check_branch
          %598 = sbr.rel (%p596) target = $region64
        $region63: #{tpu_custom_call.1} parent=51 // pred_region
          %s599 = sand.u32 %s40, 1
          %s600 = scalar_lea.sflag [#allocation16], %s599
          %s601 = sand.u32 %s249, 1
          %s602 = smul.addr %s601, 4
          %s603 = scalar_lea.vmem [#allocation15], %s602
          %s605 = ssub.s32 64, 64
          %606 = vsyncadd %s600, %s605
          %s607 = smul.addr %s40, 4
          %s608 = smul.addr %s607, 16
          %s609 = scalar_lea.hbm %s9, %s608
          %s611 = sshll.u32 %s603, 4
          %s612 = int_to_ptr.vmem [resolvable:$true] %s611
          %614 = dma.hbm_to_vmem [thread:$0]  %s609, 64, %s612, %s600
        $region64: #{tpu_custom_call.1} parent=51 // pred_fallthru
          _
        // Predicated region
        $region65: #{tpu_custom_call.1} parent=51 // pred_check
          %p615 = pneg %p285
        $region66: #{tpu_custom_call.1} parent=51 // pred_check_branch
          %617 = sbr.rel (%p615) target = $region68
        $region67: #{tpu_custom_call.1} parent=51 // pred_region
          %s618 = sand.u32 %s40, 1
          %s619 = scalar_lea.sflag [#allocation16], %s618
          %s620 = sand.u32 %s275, 1
          %s621 = smul.addr %s620, 4
          %s622 = scalar_lea.vmem [#allocation17], %s621
          %s624 = ssub.s32 64, 64
          %625 = vsyncadd %s619, %s624
          %s626 = smul.addr %s40, 4
          %s627 = smul.addr %s626, 16
          %s628 = scalar_lea.hbm %s10, %s627
          %s630 = sshll.u32 %s622, 4
          %s631 = int_to_ptr.vmem [resolvable:$true] %s630
          %633 = dma.hbm_to_vmem [thread:$0]  %s628, 64, %s631, %s619
        $region68: #{tpu_custom_call.1} parent=51 // pred_fallthru
          _
        // Predicated region
        $region69: #{tpu_custom_call.1} parent=51 // pred_check
          %p634 = pneg %p311
        $region70: #{tpu_custom_call.1} parent=51 // pred_check_branch
          %636 = sbr.rel (%p634) target = $region72
        $region71: #{tpu_custom_call.1} parent=51 // pred_region
          %s637 = sand.u32 %s40, 1
          %s638 = scalar_lea.sflag [#allocation19], %s637
          %s639 = sand.u32 %s301, 1
          %s640 = smul.addr %s639, 1024
          %s641 = scalar_lea.vmem [#allocation18], %s640
          %s643 = ssub.s32 16384, 16384
          %644 = vsyncadd %s638, %s643
          %s645 = smul.addr %s40, 256
          %s646 = smul.addr %s645, 64
          %s647 = scalar_lea.hbm %s11, %s646
          %s648 = sshll.u32 %s641, 4
          %s649 = int_to_ptr.vmem [resolvable:$true] %s648
          %654 = dma.hbm_to_vmem [thread:$0]  %s647, 16384, %s649, %s638, 256, 256, 16
        $region72: #{tpu_custom_call.1} parent=51 // pred_fallthru
          _
        // Predicated region
        $region73: #{tpu_custom_call.1} parent=51 // pred_check
          %p655 = pneg %p337
        $region74: #{tpu_custom_call.1} parent=51 // pred_check_branch
          %657 = sbr.rel (%p655) target = $region76
        $region75: #{tpu_custom_call.1} parent=51 // pred_region
          %s658 = sand.u32 %s40, 1
          %s659 = scalar_lea.sflag [#allocation19], %s658
          %s660 = sand.u32 %s327, 1
          %s661 = smul.addr %s660, 4
          %s662 = scalar_lea.vmem [#allocation20], %s661
          %s664 = ssub.s32 64, 64
          %665 = vsyncadd %s659, %s664
          %s666 = smul.addr %s40, 4
          %s667 = smul.addr %s666, 16
          %s668 = scalar_lea.hbm %s12, %s667
          %s670 = sshll.u32 %s662, 4
          %s671 = int_to_ptr.vmem [resolvable:$true] %s670
          %673 = dma.hbm_to_vmem [thread:$0]  %s668, 64, %s671, %s659
        $region76: #{tpu_custom_call.1} parent=51 // pred_fallthru
          _
        // Predicated region
        $region77: #{tpu_custom_call.1} parent=51 // pred_check
          %p674 = pneg %p363
        $region78: #{tpu_custom_call.1} parent=51 // pred_check_branch
          %676 = sbr.rel (%p674) target = $region80
        $region79: #{tpu_custom_call.1} parent=51 // pred_region
          %s677 = sand.u32 %s40, 1
          %s678 = scalar_lea.sflag [#allocation22], %s677
          %s679 = sand.u32 %s353, 1
          %s680 = smul.addr %s679, 4
          %s681 = scalar_lea.vmem [#allocation21], %s680
          %s683 = ssub.s32 64, 64
          %684 = vsyncadd %s678, %s683
          %s685 = smul.addr %s40, 4
          %s686 = smul.addr %s685, 16
          %s687 = scalar_lea.hbm %s13, %s686
          %s689 = sshll.u32 %s681, 4
          %s690 = int_to_ptr.vmem [resolvable:$true] %s689
          %692 = dma.hbm_to_vmem [thread:$0]  %s687, 64, %s690, %s678
        $region80: #{tpu_custom_call.1} parent=51 // pred_fallthru
          _
        // Predicated region
        $region81: #{tpu_custom_call.1} parent=51 // pred_check
          %p693 = pneg %p389
        $region82: #{tpu_custom_call.1} parent=51 // pred_check_branch
          %695 = sbr.rel (%p693) target = $region84
        $region83: #{tpu_custom_call.1} parent=51 // pred_region
          %s696 = sand.u32 %s40, 1
          %s697 = scalar_lea.sflag [#allocation22], %s696
          %s698 = sand.u32 %s379, 1
          %s699 = smul.addr %s698, 4
          %s700 = scalar_lea.vmem [#allocation23], %s699
          %s702 = ssub.s32 64, 64
          %703 = vsyncadd %s697, %s702
          %s704 = smul.addr %s40, 4
          %s705 = smul.addr %s704, 16
          %s706 = scalar_lea.hbm %s14, %s705
          %s708 = sshll.u32 %s700, 4
          %s709 = int_to_ptr.vmem [resolvable:$true] %s708
          %711 = dma.hbm_to_vmem [thread:$0]  %s706, 64, %s709, %s697
        $region84: #{tpu_custom_call.1} parent=51 // pred_fallthru
          _
      $region52: #{tpu_custom_call.1} parent=5 // pred_fallthru
        _
      %p712 = scmp.le.s32.totalorder 1, %s40
      %p713 = scmp.lt.s32.totalorder %s40, 4
      %p714 = pnand %p712, %p713
      %p715 = pneg %p714
      // Predicated region
      $region85: #{tpu_custom_call.1} parent=5 // pred_check
        _
      $region86: #{tpu_custom_call.1} parent=5 // pred_check_branch
        %717 = sbr.rel (%p714) target = $region88
      $region87: #{tpu_custom_call.1} parent=5 // pred_region
        %s718 = ssub.s32 %s40, 1
        // Predicated region
        $region89: #{tpu_custom_call.1} parent=87 // pred_check
          %p719 = pneg %p82
        $region90: #{tpu_custom_call.1} parent=87 // pred_check_branch
          %721 = sbr.rel (%p719) target = $region92
        $region91: #{tpu_custom_call.1} parent=87 // pred_region
          %722 = dma.done [#allocation4], 128
        $region92: #{tpu_custom_call.1} parent=87 // pred_fallthru
          _
        // Predicated region
        $region93: #{tpu_custom_call.1} parent=87 // pred_check
          %p723 = pneg %p103
        $region94: #{tpu_custom_call.1} parent=87 // pred_check_branch
          %725 = sbr.rel (%p723) target = $region96
        $region95: #{tpu_custom_call.1} parent=87 // pred_region
          %726 = dma.done [#allocation7], 16
        $region96: #{tpu_custom_call.1} parent=87 // pred_fallthru
          _
        // Predicated region
        $region97: #{tpu_custom_call.1} parent=87 // pred_check
          %p727 = pneg %p124
        $region98: #{tpu_custom_call.1} parent=87 // pred_check_branch
          %729 = sbr.rel (%p727) target = $region100
        $region99: #{tpu_custom_call.1} parent=87 // pred_region
          %730 = dma.done [#allocation7], 8704
        $region100: #{tpu_custom_call.1} parent=87 // pred_fallthru
          _
        // Predicated region
        $region101: #{tpu_custom_call.1} parent=87 // pred_check
          %p731 = pneg %p145
        $region102: #{tpu_custom_call.1} parent=87 // pred_check_branch
          %733 = sbr.rel (%p731) target = $region104
        $region103: #{tpu_custom_call.1} parent=87 // pred_region
          %734 = dma.done [#allocation10], 64
        $region104: #{tpu_custom_call.1} parent=87 // pred_fallthru
          _
        // Predicated region
        $region105: #{tpu_custom_call.1} parent=87 // pred_check
          %p735 = pneg %p187
        $region106: #{tpu_custom_call.1} parent=87 // pred_check_branch
          %737 = sbr.rel (%p735) target = $region108
        $region107: #{tpu_custom_call.1} parent=87 // pred_region
          %738 = dma.done [#allocation10], 2048
        $region108: #{tpu_custom_call.1} parent=87 // pred_fallthru
          _
        %s739 = sand.u32 %s45, 1
        %s740 = scalar_lea.sflag [#allocation13], %s739
        %s741 = sand.u32 %s200, 1
        %s742 = smul.addr %s741, 1024
        %s743 = scalar_lea.vmem [#allocation12], %s742
        // Predicated region
        $region109: #{tpu_custom_call.1} parent=87 // pred_check
          %p744 = pneg %p213
        $region110: #{tpu_custom_call.1} parent=87 // pred_check_branch
          %746 = sbr.rel (%p744) target = $region112
        $region111: #{tpu_custom_call.1} parent=87 // pred_region
          %747 = dma.done %s740, 16384
        $region112: #{tpu_custom_call.1} parent=87 // pred_fallthru
          _
        %s748 = sand.u32 %s45, 1
        %s749 = scalar_lea.sflag [#allocation13], %s748
        %s750 = sand.u32 %s226, 1
        %s751 = smul.addr %s750, 4
        %s752 = scalar_lea.vmem [#allocation14], %s751
        // Predicated region
        $region113: #{tpu_custom_call.1} parent=87 // pred_check
          %p753 = pneg %p239
        $region114: #{tpu_custom_call.1} parent=87 // pred_check_branch
          %755 = sbr.rel (%p753) target = $region116
        $region115: #{tpu_custom_call.1} parent=87 // pred_region
          %756 = dma.done %s749, 64
        $region116: #{tpu_custom_call.1} parent=87 // pred_fallthru
          _
        %s757 = sand.u32 %s45, 1
        %s758 = scalar_lea.sflag [#allocation16], %s757
        %s759 = sand.u32 %s252, 1
        %s760 = smul.addr %s759, 4
        %s761 = scalar_lea.vmem [#allocation15], %s760
        // Predicated region
        $region117: #{tpu_custom_call.1} parent=87 // pred_check
          %p762 = pneg %p265
        $region118: #{tpu_custom_call.1} parent=87 // pred_check_branch
          %764 = sbr.rel (%p762) target = $region120
        $region119: #{tpu_custom_call.1} parent=87 // pred_region
          %765 = dma.done %s758, 64
        $region120: #{tpu_custom_call.1} parent=87 // pred_fallthru
          _
        %s766 = sand.u32 %s45, 1
        %s767 = scalar_lea.sflag [#allocation16], %s766
        %s768 = sand.u32 %s278, 1
        %s769 = smul.addr %s768, 4
        %s770 = scalar_lea.vmem [#allocation17], %s769
        // Predicated region
        $region121: #{tpu_custom_call.1} parent=87 // pred_check
          %p771 = pneg %p291
        $region122: #{tpu_custom_call.1} parent=87 // pred_check_branch
          %773 = sbr.rel (%p771) target = $region124
        $region123: #{tpu_custom_call.1} parent=87 // pred_region
          %774 = dma.done %s767, 64
        $region124: #{tpu_custom_call.1} parent=87 // pred_fallthru
          _
        %s775 = sand.u32 %s45, 1
        %s776 = scalar_lea.sflag [#allocation19], %s775
        %s777 = sand.u32 %s304, 1
        %s778 = smul.addr %s777, 1024
        %s779 = scalar_lea.vmem [#allocation18], %s778
        // Predicated region
        $region125: #{tpu_custom_call.1} parent=87 // pred_check
          %p780 = pneg %p317
        $region126: #{tpu_custom_call.1} parent=87 // pred_check_branch
          %782 = sbr.rel (%p780) target = $region128
        $region127: #{tpu_custom_call.1} parent=87 // pred_region
          %783 = dma.done %s776, 16384
        $region128: #{tpu_custom_call.1} parent=87 // pred_fallthru
          _
        %s784 = sand.u32 %s45, 1
        %s785 = scalar_lea.sflag [#allocation19], %s784
        %s786 = sand.u32 %s330, 1
        %s787 = smul.addr %s786, 4
        %s788 = scalar_lea.vmem [#allocation20], %s787
        // Predicated region
        $region129: #{tpu_custom_call.1} parent=87 // pred_check
          %p789 = pneg %p343
        $region130: #{tpu_custom_call.1} parent=87 // pred_check_branch
          %791 = sbr.rel (%p789) target = $region132
        $region131: #{tpu_custom_call.1} parent=87 // pred_region
          %792 = dma.done %s785, 64
        $region132: #{tpu_custom_call.1} parent=87 // pred_fallthru
          _
        %s793 = sand.u32 %s45, 1
        %s794 = scalar_lea.sflag [#allocation22], %s793
        %s795 = sand.u32 %s356, 1
        %s796 = smul.addr %s795, 4
        %s797 = scalar_lea.vmem [#allocation21], %s796
        // Predicated region
        $region133: #{tpu_custom_call.1} parent=87 // pred_check
          %p798 = pneg %p369
        $region134: #{tpu_custom_call.1} parent=87 // pred_check_branch
          %800 = sbr.rel (%p798) target = $region136
        $region135: #{tpu_custom_call.1} parent=87 // pred_region
          %801 = dma.done %s794, 64
        $region136: #{tpu_custom_call.1} parent=87 // pred_fallthru
          _
        %s802 = sand.u32 %s45, 1
        %s803 = scalar_lea.sflag [#allocation22], %s802
        %s804 = sand.u32 %s382, 1
        %s805 = smul.addr %s804, 4
        %s806 = scalar_lea.vmem [#allocation23], %s805
        // Predicated region
        $region137: #{tpu_custom_call.1} parent=87 // pred_check
          %p807 = pneg %p395
        $region138: #{tpu_custom_call.1} parent=87 // pred_check_branch
          %809 = sbr.rel (%p807) target = $region140
        $region139: #{tpu_custom_call.1} parent=87 // pred_region
          %810 = dma.done %s803, 64
        $region140: #{tpu_custom_call.1} parent=87 // pred_fallthru
          _
        // Predicated region
        $region141: #{tpu_custom_call.1} parent=87 // pred_check
          %p811 = pneg %p437
        $region142: #{tpu_custom_call.1} parent=87 // pred_check_branch
          %813 = sbr.rel (%p811) target = $region144
        $region143: #{tpu_custom_call.1} parent=87 // pred_region
          %814 = dma.done [#allocation25], 16
        $region144: #{tpu_custom_call.1} parent=87 // pred_fallthru
          _
        %p815 = pneg %p61
        %p816 = pneg %p58
        %p817 = pneg %p82
        %p818 = pneg %p79
        %p819 = pneg %p103
        %p820 = pneg %p100
        %p821 = pneg %p124
        %p822 = pneg %p121
        %p823 = pneg %p145
        %p824 = pneg %p142
        %p825 = pneg %p166
        %p826 = pneg %p163
        %p827 = pneg %p187
        %p828 = pneg %p184
        %s829 = sand.u32 %s45, 1
        %s830 = scalar_lea.sflag [#allocation13], %s829
        %s831 = sand.u32 %s200, 1
        %s832 = smul.addr %s831, 1024
        %s833 = scalar_lea.vmem [#allocation12], %s832
        %p834 = pneg %p213
        %p835 = pneg %p210
        %s836 = sand.u32 %s45, 1
        %s837 = scalar_lea.sflag [#allocation13], %s836
        %s838 = sand.u32 %s226, 1
        %s839 = smul.addr %s838, 4
        %s840 = scalar_lea.vmem [#allocation14], %s839
        %p841 = pneg %p239
        %p842 = pneg %p236
        %s843 = sand.u32 %s45, 1
        %s844 = scalar_lea.sflag [#allocation16], %s843
        %s845 = sand.u32 %s252, 1
        %s846 = smul.addr %s845, 4
        %s847 = scalar_lea.vmem [#allocation15], %s846
        %p848 = pneg %p265
        %p849 = pneg %p262
        %s850 = sand.u32 %s45, 1
        %s851 = scalar_lea.sflag [#allocation16], %s850
        %s852 = sand.u32 %s278, 1
        %s853 = smul.addr %s852, 4
        %s854 = scalar_lea.vmem [#allocation17], %s853
        %p855 = pneg %p291
        %p856 = pneg %p288
        %s857 = sand.u32 %s45, 1
        %s858 = scalar_lea.sflag [#allocation19], %s857
        %s859 = sand.u32 %s304, 1
        %s860 = smul.addr %s859, 1024
        %s861 = scalar_lea.vmem [#allocation18], %s860
        %p862 = pneg %p317
        %p863 = pneg %p314
        %s864 = sand.u32 %s45, 1
        %s865 = scalar_lea.sflag [#allocation19], %s864
        %s866 = sand.u32 %s330, 1
        %s867 = smul.addr %s866, 4
        %s868 = scalar_lea.vmem [#allocation20], %s867
        %p869 = pneg %p343
        %p870 = pneg %p340
        %s871 = sand.u32 %s45, 1
        %s872 = scalar_lea.sflag [#allocation22], %s871
        %s873 = sand.u32 %s356, 1
        %s874 = smul.addr %s873, 4
        %s875 = scalar_lea.vmem [#allocation21], %s874
        %p876 = pneg %p369
        %p877 = pneg %p366
        %s878 = sand.u32 %s45, 1
        %s879 = scalar_lea.sflag [#allocation22], %s878
        %s880 = sand.u32 %s382, 1
        %s881 = smul.addr %s880, 4
        %s882 = scalar_lea.vmem [#allocation23], %s881
        %p883 = pneg %p395
        %p884 = pneg %p392
        %p885 = pneg %p416
        %p886 = pneg %p413
        %p887 = pneg %p437
        %p888 = pneg %p434
        %p889 = pneg %p458
        %p890 = pneg %p455
        %p892 = scmp.eq.s32.totalorder %s45, 0
        // Predicated region
        $region145: #{tpu_custom_call.1} parent=87 // pred_check
          %p893 = pneg %p892
        $region146: #{tpu_custom_call.1} parent=87 // pred_check_branch
          %895 = sbr.rel (%p893) target = $region148
        $region147: #{tpu_custom_call.1} parent=87 // pred_region
          %v896 = vld [vmem:[%s0] sm:$0xff]
          %v897 = vld [vmem:[#allocation6] sm:$0x1]
          %899 = vset.pattern.permute.xlu0 0
          %900 = vperm.xlu0 %899, %v896
          %v901 = vpop.permute.xlu0 %900
          %v904 = vlaneseq
          %v905 = vshrl.u32 %v904, 7
          %v906 = vsub.s32 0, %v905
          %v907 = vrot.slane %v897, %v906
          %v909 = vmul.f32 %v901, %v907
          %v910 = vand.u32 2147483647, %v909
          %vm911 = vcmp.le.f32.partialorder %v910, 0.7853982
          %vm912 = vcmp.lt.s32.totalorder %v909, 0
          %v913 = vand.u32 %v909, 2139095040
          %v914 = vshrl.u32 %v913, 23
          %v915 = vsub.s32 %v914, 127
          %v916 = vand.u32 2147483647, %v909
          %v917 = vand.u32 %v916, 8388607
          %v918 = vor.u32 %v917, 8388608
          %v919 = vsub.s32 0, %v918
          %v920 = vadd.s32 %v915, 1
          %vm921 = vcmp.gt.s32.totalorder %v920, 0
          %v922 = vsel %vm921, %v920, 0
          %v923 = vshrl.u32 %v922, 5
          %v924 = vand.u32 %v922, 31
          %v925 = vsub.s32 32, %v924
          %v926 = vshrl.u32 683565275, %v925
          %v927 = vshll.u32 683565275, %v924
          %v928 = vshrl.u32 2475754826, %v925
          %v929 = vor.u32 %v927, %v928
          %v930 = vshll.u32 2475754826, %v924
          %v931 = vshrl.u32 2131351028, %v925
          %v932 = vor.u32 %v930, %v931
          %v933 = vshll.u32 2131351028, %v924
          %v934 = vshrl.u32 2102212464, %v925
          %v935 = vor.u32 %v933, %v934
          %v936 = vshll.u32 2102212464, %v924
          %v937 = vshrl.u32 920167782, %v925
          %v938 = vor.u32 %v936, %v937
          %v939 = vshll.u32 920167782, %v924
          %v940 = vshrl.u32 1326507024, %v925
          %v941 = vor.u32 %v939, %v940
          %vm942 = vcmp.lt.s32.totalorder %v923, 1
          %vm943 = vcmp.lt.s32.totalorder %v923, 2
          %vm944 = vcmp.lt.s32.totalorder %v923, 3
          %vm945 = vcmp.lt.s32.totalorder %v923, 4
          %v946 = vsel %vm942, %v926, %v929
          %v947 = vsel %vm945, %v935, 2102212464
          %v948 = vsel %vm944, %v932, %v947
          %v949 = vsel %vm943, %v946, %v948
          %v950 = vsel %vm942, %v929, %v932
          %v951 = vsel %vm945, %v938, 920167782
          %v952 = vsel %vm944, %v935, %v951
          %v953 = vsel %vm943, %v950, %v952
          %v954 = vsel %vm942, %v932, %v935
          %v955 = vsel %vm945, %v941, 1326507024
          %v956 = vsel %vm944, %v938, %v955
          %v957 = vsel %vm943, %v954, %v956
          %v958 = vshll.u32 %v918, 8
          %v959 = vmul.u32.u64.compose %v958, %v957
          %v960 = vextract.low.u32 %v959
          %v961 = vextract.high.u32 %v959
          %v962 = vmul.u32.u64.compose %v958, %v953
          %v963 = vextract.low.u32 %v962
          %v964 = vextract.high.u32 %v962
          %v965 = vmul.u32 %v958, %v949
          %v966 = vadd.s32 %v961, %v963
          %vm967 = vc.u32 %v961, %v963
          %v968 = vadd.s32 %v964, 1
          %v969 = vsel %vm967, %v968, %v964
          %v970 = vadd.s32 %v965, %v969
          %v971 = vadd.s32 %v970, 536870912
          %v972 = vshrl.u32 %v971, 30
          %v973 = vshll.u32 %v972, 30
          %v974 = vsub.s32 %v970, %v973
          %vm975 = vcmp.lt.s32.totalorder %v974, 0
          %v976 = vsub.s32 0, %v974
          %v977 = vsel %vm975, %v976, %v974
          %v978 = vclz %v977
          %v979 = vsub.s32 %v978, 2
          %vm980 = vcmp.gt.s32.totalorder 0, %v979
          %v981 = vsel %vm980, 0, %v979
          %v982 = vsub.s32 32, %v981
          %v983 = vshll.u32 %v974, %v981
          %v984 = vshrl.u32 %v966, %v982
          %v985 = vor.u32 %v983, %v984
          %v986 = vsub.s32 4294967266, %v981
          %v987 = vadd.s32 %v986, 127
          %v988 = vshll.u32 %v987, 23
          %v989 = vor.u32 4788187, %v988
          %v990 = vand.u32 2147483647, %v989
          %v992 = vcvt.s32.f32 %v985
          %v993 = vmul.f32 %v992, %v990
          %v994 = vxor.u32 %v993, 2147483648
          %v995 = vsel %vm912, %v994, %v993
          %v996 = vsub.s32 4, %v972
          %v997 = vsel %vm912, %v996, %v972
          %v998 = vsel %vm911, %v909, %v995
          %v999 = vsel %vm911, 0, %v997
          %v1000 = vcosq.f32.pop %v998
          %v1001 = vsinq.f32.pop %v998
          %vm1002 = vweird.f32 %v909
          %v1003 = vadd.s32 %v999, 3
          %v1004 = vand.u32 %v1003, 3
          %vm1005 = vcmp.lt.s32.totalorder %v1004, 2
          %vm1006 = vcmp.eq.s32.totalorder %v1004, 0
          %v1007 = vxor.u32 %v1001, 2147483648
          %v1008 = vsel %vm1006, %v1000, %v1007
          %vm1009 = vcmp.eq.s32.totalorder %v1004, 2
          %v1010 = vxor.u32 %v1000, 2147483648
          %v1011 = vsel %vm1009, %v1010, %v1001
          %v1012 = vsel %vm1005, %v1008, %v1011
          %v1013 = vsel %vm1002, nan, %v1012
          %v1014 = vand.u32 2147483647, %v909
          %vm1015 = vcmp.le.f32.partialorder %v1014, 0.7853982
          %vm1016 = vcmp.lt.s32.totalorder %v909, 0
          %v1017 = vand.u32 %v909, 2139095040
          %v1018 = vshrl.u32 %v1017, 23
          %v1019 = vsub.s32 %v1018, 127
          %v1020 = vand.u32 2147483647, %v909
          %v1021 = vand.u32 %v1020, 8388607
          %v1022 = vor.u32 %v1021, 8388608
          %v1023 = vsub.s32 0, %v1022
          %v1024 = vadd.s32 %v1019, 1
          %vm1025 = vcmp.gt.s32.totalorder %v1024, 0
          %v1026 = vsel %vm1025, %v1024, 0
          %v1027 = vshrl.u32 %v1026, 5
          %v1028 = vand.u32 %v1026, 31
          %v1029 = vsub.s32 32, %v1028
          %v1030 = vshrl.u32 683565275, %v1029
          %v1031 = vshll.u32 683565275, %v1028
          %v1032 = vshrl.u32 2475754826, %v1029
          %v1033 = vor.u32 %v1031, %v1032
          %v1034 = vshll.u32 2475754826, %v1028
          %v1035 = vshrl.u32 2131351028, %v1029
          %v1036 = vor.u32 %v1034, %v1035
          %v1037 = vshll.u32 2131351028, %v1028
          %v1038 = vshrl.u32 2102212464, %v1029
          %v1039 = vor.u32 %v1037, %v1038
          %v1040 = vshll.u32 2102212464, %v1028
          %v1041 = vshrl.u32 920167782, %v1029
          %v1042 = vor.u32 %v1040, %v1041
          %v1043 = vshll.u32 920167782, %v1028
          %v1044 = vshrl.u32 1326507024, %v1029
          %v1045 = vor.u32 %v1043, %v1044
          %vm1046 = vcmp.lt.s32.totalorder %v1027, 1
          %vm1047 = vcmp.lt.s32.totalorder %v1027, 2
          %vm1048 = vcmp.lt.s32.totalorder %v1027, 3
          %vm1049 = vcmp.lt.s32.totalorder %v1027, 4
          %v1050 = vsel %vm1046, %v1030, %v1033
          %v1051 = vsel %vm1049, %v1039, 2102212464
          %v1052 = vsel %vm1048, %v1036, %v1051
          %v1053 = vsel %vm1047, %v1050, %v1052
          %v1054 = vsel %vm1046, %v1033, %v1036
          %v1055 = vsel %vm1049, %v1042, 920167782
          %v1056 = vsel %vm1048, %v1039, %v1055
          %v1057 = vsel %vm1047, %v1054, %v1056
          %v1058 = vsel %vm1046, %v1036, %v1039
          %v1059 = vsel %vm1049, %v1045, 1326507024
          %v1060 = vsel %vm1048, %v1042, %v1059
          %v1061 = vsel %vm1047, %v1058, %v1060
          %v1062 = vshll.u32 %v1022, 8
          %v1063 = vmul.u32.u64.compose %v1062, %v1061
          %v1064 = vextract.low.u32 %v1063
          %v1065 = vextract.high.u32 %v1063
          %v1066 = vmul.u32.u64.compose %v1062, %v1057
          %v1067 = vextract.low.u32 %v1066
          %v1068 = vextract.high.u32 %v1066
          %v1069 = vmul.u32 %v1062, %v1053
          %v1070 = vadd.s32 %v1065, %v1067
          %vm1071 = vc.u32 %v1065, %v1067
          %v1072 = vadd.s32 %v1068, 1
          %v1073 = vsel %vm1071, %v1072, %v1068
          %v1074 = vadd.s32 %v1069, %v1073
          %v1075 = vadd.s32 %v1074, 536870912
          %v1076 = vshrl.u32 %v1075, 30
          %v1077 = vshll.u32 %v1076, 30
          %v1078 = vsub.s32 %v1074, %v1077
          %vm1079 = vcmp.lt.s32.totalorder %v1078, 0
          %v1080 = vsub.s32 0, %v1078
          %v1081 = vsel %vm1079, %v1080, %v1078
          %v1082 = vclz %v1081
          %v1083 = vsub.s32 %v1082, 2
          %vm1084 = vcmp.gt.s32.totalorder 0, %v1083
          %v1085 = vsel %vm1084, 0, %v1083
          %v1086 = vsub.s32 32, %v1085
          %v1087 = vshll.u32 %v1078, %v1085
          %v1088 = vshrl.u32 %v1070, %v1086
          %v1089 = vor.u32 %v1087, %v1088
          %v1090 = vsub.s32 4294967266, %v1085
          %v1091 = vadd.s32 %v1090, 127
          %v1092 = vshll.u32 %v1091, 23
          %v1093 = vor.u32 4788187, %v1092
          %v1094 = vand.u32 2147483647, %v1093
          %v1096 = vcvt.s32.f32 %v1089
          %v1097 = vmul.f32 %v1096, %v1094
          %v1098 = vxor.u32 %v1097, 2147483648
          %v1099 = vsel %vm1016, %v1098, %v1097
          %v1100 = vsub.s32 4, %v1076
          %v1101 = vsel %vm1016, %v1100, %v1076
          %v1102 = vsel %vm1015, %v909, %v1099
          %v1103 = vsel %vm1015, 0, %v1101
          %v1104 = vcosq.f32.pop %v1102
          %v1105 = vsinq.f32.pop %v1102
          %vm1106 = vweird.f32 %v909
          %v1107 = vand.u32 %v1103, 3
          %vm1108 = vcmp.lt.s32.totalorder %v1107, 2
          %vm1109 = vcmp.eq.s32.totalorder %v1107, 0
          %v1110 = vxor.u32 %v1105, 2147483648
          %v1111 = vsel %vm1109, %v1104, %v1110
          %vm1112 = vcmp.eq.s32.totalorder %v1107, 2
          %v1113 = vxor.u32 %v1104, 2147483648
          %v1114 = vsel %vm1112, %v1113, %v1105
          %v1115 = vsel %vm1108, %v1111, %v1114
          %v1116 = vsel %vm1106, nan, %v1115
          %v1117 = vld [vmem:[#allocation3] sm:$0xff]
          %v1118 = vpack.c.bf16 %v1013, %v1013
          %v1119 = vpack.c.bf16 %v1116, %v1116
          %v1120 = vpack.c.bf16 %v1117, %v1117
          %v1121 = vld [vmem:[#allocation8] sm:$0xff]
          %v1122 = vld [vmem:[#allocation8 + $0x8] sm:$0xff]
          %v1123 = vld [vmem:[#allocation8 + $0x10] sm:$0xff]
          %v1124 = vld [vmem:[#allocation8 + $0x18] sm:$0xff]
          %v1125 = vld [vmem:[#allocation8 + $0x20] sm:$0xff]
          %v1126 = vld [vmem:[#allocation8 + $0x28] sm:$0xff]
          %v1127 = vld [vmem:[#allocation8 + $0x30] sm:$0xff]
          %v1128 = vld [vmem:[#allocation8 + $0x38] sm:$0xff]
          %v1129 = vld [vmem:[#allocation8 + $0x40] sm:$0xff]
          %v1130 = vld [vmem:[#allocation8 + $0x48] sm:$0xff]
          %v1131 = vld [vmem:[#allocation8 + $0x50] sm:$0xff]
          %v1132 = vld [vmem:[#allocation8 + $0x58] sm:$0xff]
          %v1133 = vld [vmem:[#allocation8 + $0x60] sm:$0xff]
          %v1134 = vld [vmem:[#allocation8 + $0x68] sm:$0xff]
          %v1135 = vld [vmem:[#allocation8 + $0x70] sm:$0xff]
          %v1136 = vld [vmem:[#allocation8 + $0x78] sm:$0xff]
          %v1137 = vld [vmem:[#allocation8 + $0x80] sm:$0xff]
          %v1138 = vld [vmem:[#allocation8 + $0x88] sm:$0xff]
          %v1139 = vld [vmem:[#allocation8 + $0x90] sm:$0xff]
          %v1140 = vld [vmem:[#allocation8 + $0x98] sm:$0xff]
          %v1141 = vld [vmem:[#allocation8 + $0xa0] sm:$0xff]
          %v1142 = vld [vmem:[#allocation8 + $0xa8] sm:$0xff]
          %v1143 = vld [vmem:[#allocation8 + $0xb0] sm:$0xff]
          %v1144 = vld [vmem:[#allocation8 + $0xb8] sm:$0xff]
          %v1145 = vld [vmem:[#allocation8 + $0xc0] sm:$0xff]
          %v1146 = vld [vmem:[#allocation8 + $0xc8] sm:$0xff]
          %v1147 = vld [vmem:[#allocation8 + $0xd0] sm:$0xff]
          %v1148 = vld [vmem:[#allocation8 + $0xd8] sm:$0xff]
          %v1149 = vld [vmem:[#allocation8 + $0xe0] sm:$0xff]
          %v1150 = vld [vmem:[#allocation8 + $0xe8] sm:$0xff]
          %v1151 = vld [vmem:[#allocation8 + $0xf0] sm:$0xff]
          %v1152 = vld [vmem:[#allocation8 + $0xf8] sm:$0xff]
          %v1153 = vld [vmem:[#allocation8 + $0x100] sm:$0xff]
          %v1154 = vld [vmem:[#allocation8 + $0x108] sm:$0xff]
          %v1155 = vld [vmem:[#allocation8 + $0x110] sm:$0xff]
          %v1156 = vld [vmem:[#allocation8 + $0x118] sm:$0xff]
          %v1157 = vld [vmem:[#allocation8 + $0x120] sm:$0xff]
          %v1158 = vld [vmem:[#allocation8 + $0x128] sm:$0xff]
          %v1159 = vld [vmem:[#allocation8 + $0x130] sm:$0xff]
          %v1160 = vld [vmem:[#allocation8 + $0x138] sm:$0xff]
          %v1161 = vld [vmem:[#allocation8 + $0x140] sm:$0xff]
          %v1162 = vld [vmem:[#allocation8 + $0x148] sm:$0xff]
          %v1163 = vld [vmem:[#allocation8 + $0x150] sm:$0xff]
          %v1164 = vld [vmem:[#allocation8 + $0x158] sm:$0xff]
          %v1165 = vld [vmem:[#allocation8 + $0x160] sm:$0xff]
          %v1166 = vld [vmem:[#allocation8 + $0x168] sm:$0xff]
          %v1167 = vld [vmem:[#allocation8 + $0x170] sm:$0xff]
          %v1168 = vld [vmem:[#allocation8 + $0x178] sm:$0xff]
          %v1169 = vld [vmem:[#allocation8 + $0x180] sm:$0xff]
          %v1170 = vld [vmem:[#allocation8 + $0x188] sm:$0xff]
          %v1171 = vld [vmem:[#allocation8 + $0x190] sm:$0xff]
          %v1172 = vld [vmem:[#allocation8 + $0x198] sm:$0xff]
          %v1173 = vld [vmem:[#allocation8 + $0x1a0] sm:$0xff]
          %v1174 = vld [vmem:[#allocation8 + $0x1a8] sm:$0xff]
          %v1175 = vld [vmem:[#allocation8 + $0x1b0] sm:$0xff]
          %v1176 = vld [vmem:[#allocation8 + $0x1b8] sm:$0xff]
          %v1177 = vld [vmem:[#allocation8 + $0x1c0] sm:$0xff]
          %v1178 = vld [vmem:[#allocation8 + $0x1c8] sm:$0xff]
          %v1179 = vld [vmem:[#allocation8 + $0x1d0] sm:$0xff]
          %v1180 = vld [vmem:[#allocation8 + $0x1d8] sm:$0xff]
          %v1181 = vld [vmem:[#allocation8 + $0x1e0] sm:$0xff]
          %v1182 = vld [vmem:[#allocation8 + $0x1e8] sm:$0xff]
          %v1183 = vld [vmem:[#allocation8 + $0x1f0] sm:$0xff]
          %v1184 = vld [vmem:[#allocation8 + $0x1f8] sm:$0xff]
          %v1185 = vld [vmem:[#allocation8 + $0x200] sm:$0xff]
          %v1186 = vld [vmem:[#allocation8 + $0x208] sm:$0xff]
          %v1187 = vld [vmem:[#allocation8 + $0x210] sm:$0xff]
          %v1188 = vld [vmem:[#allocation8 + $0x218] sm:$0xff]
          %v1189 = vld [vmem:[#allocation9] sm:$0xf]
          %v1191 = vlaneseq
          %v1192 = vshrl.u32 %v1191, 7
          %v1193 = vsub.s32 0, %v1192
          %v1194 = vrot.slane %v1189, %v1193
          %v1195 = vlaneseq
          %v1196 = vshrl.u32 %v1195, 7
          %v1197 = vsub.s32 1, %v1196
          %v1198 = vrot.slane %v1189, %v1197
          %v1199 = vlaneseq
          %v1200 = vshrl.u32 %v1199, 7
          %v1201 = vsub.s32 2, %v1200
          %v1202 = vrot.slane %v1189, %v1201
          %v1203 = vlaneseq
          %v1204 = vshrl.u32 %v1203, 7
          %v1205 = vsub.s32 3, %v1204
          %v1206 = vrot.slane %v1189, %v1205
          %v1279 = vunpack.c.l.b16 %v1121
          %v1280 = vunpack.c.h.b16 %v1121
          %v1281 = vunpack.c.l.b16 %v1122
          %v1282 = vunpack.c.h.b16 %v1122
          %v1283 = vunpack.c.l.b16 %v1123
          %v1284 = vunpack.c.h.b16 %v1123
          %v1285 = vunpack.c.l.b16 %v1124
          %v1286 = vunpack.c.h.b16 %v1124
          %v1287 = vunpack.c.l.b16 %v1125
          %v1288 = vunpack.c.h.b16 %v1125
          %v1289 = vunpack.c.l.b16 %v1126
          %v1290 = vunpack.c.h.b16 %v1126
          %v1291 = vunpack.c.l.b16 %v1127
          %v1292 = vunpack.c.h.b16 %v1127
          %v1293 = vunpack.c.l.b16 %v1128
          %v1294 = vunpack.c.h.b16 %v1128
          %v1295 = vunpack.c.l.b16 %v1129
          %v1296 = vunpack.c.h.b16 %v1129
          %v1297 = vunpack.c.l.b16 %v1130
          %v1298 = vunpack.c.h.b16 %v1130
          %v1299 = vunpack.c.l.b16 %v1131
          %v1300 = vunpack.c.h.b16 %v1131
          %v1301 = vunpack.c.l.b16 %v1132
          %v1302 = vunpack.c.h.b16 %v1132
          %v1303 = vunpack.c.l.b16 %v1133
          %v1304 = vunpack.c.h.b16 %v1133
          %v1305 = vunpack.c.l.b16 %v1134
          %v1306 = vunpack.c.h.b16 %v1134
          %v1307 = vunpack.c.l.b16 %v1135
          %v1308 = vunpack.c.h.b16 %v1135
          %v1309 = vunpack.c.l.b16 %v1136
          %v1310 = vunpack.c.h.b16 %v1136
          %v1311 = vunpack.c.l.b16 %v1137
          %v1312 = vunpack.c.h.b16 %v1137
          %v1313 = vunpack.c.l.b16 %v1138
          %v1314 = vunpack.c.h.b16 %v1138
          %v1315 = vunpack.c.l.b16 %v1139
          %v1316 = vunpack.c.h.b16 %v1139
          %v1317 = vunpack.c.l.b16 %v1140
          %v1318 = vunpack.c.h.b16 %v1140
          %v1319 = vunpack.c.l.b16 %v1141
          %v1320 = vunpack.c.h.b16 %v1141
          %v1321 = vunpack.c.l.b16 %v1142
          %v1322 = vunpack.c.h.b16 %v1142
          %v1323 = vunpack.c.l.b16 %v1143
          %v1324 = vunpack.c.h.b16 %v1143
          %v1325 = vunpack.c.l.b16 %v1144
          %v1326 = vunpack.c.h.b16 %v1144
          %v1327 = vunpack.c.l.b16 %v1145
          %v1328 = vunpack.c.h.b16 %v1145
          %v1329 = vunpack.c.l.b16 %v1146
          %v1330 = vunpack.c.h.b16 %v1146
          %v1331 = vunpack.c.l.b16 %v1147
          %v1332 = vunpack.c.h.b16 %v1147
          %v1333 = vunpack.c.l.b16 %v1148
          %v1334 = vunpack.c.h.b16 %v1148
          %v1335 = vunpack.c.l.b16 %v1149
          %v1336 = vunpack.c.h.b16 %v1149
          %v1337 = vunpack.c.l.b16 %v1150
          %v1338 = vunpack.c.h.b16 %v1150
          %v1339 = vunpack.c.l.b16 %v1151
          %v1340 = vunpack.c.h.b16 %v1151
          %v1341 = vunpack.c.l.b16 %v1152
          %v1342 = vunpack.c.h.b16 %v1152
          %v1343 = vunpack.c.l.b16 %v1153
          %v1344 = vunpack.c.h.b16 %v1153
          %v1345 = vunpack.c.l.b16 %v1154
          %v1346 = vunpack.c.h.b16 %v1154
          %v1347 = vunpack.c.l.b16 %v1155
          %v1348 = vunpack.c.h.b16 %v1155
          %v1349 = vunpack.c.l.b16 %v1156
          %v1350 = vunpack.c.h.b16 %v1156
          %v1351 = vunpack.c.l.b16 %v1157
          %v1352 = vunpack.c.h.b16 %v1157
          %v1353 = vunpack.c.l.b16 %v1158
          %v1354 = vunpack.c.h.b16 %v1158
          %v1355 = vunpack.c.l.b16 %v1159
          %v1356 = vunpack.c.h.b16 %v1159
          %v1357 = vunpack.c.l.b16 %v1160
          %v1358 = vunpack.c.h.b16 %v1160
          %v1359 = vunpack.c.l.b16 %v1161
          %v1360 = vunpack.c.h.b16 %v1161
          %v1361 = vunpack.c.l.b16 %v1162
          %v1362 = vunpack.c.h.b16 %v1162
          %v1363 = vunpack.c.l.b16 %v1163
          %v1364 = vunpack.c.h.b16 %v1163
          %v1365 = vunpack.c.l.b16 %v1164
          %v1366 = vunpack.c.h.b16 %v1164
          %v1367 = vunpack.c.l.b16 %v1165
          %v1368 = vunpack.c.h.b16 %v1165
          %v1369 = vunpack.c.l.b16 %v1166
          %v1370 = vunpack.c.h.b16 %v1166
          %v1371 = vunpack.c.l.b16 %v1167
          %v1372 = vunpack.c.h.b16 %v1167
          %v1373 = vunpack.c.l.b16 %v1168
          %v1374 = vunpack.c.h.b16 %v1168
          %v1375 = vunpack.c.l.b16 %v1169
          %v1376 = vunpack.c.h.b16 %v1169
          %v1377 = vunpack.c.l.b16 %v1170
          %v1378 = vunpack.c.h.b16 %v1170
          %v1379 = vunpack.c.l.b16 %v1171
          %v1380 = vunpack.c.h.b16 %v1171
          %v1381 = vunpack.c.l.b16 %v1172
          %v1382 = vunpack.c.h.b16 %v1172
          %v1383 = vunpack.c.l.b16 %v1173
          %v1384 = vunpack.c.h.b16 %v1173
          %v1385 = vunpack.c.l.b16 %v1174
          %v1386 = vunpack.c.h.b16 %v1174
          %v1387 = vunpack.c.l.b16 %v1175
          %v1388 = vunpack.c.h.b16 %v1175
          %v1389 = vunpack.c.l.b16 %v1176
          %v1390 = vunpack.c.h.b16 %v1176
          %v1391 = vunpack.c.l.b16 %v1177
          %v1392 = vunpack.c.h.b16 %v1177
          %v1393 = vunpack.c.l.b16 %v1178
          %v1394 = vunpack.c.h.b16 %v1178
          %v1395 = vunpack.c.l.b16 %v1179
          %v1396 = vunpack.c.h.b16 %v1179
          %v1397 = vunpack.c.l.b16 %v1180
          %v1398 = vunpack.c.h.b16 %v1180
          %v1399 = vunpack.c.l.b16 %v1181
          %v1400 = vunpack.c.h.b16 %v1181
          %v1401 = vunpack.c.l.b16 %v1182
          %v1402 = vunpack.c.h.b16 %v1182
          %v1403 = vunpack.c.l.b16 %v1183
          %v1404 = vunpack.c.h.b16 %v1183
          %v1405 = vunpack.c.l.b16 %v1184
          %v1406 = vunpack.c.h.b16 %v1184
          %v1407 = vunpack.c.l.b16 %v1185
          %v1408 = vunpack.c.h.b16 %v1185
          %v1409 = vunpack.c.l.b16 %v1186
          %v1410 = vunpack.c.h.b16 %v1186
          %v1411 = vunpack.c.l.b16 %v1187
          %v1412 = vunpack.c.h.b16 %v1187
          %v1413 = vunpack.c.l.b16 %v1188
          %v1414 = vunpack.c.h.b16 %v1188
          %v1415 = vpack.c.b16 %v1283, %v1279
          %v1416 = vpack.c.b16 %v1284, %v1280
          %v1417 = vpack.c.b16 %v1285, %v1281
          %v1418 = vpack.c.b16 %v1286, %v1282
          %v1419 = vpack.c.b16 %v1291, %v1287
          %v1420 = vpack.c.b16 %v1292, %v1288
          %v1421 = vpack.c.b16 %v1293, %v1289
          %v1422 = vpack.c.b16 %v1294, %v1290
          %v1423 = vpack.c.b16 %v1299, %v1295
          %v1424 = vpack.c.b16 %v1300, %v1296
          %v1425 = vpack.c.b16 %v1301, %v1297
          %v1426 = vpack.c.b16 %v1302, %v1298
          %v1427 = vpack.c.b16 %v1307, %v1303
          %v1428 = vpack.c.b16 %v1308, %v1304
          %v1429 = vpack.c.b16 %v1309, %v1305
          %v1430 = vpack.c.b16 %v1310, %v1306
          %v1431 = vpack.c.b16 %v1315, %v1311
          %v1432 = vpack.c.b16 %v1316, %v1312
          %v1433 = vpack.c.b16 %v1317, %v1313
          %v1434 = vpack.c.b16 %v1318, %v1314
          %v1435 = vpack.c.b16 %v1323, %v1319
          %v1436 = vpack.c.b16 %v1324, %v1320
          %v1437 = vpack.c.b16 %v1325, %v1321
          %v1438 = vpack.c.b16 %v1326, %v1322
          %v1439 = vpack.c.b16 %v1331, %v1327
          %v1440 = vpack.c.b16 %v1332, %v1328
          %v1441 = vpack.c.b16 %v1333, %v1329
          %v1442 = vpack.c.b16 %v1334, %v1330
          %v1443 = vpack.c.b16 %v1339, %v1335
          %v1444 = vpack.c.b16 %v1340, %v1336
          %v1445 = vpack.c.b16 %v1341, %v1337
          %v1446 = vpack.c.b16 %v1342, %v1338
          %v1447 = vpack.c.b16 %v1347, %v1343
          %v1448 = vpack.c.b16 %v1348, %v1344
          %v1449 = vpack.c.b16 %v1349, %v1345
          %v1450 = vpack.c.b16 %v1350, %v1346
          %v1451 = vpack.c.b16 %v1355, %v1351
          %v1452 = vpack.c.b16 %v1356, %v1352
          %v1453 = vpack.c.b16 %v1357, %v1353
          %v1454 = vpack.c.b16 %v1358, %v1354
          %v1455 = vpack.c.b16 %v1363, %v1359
          %v1456 = vpack.c.b16 %v1364, %v1360
          %v1457 = vpack.c.b16 %v1365, %v1361
          %v1458 = vpack.c.b16 %v1366, %v1362
          %v1459 = vpack.c.b16 %v1371, %v1367
          %v1460 = vpack.c.b16 %v1372, %v1368
          %v1461 = vpack.c.b16 %v1373, %v1369
          %v1462 = vpack.c.b16 %v1374, %v1370
          %v1463 = vpack.c.b16 %v1379, %v1375
          %v1464 = vpack.c.b16 %v1380, %v1376
          %v1465 = vpack.c.b16 %v1381, %v1377
          %v1466 = vpack.c.b16 %v1382, %v1378
          %v1467 = vpack.c.b16 %v1387, %v1383
          %v1468 = vpack.c.b16 %v1388, %v1384
          %v1469 = vpack.c.b16 %v1389, %v1385
          %v1470 = vpack.c.b16 %v1390, %v1386
          %v1471 = vpack.c.b16 %v1395, %v1391
          %v1472 = vpack.c.b16 %v1396, %v1392
          %v1473 = vpack.c.b16 %v1397, %v1393
          %v1474 = vpack.c.b16 %v1398, %v1394
          %v1475 = vpack.c.b16 %v1403, %v1399
          %v1476 = vpack.c.b16 %v1404, %v1400
          %v1477 = vpack.c.b16 %v1405, %v1401
          %v1478 = vpack.c.b16 %v1406, %v1402
          %v1479 = vpack.c.b16 %v1411, %v1407
          %v1480 = vpack.c.b16 %v1412, %v1408
          %v1481 = vpack.c.b16 %v1413, %v1409
          %v1482 = vpack.c.b16 %v1414, %v1410
          %vm1551 = vcmask 130048
          %v1553 = vsel %vm1551, %v1120, 0
          %1555 = vmatprep.subr.bf16.mxu0 %v1416
          %1556 = vmatpush1.bf16.msra.mxu0 %v1415
          %1557 = vmatprep.subr.bf16.mxu0 %v1420
          %1558 = vmatpush1.bf16.msra.mxu0 %v1419
          %1559 = vmatprep.subr.bf16.mxu0 %v1424
          %1560 = vmatpush1.bf16.msra.mxu0 %v1423
          %1561 = vmatprep.subr.bf16.mxu0 %v1428
          %1562 = vmatpush1.bf16.msra.mxu0 %v1427
          %1563 = vmatprep.subr.bf16.mxu0 %v1432
          %1564 = vmatpush1.bf16.msra.mxu0 %v1431
          %1565 = vmatprep.subr.bf16.mxu0 %v1436
          %1566 = vmatpush1.bf16.msra.mxu0 %v1435
          %1567 = vmatprep.subr.bf16.mxu0 %v1440
          %1568 = vmatpush1.bf16.msra.mxu0 %v1439
          %1569 = vmatprep.subr.bf16.mxu0 %v1444
          %1570 = vmatpush1.bf16.msra.mxu0 %v1443
          %1571 = vmatprep.subr.bf16.mxu0 %v1448
          %1572 = vmatpush1.bf16.msra.mxu0 %v1447
          %1573 = vmatprep.subr.bf16.mxu0 %v1452
          %1574 = vmatpush1.bf16.msra.mxu0 %v1451
          %1575 = vmatprep.subr.bf16.mxu0 %v1456
          %1576 = vmatpush1.bf16.msra.mxu0 %v1455
          %1577 = vmatprep.subr.bf16.mxu0 %v1460
          %1578 = vmatpush1.bf16.msra.mxu0 %v1459
          %1579 = vmatprep.subr.bf16.mxu0 %v1464
          %1580 = vmatpush1.bf16.msra.mxu0 %v1463
          %1581 = vmatprep.subr.bf16.mxu0 %v1468
          %1582 = vmatpush1.bf16.msra.mxu0 %v1467
          %1583 = vmatprep.subr.bf16.mxu0 %v1472
          %1584 = vmatpush1.bf16.msra.mxu0 %v1471
          %1585 = vmatprep.subr.bf16.mxu0 %v1476
          %1586 = vmatpush1.bf16.msra.mxu0 %v1475
          %1587 = vmatprep.mubr.bf16.mxu0 %v1119
          %1588 = vmatmul.mubr.bf16.gmra.mrb[0].mxu0 %v1118
          %v1589 = vpop.f32.mrb[0].mxu0
          %v1590 = vadd.f32 %v1194, %v1589
          %v1591 = vpop.f32.mrb[0].mxu0
          %v1592 = vadd.f32 %v1198, %v1591
          %v1593 = vpop.f32.mrb[0].mxu0
          %v1594 = vpop.f32.mrb[0].mxu0
          %1595 = vdwg.mxu0
          %1596 = vmatprep.subr.bf16.mxu0 %v1480
          %1597 = vmatpush1.bf16.msra.mxu0 %v1479
          %1598 = vmatprep.subr.bf16.mxu0 0
          %1599 = vmatpush1.bf16.msra.mxu0 0
          %1600 = vmatprep.subr.bf16.mxu0 0
          %1601 = vmatpush1.bf16.msra.mxu0 0
          %1602 = vmatprep.subr.bf16.mxu0 0
          %1603 = vmatpush1.bf16.msra.mxu0 0
          %1604 = vmatprep.subr.bf16.mxu0 0
          %1605 = vmatpush1.bf16.msra.mxu0 0
          %1606 = vmatprep.subr.bf16.mxu0 0
          %1607 = vmatpush1.bf16.msra.mxu0 0
          %1608 = vmatprep.subr.bf16.mxu0 0
          %1609 = vmatpush1.bf16.msra.mxu0 0
          %1610 = vmatprep.subr.bf16.mxu0 0
          %1611 = vmatpush1.bf16.msra.mxu0 0
          %1612 = vmatprep.subr.bf16.mxu0 0
          %1613 = vmatpush1.bf16.msra.mxu0 0
          %1614 = vmatprep.subr.bf16.mxu0 0
          %1615 = vmatpush1.bf16.msra.mxu0 0
          %1616 = vmatprep.subr.bf16.mxu0 0
          %1617 = vmatpush1.bf16.msra.mxu0 0
          %1618 = vmatprep.subr.bf16.mxu0 0
          %1619 = vmatpush1.bf16.msra.mxu0 0
          %1620 = vmatprep.subr.bf16.mxu0 0
          %1621 = vmatpush1.bf16.msra.mxu0 0
          %1622 = vmatprep.subr.bf16.mxu0 0
          %1623 = vmatpush1.bf16.msra.mxu0 0
          %1624 = vmatprep.subr.bf16.mxu0 0
          %1625 = vmatpush1.bf16.msra.mxu0 0
          %1626 = vmatprep.subr.bf16.mxu0 0
          %1627 = vmatpush1.bf16.msra.mxu0 0
          %1628 = vmatprep.mubr.bf16.mxu0 0
          %1629 = vmatmul.mubr.bf16.gmra.mrb[0].mxu0 %v1553
          %v1630 = vpop.f32.mrb[0].mxu0
          %v1631 = vadd.f32 %v1590, %v1630
          %v1632 = vpop.f32.mrb[0].mxu0
          %v1633 = vadd.f32 %v1592, %v1632
          %v1634 = vpop.f32.mrb[0].mxu0
          %v1635 = vpop.f32.mrb[0].mxu0
          %1636 = vdwg.mxu0
          %1637 = vmatprep.subr.bf16.mxu0 %v1418
          %1638 = vmatpush1.bf16.msra.mxu0 %v1417
          %1639 = vmatprep.subr.bf16.mxu0 %v1422
          %1640 = vmatpush1.bf16.msra.mxu0 %v1421
          %1641 = vmatprep.subr.bf16.mxu0 %v1426
          %1642 = vmatpush1.bf16.msra.mxu0 %v1425
          %1643 = vmatprep.subr.bf16.mxu0 %v1430
          %1644 = vmatpush1.bf16.msra.mxu0 %v1429
          %1645 = vmatprep.subr.bf16.mxu0 %v1434
          %1646 = vmatpush1.bf16.msra.mxu0 %v1433
          %1647 = vmatprep.subr.bf16.mxu0 %v1438
          %1648 = vmatpush1.bf16.msra.mxu0 %v1437
          %1649 = vmatprep.subr.bf16.mxu0 %v1442
          %1650 = vmatpush1.bf16.msra.mxu0 %v1441
          %1651 = vmatprep.subr.bf16.mxu0 %v1446
          %1652 = vmatpush1.bf16.msra.mxu0 %v1445
          %1653 = vmatprep.subr.bf16.mxu0 %v1450
          %1654 = vmatpush1.bf16.msra.mxu0 %v1449
          %1655 = vmatprep.subr.bf16.mxu0 %v1454
          %1656 = vmatpush1.bf16.msra.mxu0 %v1453
          %1657 = vmatprep.subr.bf16.mxu0 %v1458
          %1658 = vmatpush1.bf16.msra.mxu0 %v1457
          %1659 = vmatprep.subr.bf16.mxu0 %v1462
          %1660 = vmatpush1.bf16.msra.mxu0 %v1461
          %1661 = vmatprep.subr.bf16.mxu0 %v1466
          %1662 = vmatpush1.bf16.msra.mxu0 %v1465
          %1663 = vmatprep.subr.bf16.mxu0 %v1470
          %1664 = vmatpush1.bf16.msra.mxu0 %v1469
          %1665 = vmatprep.subr.bf16.mxu0 %v1474
          %1666 = vmatpush1.bf16.msra.mxu0 %v1473
          %1667 = vmatprep.subr.bf16.mxu0 %v1478
          %1668 = vmatpush1.bf16.msra.mxu0 %v1477
          %1669 = vmatprep.mubr.bf16.mxu0 %v1119
          %1670 = vmatmul.mubr.bf16.gmra.mrb[0].mxu0 %v1118
          %v1671 = vpop.f32.mrb[0].mxu0
          %v1672 = vadd.f32 %v1202, %v1671
          %v1673 = vpop.f32.mrb[0].mxu0
          %v1674 = vadd.f32 %v1206, %v1673
          %v1675 = vpop.f32.mrb[0].mxu0
          %v1676 = vpop.f32.mrb[0].mxu0
          %1677 = vdwg.mxu0
          %1678 = vmatprep.subr.bf16.mxu0 %v1482
          %1679 = vmatpush1.bf16.msra.mxu0 %v1481
          %1680 = vmatprep.subr.bf16.mxu0 0
          %1681 = vmatpush1.bf16.msra.mxu0 0
          %1682 = vmatprep.subr.bf16.mxu0 0
          %1683 = vmatpush1.bf16.msra.mxu0 0
          %1684 = vmatprep.subr.bf16.mxu0 0
          %1685 = vmatpush1.bf16.msra.mxu0 0
          %1686 = vmatprep.subr.bf16.mxu0 0
          %1687 = vmatpush1.bf16.msra.mxu0 0
          %1688 = vmatprep.subr.bf16.mxu0 0
          %1689 = vmatpush1.bf16.msra.mxu0 0
          %1690 = vmatprep.subr.bf16.mxu0 0
          %1691 = vmatpush1.bf16.msra.mxu0 0
          %1692 = vmatprep.subr.bf16.mxu0 0
          %1693 = vmatpush1.bf16.msra.mxu0 0
          %1694 = vmatprep.subr.bf16.mxu0 0
          %1695 = vmatpush1.bf16.msra.mxu0 0
          %1696 = vmatprep.subr.bf16.mxu0 0
          %1697 = vmatpush1.bf16.msra.mxu0 0
          %1698 = vmatprep.subr.bf16.mxu0 0
          %1699 = vmatpush1.bf16.msra.mxu0 0
          %1700 = vmatprep.subr.bf16.mxu0 0
          %1701 = vmatpush1.bf16.msra.mxu0 0
          %1702 = vmatprep.subr.bf16.mxu0 0
          %1703 = vmatpush1.bf16.msra.mxu0 0
          %1704 = vmatprep.subr.bf16.mxu0 0
          %1705 = vmatpush1.bf16.msra.mxu0 0
          %1706 = vmatprep.subr.bf16.mxu0 0
          %1707 = vmatpush1.bf16.msra.mxu0 0
          %1708 = vmatprep.subr.bf16.mxu0 0
          %1709 = vmatpush1.bf16.msra.mxu0 0
          %1710 = vmatprep.mubr.bf16.mxu0 0
          %1711 = vmatmul.mubr.bf16.gmra.mrb[0].mxu0 %v1553
          %v1712 = vpop.f32.mrb[0].mxu0
          %v1713 = vadd.f32 %v1672, %v1712
          %v1714 = vpop.f32.mrb[0].mxu0
          %v1715 = vadd.f32 %v1674, %v1714
          %v1716 = vpop.f32.mrb[0].mxu0
          %v1717 = vpop.f32.mrb[0].mxu0
          %1718 = vdwg.mxu0
          %v1719 = vxor.u32 %v1631, 2147483648
          %v1720 = vxor.u32 %v1633, 2147483648
          %v1721 = vxor.u32 %v1713, 2147483648
          %v1722 = vxor.u32 %v1715, 2147483648
          %v1723 = vmul.f32 %v1719, 1.442695
          %v1724 = vpow.pop %v1723
          %v1725 = vmul.f32 %v1720, 1.442695
          %v1726 = vpow.pop %v1725
          %v1727 = vmul.f32 %v1721, 1.442695
          %v1728 = vpow.pop %v1727
          %v1729 = vmul.f32 %v1722, 1.442695
          %v1730 = vpow.pop %v1729
          %v1731 = vadd.f32 %v1724, 1.0
          %v1732 = vadd.f32 %v1726, 1.0
          %v1733 = vadd.f32 %v1728, 1.0
          %v1734 = vadd.f32 %v1730, 1.0
          %v1735 = vrcp.pop %v1731
          %v1736 = vmul.f32 1.0, %v1735
          %v1737 = vrcp.pop %v1732
          %v1738 = vmul.f32 1.0, %v1737
          %v1739 = vrcp.pop %v1733
          %v1740 = vmul.f32 1.0, %v1739
          %v1741 = vrcp.pop %v1734
          %v1742 = vmul.f32 1.0, %v1741
          %v1743 = vmul.f32 %v1631, %v1736
          %v1744 = vmul.f32 %v1633, %v1738
          %v1745 = vmul.f32 %v1713, %v1740
          %v1746 = vmul.f32 %v1715, %v1742
          %1747 = vst [vmem:[#allocation2] sm:$0xff] %v1743
          %1748 = vst [vmem:[#allocation2 + $0x8] sm:$0xff] %v1744
          %1749 = vst [vmem:[#allocation2 + $0x10] sm:$0xff] %v1745
          %1750 = vst [vmem:[#allocation2 + $0x18] sm:$0xff] %v1746
        $region148: #{tpu_custom_call.1} parent=87 // pred_fallthru
          _
        %v1751 = vld [vmem:[%s5] sm:$0xff]
        %v1752 = vld [vmem:[%s5 + $0x8] sm:$0xff]
        %v1753 = vld [vmem:[%s5 + $0x10] sm:$0xff]
        %v1754 = vld [vmem:[%s5 + $0x18] sm:$0xff]
        %v1755 = vld [vmem:[%s5 + $0x20] sm:$0xff]
        %v1756 = vld [vmem:[%s5 + $0x28] sm:$0xff]
        %v1757 = vld [vmem:[%s5 + $0x30] sm:$0xff]
        %v1758 = vld [vmem:[%s5 + $0x38] sm:$0xff]
        %v1759 = vld [vmem:[%s5 + $0x40] sm:$0xff]
        %v1760 = vld [vmem:[%s5 + $0x48] sm:$0xff]
        %v1761 = vld [vmem:[%s5 + $0x50] sm:$0xff]
        %v1762 = vld [vmem:[%s5 + $0x58] sm:$0xff]
        %v1763 = vld [vmem:[%s5 + $0x60] sm:$0xff]
        %v1764 = vld [vmem:[%s5 + $0x68] sm:$0xff]
        %v1765 = vld [vmem:[%s5 + $0x70] sm:$0xff]
        %v1766 = vld [vmem:[%s5 + $0x78] sm:$0xff]
        %v1767 = vld [vmem:[%s5 + $0x80] sm:$0xff]
        %v1768 = vld [vmem:[%s5 + $0x88] sm:$0xff]
        %v1769 = vld [vmem:[%s5 + $0x90] sm:$0xff]
        %v1770 = vld [vmem:[%s5 + $0x98] sm:$0xff]
        %v1771 = vld [vmem:[%s5 + $0xa0] sm:$0xff]
        %v1772 = vld [vmem:[%s5 + $0xa8] sm:$0xff]
        %v1773 = vld [vmem:[%s5 + $0xb0] sm:$0xff]
        %v1774 = vld [vmem:[%s5 + $0xb8] sm:$0xff]
        %v1775 = vld [vmem:[%s5 + $0xc0] sm:$0xff]
        %v1776 = vld [vmem:[%s5 + $0xc8] sm:$0xff]
        %v1777 = vld [vmem:[%s5 + $0xd0] sm:$0xff]
        %v1778 = vld [vmem:[%s5 + $0xd8] sm:$0xff]
        %v1779 = vld [vmem:[%s5 + $0xe0] sm:$0xff]
        %v1780 = vld [vmem:[%s5 + $0xe8] sm:$0xff]
        %v1781 = vld [vmem:[%s5 + $0xf0] sm:$0xff]
        %v1782 = vld [vmem:[%s5 + $0xf8] sm:$0xff]
        %v1783 = vld [vmem:[%s5 + $0x100] sm:$0xff]
        %v1784 = vld [vmem:[%s5 + $0x108] sm:$0xff]
        %v1785 = vld [vmem:[%s5 + $0x110] sm:$0xff]
        %v1786 = vld [vmem:[%s5 + $0x118] sm:$0xff]
        %v1787 = vld [vmem:[%s5 + $0x120] sm:$0xff]
        %v1788 = vld [vmem:[%s5 + $0x128] sm:$0xff]
        %v1789 = vld [vmem:[%s5 + $0x130] sm:$0xff]
        %v1790 = vld [vmem:[%s5 + $0x138] sm:$0xff]
        %v1791 = vld [vmem:[%s5 + $0x140] sm:$0xff]
        %v1792 = vld [vmem:[%s5 + $0x148] sm:$0xff]
        %v1793 = vld [vmem:[%s5 + $0x150] sm:$0xff]
        %v1794 = vld [vmem:[%s5 + $0x158] sm:$0xff]
        %v1795 = vld [vmem:[%s5 + $0x160] sm:$0xff]
        %v1796 = vld [vmem:[%s5 + $0x168] sm:$0xff]
        %v1797 = vld [vmem:[%s5 + $0x170] sm:$0xff]
        %v1798 = vld [vmem:[%s5 + $0x178] sm:$0xff]
        %v1799 = vld [vmem:[%s5 + $0x180] sm:$0xff]
        %v1800 = vld [vmem:[%s5 + $0x188] sm:$0xff]
        %v1801 = vld [vmem:[%s5 + $0x190] sm:$0xff]
        %v1802 = vld [vmem:[%s5 + $0x198] sm:$0xff]
        %v1803 = vld [vmem:[%s5 + $0x1a0] sm:$0xff]
        %v1804 = vld [vmem:[%s5 + $0x1a8] sm:$0xff]
        %v1805 = vld [vmem:[%s5 + $0x1b0] sm:$0xff]
        %v1806 = vld [vmem:[%s5 + $0x1b8] sm:$0xff]
        %v1807 = vld [vmem:[%s5 + $0x1c0] sm:$0xff]
        %v1808 = vld [vmem:[%s5 + $0x1c8] sm:$0xff]
        %v1809 = vld [vmem:[%s5 + $0x1d0] sm:$0xff]
        %v1810 = vld [vmem:[%s5 + $0x1d8] sm:$0xff]
        %v1811 = vld [vmem:[%s5 + $0x1e0] sm:$0xff]
        %v1812 = vld [vmem:[%s5 + $0x1e8] sm:$0xff]
        %v1813 = vld [vmem:[%s5 + $0x1f0] sm:$0xff]
        %v1814 = vld [vmem:[%s5 + $0x1f8] sm:$0xff]
        %v1815 = vld [vmem:[#allocation11] sm:$0xff]
        %v1816 = vld [vmem:[#allocation11 + $0x8] sm:$0xff]
        %v1817 = vld [vmem:[#allocation11 + $0x10] sm:$0xff]
        %v1818 = vld [vmem:[#allocation11 + $0x18] sm:$0xff]
        %v1819 = vld [vmem:[#allocation11 + $0x20] sm:$0xff]
        %v1820 = vld [vmem:[#allocation11 + $0x28] sm:$0xff]
        %v1821 = vld [vmem:[#allocation11 + $0x30] sm:$0xff]
        %v1822 = vld [vmem:[#allocation11 + $0x38] sm:$0xff]
        %v1823 = vld [vmem:[#allocation11 + $0x40] sm:$0xff]
        %v1824 = vld [vmem:[#allocation11 + $0x48] sm:$0xff]
        %v1825 = vld [vmem:[#allocation11 + $0x50] sm:$0xff]
        %v1826 = vld [vmem:[#allocation11 + $0x58] sm:$0xff]
        %v1827 = vld [vmem:[#allocation11 + $0x60] sm:$0xff]
        %v1828 = vld [vmem:[#allocation11 + $0x68] sm:$0xff]
        %v1829 = vld [vmem:[#allocation11 + $0x70] sm:$0xff]
        %v1830 = vld [vmem:[#allocation11 + $0x78] sm:$0xff]
        %v1831 = vld [vmem:[#allocation2] sm:$0xff]
        %v1832 = vld [vmem:[#allocation2 + $0x8] sm:$0xff]
        %v1833 = vld [vmem:[#allocation2 + $0x10] sm:$0xff]
        %v1834 = vld [vmem:[#allocation2 + $0x18] sm:$0xff]
        %v1835 = vpack.c.bf16 %v1831, %v1831
        %v1836 = vpack.c.bf16 %v1832, %v1832
        %v1837 = vpack.c.bf16 %v1833, %v1833
        %v1838 = vpack.c.bf16 %v1834, %v1834
        %v1839 = vld [vmem:[%s743] sm:$0xff]
        %v1840 = vld [vmem:[%s743 + $0x8] sm:$0xff]
        %v1841 = vld [vmem:[%s743 + $0x10] sm:$0xff]
        %v1842 = vld [vmem:[%s743 + $0x18] sm:$0xff]
        %v1843 = vld [vmem:[%s743 + $0x20] sm:$0xff]
        %v1844 = vld [vmem:[%s743 + $0x28] sm:$0xff]
        %v1845 = vld [vmem:[%s743 + $0x30] sm:$0xff]
        %v1846 = vld [vmem:[%s743 + $0x38] sm:$0xff]
        %v1847 = vld [vmem:[%s743 + $0x40] sm:$0xff]
        %v1848 = vld [vmem:[%s743 + $0x48] sm:$0xff]
        %v1849 = vld [vmem:[%s743 + $0x50] sm:$0xff]
        %v1850 = vld [vmem:[%s743 + $0x58] sm:$0xff]
        %v1851 = vld [vmem:[%s743 + $0x60] sm:$0xff]
        %v1852 = vld [vmem:[%s743 + $0x68] sm:$0xff]
        %v1853 = vld [vmem:[%s743 + $0x70] sm:$0xff]
        %v1854 = vld [vmem:[%s743 + $0x78] sm:$0xff]
        %v1855 = vld [vmem:[%s743 + $0x80] sm:$0xff]
        %v1856 = vld [vmem:[%s743 + $0x88] sm:$0xff]
        %v1857 = vld [vmem:[%s743 + $0x90] sm:$0xff]
        %v1858 = vld [vmem:[%s743 + $0x98] sm:$0xff]
        %v1859 = vld [vmem:[%s743 + $0xa0] sm:$0xff]
        %v1860 = vld [vmem:[%s743 + $0xa8] sm:$0xff]
        %v1861 = vld [vmem:[%s743 + $0xb0] sm:$0xff]
        %v1862 = vld [vmem:[%s743 + $0xb8] sm:$0xff]
        %v1863 = vld [vmem:[%s743 + $0xc0] sm:$0xff]
        %v1864 = vld [vmem:[%s743 + $0xc8] sm:$0xff]
        %v1865 = vld [vmem:[%s743 + $0xd0] sm:$0xff]
        %v1866 = vld [vmem:[%s743 + $0xd8] sm:$0xff]
        %v1867 = vld [vmem:[%s743 + $0xe0] sm:$0xff]
        %v1868 = vld [vmem:[%s743 + $0xe8] sm:$0xff]
        %v1869 = vld [vmem:[%s743 + $0xf0] sm:$0xff]
        %v1870 = vld [vmem:[%s743 + $0xf8] sm:$0xff]
        %v1871 = vld [vmem:[%s743 + $0x100] sm:$0xff]
        %v1872 = vld [vmem:[%s743 + $0x108] sm:$0xff]
        %v1873 = vld [vmem:[%s743 + $0x110] sm:$0xff]
        %v1874 = vld [vmem:[%s743 + $0x118] sm:$0xff]
        %v1875 = vld [vmem:[%s743 + $0x120] sm:$0xff]
        %v1876 = vld [vmem:[%s743 + $0x128] sm:$0xff]
        %v1877 = vld [vmem:[%s743 + $0x130] sm:$0xff]
        %v1878 = vld [vmem:[%s743 + $0x138] sm:$0xff]
        %v1879 = vld [vmem:[%s743 + $0x140] sm:$0xff]
        %v1880 = vld [vmem:[%s743 + $0x148] sm:$0xff]
        %v1881 = vld [vmem:[%s743 + $0x150] sm:$0xff]
        %v1882 = vld [vmem:[%s743 + $0x158] sm:$0xff]
        %v1883 = vld [vmem:[%s743 + $0x160] sm:$0xff]
        %v1884 = vld [vmem:[%s743 + $0x168] sm:$0xff]
        %v1885 = vld [vmem:[%s743 + $0x170] sm:$0xff]
        %v1886 = vld [vmem:[%s743 + $0x178] sm:$0xff]
        %v1887 = vld [vmem:[%s743 + $0x180] sm:$0xff]
        %v1888 = vld [vmem:[%s743 + $0x188] sm:$0xff]
        %v1889 = vld [vmem:[%s743 + $0x190] sm:$0xff]
        %v1890 = vld [vmem:[%s743 + $0x198] sm:$0xff]
        %v1891 = vld [vmem:[%s743 + $0x1a0] sm:$0xff]
        %v1892 = vld [vmem:[%s743 + $0x1a8] sm:$0xff]
        %v1893 = vld [vmem:[%s743 + $0x1b0] sm:$0xff]
        %v1894 = vld [vmem:[%s743 + $0x1b8] sm:$0xff]
        %v1895 = vld [vmem:[%s743 + $0x1c0] sm:$0xff]
        %v1896 = vld [vmem:[%s743 + $0x1c8] sm:$0xff]
        %v1897 = vld [vmem:[%s743 + $0x1d0] sm:$0xff]
        %v1898 = vld [vmem:[%s743 + $0x1d8] sm:$0xff]
        %v1899 = vld [vmem:[%s743 + $0x1e0] sm:$0xff]
        %v1900 = vld [vmem:[%s743 + $0x1e8] sm:$0xff]
        %v1901 = vld [vmem:[%s743 + $0x1f0] sm:$0xff]
        %v1902 = vld [vmem:[%s743 + $0x1f8] sm:$0xff]
        %v1903 = vld [vmem:[%s743 + $0x200] sm:$0xff]
        %v1904 = vld [vmem:[%s743 + $0x208] sm:$0xff]
        %v1905 = vld [vmem:[%s743 + $0x210] sm:$0xff]
        %v1906 = vld [vmem:[%s743 + $0x218] sm:$0xff]
        %v1907 = vld [vmem:[%s743 + $0x220] sm:$0xff]
        %v1908 = vld [vmem:[%s743 + $0x228] sm:$0xff]
        %v1909 = vld [vmem:[%s743 + $0x230] sm:$0xff]
        %v1910 = vld [vmem:[%s743 + $0x238] sm:$0xff]
        %v1911 = vld [vmem:[%s743 + $0x240] sm:$0xff]
        %v1912 = vld [vmem:[%s743 + $0x248] sm:$0xff]
        %v1913 = vld [vmem:[%s743 + $0x250] sm:$0xff]
        %v1914 = vld [vmem:[%s743 + $0x258] sm:$0xff]
        %v1915 = vld [vmem:[%s743 + $0x260] sm:$0xff]
        %v1916 = vld [vmem:[%s743 + $0x268] sm:$0xff]
        %v1917 = vld [vmem:[%s743 + $0x270] sm:$0xff]
        %v1918 = vld [vmem:[%s743 + $0x278] sm:$0xff]
        %v1919 = vld [vmem:[%s743 + $0x280] sm:$0xff]
        %v1920 = vld [vmem:[%s743 + $0x288] sm:$0xff]
        %v1921 = vld [vmem:[%s743 + $0x290] sm:$0xff]
        %v1922 = vld [vmem:[%s743 + $0x298] sm:$0xff]
        %v1923 = vld [vmem:[%s743 + $0x2a0] sm:$0xff]
        %v1924 = vld [vmem:[%s743 + $0x2a8] sm:$0xff]
        %v1925 = vld [vmem:[%s743 + $0x2b0] sm:$0xff]
        %v1926 = vld [vmem:[%s743 + $0x2b8] sm:$0xff]
        %v1927 = vld [vmem:[%s743 + $0x2c0] sm:$0xff]
        %v1928 = vld [vmem:[%s743 + $0x2c8] sm:$0xff]
        %v1929 = vld [vmem:[%s743 + $0x2d0] sm:$0xff]
        %v1930 = vld [vmem:[%s743 + $0x2d8] sm:$0xff]
        %v1931 = vld [vmem:[%s743 + $0x2e0] sm:$0xff]
        %v1932 = vld [vmem:[%s743 + $0x2e8] sm:$0xff]
        %v1933 = vld [vmem:[%s743 + $0x2f0] sm:$0xff]
        %v1934 = vld [vmem:[%s743 + $0x2f8] sm:$0xff]
        %v1935 = vld [vmem:[%s743 + $0x300] sm:$0xff]
        %v1936 = vld [vmem:[%s743 + $0x308] sm:$0xff]
        %v1937 = vld [vmem:[%s743 + $0x310] sm:$0xff]
        %v1938 = vld [vmem:[%s743 + $0x318] sm:$0xff]
        %v1939 = vld [vmem:[%s743 + $0x320] sm:$0xff]
        %v1940 = vld [vmem:[%s743 + $0x328] sm:$0xff]
        %v1941 = vld [vmem:[%s743 + $0x330] sm:$0xff]
        %v1942 = vld [vmem:[%s743 + $0x338] sm:$0xff]
        %v1943 = vld [vmem:[%s743 + $0x340] sm:$0xff]
        %v1944 = vld [vmem:[%s743 + $0x348] sm:$0xff]
        %v1945 = vld [vmem:[%s743 + $0x350] sm:$0xff]
        %v1946 = vld [vmem:[%s743 + $0x358] sm:$0xff]
        %v1947 = vld [vmem:[%s743 + $0x360] sm:$0xff]
        %v1948 = vld [vmem:[%s743 + $0x368] sm:$0xff]
        %v1949 = vld [vmem:[%s743 + $0x370] sm:$0xff]
        %v1950 = vld [vmem:[%s743 + $0x378] sm:$0xff]
        %v1951 = vld [vmem:[%s743 + $0x380] sm:$0xff]
        %v1952 = vld [vmem:[%s743 + $0x388] sm:$0xff]
        %v1953 = vld [vmem:[%s743 + $0x390] sm:$0xff]
        %v1954 = vld [vmem:[%s743 + $0x398] sm:$0xff]
        %v1955 = vld [vmem:[%s743 + $0x3a0] sm:$0xff]
        %v1956 = vld [vmem:[%s743 + $0x3a8] sm:$0xff]
        %v1957 = vld [vmem:[%s743 + $0x3b0] sm:$0xff]
        %v1958 = vld [vmem:[%s743 + $0x3b8] sm:$0xff]
        %v1959 = vld [vmem:[%s743 + $0x3c0] sm:$0xff]
        %v1960 = vld [vmem:[%s743 + $0x3c8] sm:$0xff]
        %v1961 = vld [vmem:[%s743 + $0x3d0] sm:$0xff]
        %v1962 = vld [vmem:[%s743 + $0x3d8] sm:$0xff]
        %v1963 = vld [vmem:[%s743 + $0x3e0] sm:$0xff]
        %v1964 = vld [vmem:[%s743 + $0x3e8] sm:$0xff]
        %v1965 = vld [vmem:[%s743 + $0x3f0] sm:$0xff]
        %v1966 = vld [vmem:[%s743 + $0x3f8] sm:$0xff]
        %v1967 = vld [vmem:[%s752] sm:$0xf]
        %v1969 = vlaneseq
        %v1970 = vshrl.u32 %v1969, 7
        %v1971 = vsub.s32 0, %v1970
        %v1972 = vrot.slane %v1967, %v1971
        %v1973 = vlaneseq
        %v1974 = vshrl.u32 %v1973, 7
        %v1975 = vsub.s32 1, %v1974
        %v1976 = vrot.slane %v1967, %v1975
        %v1977 = vlaneseq
        %v1978 = vshrl.u32 %v1977, 7
        %v1979 = vsub.s32 2, %v1978
        %v1980 = vrot.slane %v1967, %v1979
        %v1981 = vlaneseq
        %v1982 = vshrl.u32 %v1981, 7
        %v1983 = vsub.s32 3, %v1982
        %v1984 = vrot.slane %v1967, %v1983
        %v2117 = vunpack.c.l.b16 %v1839
        %v2118 = vunpack.c.h.b16 %v1839
        %v2119 = vunpack.c.l.b16 %v1840
        %v2120 = vunpack.c.h.b16 %v1840
        %v2121 = vunpack.c.l.b16 %v1841
        %v2122 = vunpack.c.h.b16 %v1841
        %v2123 = vunpack.c.l.b16 %v1842
        %v2124 = vunpack.c.h.b16 %v1842
        %v2125 = vunpack.c.l.b16 %v1843
        %v2126 = vunpack.c.h.b16 %v1843
        %v2127 = vunpack.c.l.b16 %v1844
        %v2128 = vunpack.c.h.b16 %v1844
        %v2129 = vunpack.c.l.b16 %v1845
        %v2130 = vunpack.c.h.b16 %v1845
        %v2131 = vunpack.c.l.b16 %v1846
        %v2132 = vunpack.c.h.b16 %v1846
        %v2133 = vunpack.c.l.b16 %v1847
        %v2134 = vunpack.c.h.b16 %v1847
        %v2135 = vunpack.c.l.b16 %v1848
        %v2136 = vunpack.c.h.b16 %v1848
        %v2137 = vunpack.c.l.b16 %v1849
        %v2138 = vunpack.c.h.b16 %v1849
        %v2139 = vunpack.c.l.b16 %v1850
        %v2140 = vunpack.c.h.b16 %v1850
        %v2141 = vunpack.c.l.b16 %v1851
        %v2142 = vunpack.c.h.b16 %v1851
        %v2143 = vunpack.c.l.b16 %v1852
        %v2144 = vunpack.c.h.b16 %v1852
        %v2145 = vunpack.c.l.b16 %v1853
        %v2146 = vunpack.c.h.b16 %v1853
        %v2147 = vunpack.c.l.b16 %v1854
        %v2148 = vunpack.c.h.b16 %v1854
        %v2149 = vunpack.c.l.b16 %v1855
        %v2150 = vunpack.c.h.b16 %v1855
        %v2151 = vunpack.c.l.b16 %v1856
        %v2152 = vunpack.c.h.b16 %v1856
        %v2153 = vunpack.c.l.b16 %v1857
        %v2154 = vunpack.c.h.b16 %v1857
        %v2155 = vunpack.c.l.b16 %v1858
        %v2156 = vunpack.c.h.b16 %v1858
        %v2157 = vunpack.c.l.b16 %v1859
        %v2158 = vunpack.c.h.b16 %v1859
        %v2159 = vunpack.c.l.b16 %v1860
        %v2160 = vunpack.c.h.b16 %v1860
        %v2161 = vunpack.c.l.b16 %v1861
        %v2162 = vunpack.c.h.b16 %v1861
        %v2163 = vunpack.c.l.b16 %v1862
        %v2164 = vunpack.c.h.b16 %v1862
        %v2165 = vunpack.c.l.b16 %v1863
        %v2166 = vunpack.c.h.b16 %v1863
        %v2167 = vunpack.c.l.b16 %v1864
        %v2168 = vunpack.c.h.b16 %v1864
        %v2169 = vunpack.c.l.b16 %v1865
        %v2170 = vunpack.c.h.b16 %v1865
        %v2171 = vunpack.c.l.b16 %v1866
        %v2172 = vunpack.c.h.b16 %v1866
        %v2173 = vunpack.c.l.b16 %v1867
        %v2174 = vunpack.c.h.b16 %v1867
        %v2175 = vunpack.c.l.b16 %v1868
        %v2176 = vunpack.c.h.b16 %v1868
        %v2177 = vunpack.c.l.b16 %v1869
        %v2178 = vunpack.c.h.b16 %v1869
        %v2179 = vunpack.c.l.b16 %v1870
        %v2180 = vunpack.c.h.b16 %v1870
        %v2181 = vunpack.c.l.b16 %v1871
        %v2182 = vunpack.c.h.b16 %v1871
        %v2183 = vunpack.c.l.b16 %v1872
        %v2184 = vunpack.c.h.b16 %v1872
        %v2185 = vunpack.c.l.b16 %v1873
        %v2186 = vunpack.c.h.b16 %v1873
        %v2187 = vunpack.c.l.b16 %v1874
        %v2188 = vunpack.c.h.b16 %v1874
        %v2189 = vunpack.c.l.b16 %v1875
        %v2190 = vunpack.c.h.b16 %v1875
        %v2191 = vunpack.c.l.b16 %v1876
        %v2192 = vunpack.c.h.b16 %v1876
        %v2193 = vunpack.c.l.b16 %v1877
        %v2194 = vunpack.c.h.b16 %v1877
        %v2195 = vunpack.c.l.b16 %v1878
        %v2196 = vunpack.c.h.b16 %v1878
        %v2197 = vunpack.c.l.b16 %v1879
        %v2198 = vunpack.c.h.b16 %v1879
        %v2199 = vunpack.c.l.b16 %v1880
        %v2200 = vunpack.c.h.b16 %v1880
        %v2201 = vunpack.c.l.b16 %v1881
        %v2202 = vunpack.c.h.b16 %v1881
        %v2203 = vunpack.c.l.b16 %v1882
        %v2204 = vunpack.c.h.b16 %v1882
        %v2205 = vunpack.c.l.b16 %v1883
        %v2206 = vunpack.c.h.b16 %v1883
        %v2207 = vunpack.c.l.b16 %v1884
        %v2208 = vunpack.c.h.b16 %v1884
        %v2209 = vunpack.c.l.b16 %v1885
        %v2210 = vunpack.c.h.b16 %v1885
        %v2211 = vunpack.c.l.b16 %v1886
        %v2212 = vunpack.c.h.b16 %v1886
        %v2213 = vunpack.c.l.b16 %v1887
        %v2214 = vunpack.c.h.b16 %v1887
        %v2215 = vunpack.c.l.b16 %v1888
        %v2216 = vunpack.c.h.b16 %v1888
        %v2217 = vunpack.c.l.b16 %v1889
        %v2218 = vunpack.c.h.b16 %v1889
        %v2219 = vunpack.c.l.b16 %v1890
        %v2220 = vunpack.c.h.b16 %v1890
        %v2221 = vunpack.c.l.b16 %v1891
        %v2222 = vunpack.c.h.b16 %v1891
        %v2223 = vunpack.c.l.b16 %v1892
        %v2224 = vunpack.c.h.b16 %v1892
        %v2225 = vunpack.c.l.b16 %v1893
        %v2226 = vunpack.c.h.b16 %v1893
        %v2227 = vunpack.c.l.b16 %v1894
        %v2228 = vunpack.c.h.b16 %v1894
        %v2229 = vunpack.c.l.b16 %v1895
        %v2230 = vunpack.c.h.b16 %v1895
        %v2231 = vunpack.c.l.b16 %v1896
        %v2232 = vunpack.c.h.b16 %v1896
        %v2233 = vunpack.c.l.b16 %v1897
        %v2234 = vunpack.c.h.b16 %v1897
        %v2235 = vunpack.c.l.b16 %v1898
        %v2236 = vunpack.c.h.b16 %v1898
        %v2237 = vunpack.c.l.b16 %v1899
        %v2238 = vunpack.c.h.b16 %v1899
        %v2239 = vunpack.c.l.b16 %v1900
        %v2240 = vunpack.c.h.b16 %v1900
        %v2241 = vunpack.c.l.b16 %v1901
        %v2242 = vunpack.c.h.b16 %v1901
        %v2243 = vunpack.c.l.b16 %v1902
        %v2244 = vunpack.c.h.b16 %v1902
        %v2245 = vunpack.c.l.b16 %v1903
        %v2246 = vunpack.c.h.b16 %v1903
        %v2247 = vunpack.c.l.b16 %v1904
        %v2248 = vunpack.c.h.b16 %v1904
        %v2249 = vunpack.c.l.b16 %v1905
        %v2250 = vunpack.c.h.b16 %v1905
        %v2251 = vunpack.c.l.b16 %v1906
        %v2252 = vunpack.c.h.b16 %v1906
        %v2253 = vunpack.c.l.b16 %v1907
        %v2254 = vunpack.c.h.b16 %v1907
        %v2255 = vunpack.c.l.b16 %v1908
        %v2256 = vunpack.c.h.b16 %v1908
        %v2257 = vunpack.c.l.b16 %v1909
        %v2258 = vunpack.c.h.b16 %v1909
        %v2259 = vunpack.c.l.b16 %v1910
        %v2260 = vunpack.c.h.b16 %v1910
        %v2261 = vunpack.c.l.b16 %v1911
        %v2262 = vunpack.c.h.b16 %v1911
        %v2263 = vunpack.c.l.b16 %v1912
        %v2264 = vunpack.c.h.b16 %v1912
        %v2265 = vunpack.c.l.b16 %v1913
        %v2266 = vunpack.c.h.b16 %v1913
        %v2267 = vunpack.c.l.b16 %v1914
        %v2268 = vunpack.c.h.b16 %v1914
        %v2269 = vunpack.c.l.b16 %v1915
        %v2270 = vunpack.c.h.b16 %v1915
        %v2271 = vunpack.c.l.b16 %v1916
        %v2272 = vunpack.c.h.b16 %v1916
        %v2273 = vunpack.c.l.b16 %v1917
        %v2274 = vunpack.c.h.b16 %v1917
        %v2275 = vunpack.c.l.b16 %v1918
        %v2276 = vunpack.c.h.b16 %v1918
        %v2277 = vunpack.c.l.b16 %v1919
        %v2278 = vunpack.c.h.b16 %v1919
        %v2279 = vunpack.c.l.b16 %v1920
        %v2280 = vunpack.c.h.b16 %v1920
        %v2281 = vunpack.c.l.b16 %v1921
        %v2282 = vunpack.c.h.b16 %v1921
        %v2283 = vunpack.c.l.b16 %v1922
        %v2284 = vunpack.c.h.b16 %v1922
        %v2285 = vunpack.c.l.b16 %v1923
        %v2286 = vunpack.c.h.b16 %v1923
        %v2287 = vunpack.c.l.b16 %v1924
        %v2288 = vunpack.c.h.b16 %v1924
        %v2289 = vunpack.c.l.b16 %v1925
        %v2290 = vunpack.c.h.b16 %v1925
        %v2291 = vunpack.c.l.b16 %v1926
        %v2292 = vunpack.c.h.b16 %v1926
        %v2293 = vunpack.c.l.b16 %v1927
        %v2294 = vunpack.c.h.b16 %v1927
        %v2295 = vunpack.c.l.b16 %v1928
        %v2296 = vunpack.c.h.b16 %v1928
        %v2297 = vunpack.c.l.b16 %v1929
        %v2298 = vunpack.c.h.b16 %v1929
        %v2299 = vunpack.c.l.b16 %v1930
        %v2300 = vunpack.c.h.b16 %v1930
        %v2301 = vunpack.c.l.b16 %v1931
        %v2302 = vunpack.c.h.b16 %v1931
        %v2303 = vunpack.c.l.b16 %v1932
        %v2304 = vunpack.c.h.b16 %v1932
        %v2305 = vunpack.c.l.b16 %v1933
        %v2306 = vunpack.c.h.b16 %v1933
        %v2307 = vunpack.c.l.b16 %v1934
        %v2308 = vunpack.c.h.b16 %v1934
        %v2309 = vunpack.c.l.b16 %v1935
        %v2310 = vunpack.c.h.b16 %v1935
        %v2311 = vunpack.c.l.b16 %v1936
        %v2312 = vunpack.c.h.b16 %v1936
        %v2313 = vunpack.c.l.b16 %v1937
        %v2314 = vunpack.c.h.b16 %v1937
        %v2315 = vunpack.c.l.b16 %v1938
        %v2316 = vunpack.c.h.b16 %v1938
        %v2317 = vunpack.c.l.b16 %v1939
        %v2318 = vunpack.c.h.b16 %v1939
        %v2319 = vunpack.c.l.b16 %v1940
        %v2320 = vunpack.c.h.b16 %v1940
        %v2321 = vunpack.c.l.b16 %v1941
        %v2322 = vunpack.c.h.b16 %v1941
        %v2323 = vunpack.c.l.b16 %v1942
        %v2324 = vunpack.c.h.b16 %v1942
        %v2325 = vunpack.c.l.b16 %v1943
        %v2326 = vunpack.c.h.b16 %v1943
        %v2327 = vunpack.c.l.b16 %v1944
        %v2328 = vunpack.c.h.b16 %v1944
        %v2329 = vunpack.c.l.b16 %v1945
        %v2330 = vunpack.c.h.b16 %v1945
        %v2331 = vunpack.c.l.b16 %v1946
        %v2332 = vunpack.c.h.b16 %v1946
        %v2333 = vunpack.c.l.b16 %v1947
        %v2334 = vunpack.c.h.b16 %v1947
        %v2335 = vunpack.c.l.b16 %v1948
        %v2336 = vunpack.c.h.b16 %v1948
        %v2337 = vunpack.c.l.b16 %v1949
        %v2338 = vunpack.c.h.b16 %v1949
        %v2339 = vunpack.c.l.b16 %v1950
        %v2340 = vunpack.c.h.b16 %v1950
        %v2341 = vunpack.c.l.b16 %v1951
        %v2342 = vunpack.c.h.b16 %v1951
        %v2343 = vunpack.c.l.b16 %v1952
        %v2344 = vunpack.c.h.b16 %v1952
        %v2345 = vunpack.c.l.b16 %v1953
        %v2346 = vunpack.c.h.b16 %v1953
        %v2347 = vunpack.c.l.b16 %v1954
        %v2348 = vunpack.c.h.b16 %v1954
        %v2349 = vunpack.c.l.b16 %v1955
        %v2350 = vunpack.c.h.b16 %v1955
        %v2351 = vunpack.c.l.b16 %v1956
        %v2352 = vunpack.c.h.b16 %v1956
        %v2353 = vunpack.c.l.b16 %v1957
        %v2354 = vunpack.c.h.b16 %v1957
        %v2355 = vunpack.c.l.b16 %v1958
        %v2356 = vunpack.c.h.b16 %v1958
        %v2357 = vunpack.c.l.b16 %v1959
        %v2358 = vunpack.c.h.b16 %v1959
        %v2359 = vunpack.c.l.b16 %v1960
        %v2360 = vunpack.c.h.b16 %v1960
        %v2361 = vunpack.c.l.b16 %v1961
        %v2362 = vunpack.c.h.b16 %v1961
        %v2363 = vunpack.c.l.b16 %v1962
        %v2364 = vunpack.c.h.b16 %v1962
        %v2365 = vunpack.c.l.b16 %v1963
        %v2366 = vunpack.c.h.b16 %v1963
        %v2367 = vunpack.c.l.b16 %v1964
        %v2368 = vunpack.c.h.b16 %v1964
        %v2369 = vunpack.c.l.b16 %v1965
        %v2370 = vunpack.c.h.b16 %v1965
        %v2371 = vunpack.c.l.b16 %v1966
        %v2372 = vunpack.c.h.b16 %v1966
        %v2373 = vpack.c.b16 %v2121, %v2117
        %v2374 = vpack.c.b16 %v2122, %v2118
        %v2375 = vpack.c.b16 %v2123, %v2119
        %v2376 = vpack.c.b16 %v2124, %v2120
        %v2377 = vpack.c.b16 %v2129, %v2125
        %v2378 = vpack.c.b16 %v2130, %v2126
        %v2379 = vpack.c.b16 %v2131, %v2127
        %v2380 = vpack.c.b16 %v2132, %v2128
        %v2381 = vpack.c.b16 %v2137, %v2133
        %v2382 = vpack.c.b16 %v2138, %v2134
        %v2383 = vpack.c.b16 %v2139, %v2135
        %v2384 = vpack.c.b16 %v2140, %v2136
        %v2385 = vpack.c.b16 %v2145, %v2141
        %v2386 = vpack.c.b16 %v2146, %v2142
        %v2387 = vpack.c.b16 %v2147, %v2143
        %v2388 = vpack.c.b16 %v2148, %v2144
        %v2389 = vpack.c.b16 %v2153, %v2149
        %v2390 = vpack.c.b16 %v2154, %v2150
        %v2391 = vpack.c.b16 %v2155, %v2151
        %v2392 = vpack.c.b16 %v2156, %v2152
        %v2393 = vpack.c.b16 %v2161, %v2157
        %v2394 = vpack.c.b16 %v2162, %v2158
        %v2395 = vpack.c.b16 %v2163, %v2159
        %v2396 = vpack.c.b16 %v2164, %v2160
        %v2397 = vpack.c.b16 %v2169, %v2165
        %v2398 = vpack.c.b16 %v2170, %v2166
        %v2399 = vpack.c.b16 %v2171, %v2167
        %v2400 = vpack.c.b16 %v2172, %v2168
        %v2401 = vpack.c.b16 %v2177, %v2173
        %v2402 = vpack.c.b16 %v2178, %v2174
        %v2403 = vpack.c.b16 %v2179, %v2175
        %v2404 = vpack.c.b16 %v2180, %v2176
        %v2405 = vpack.c.b16 %v2185, %v2181
        %v2406 = vpack.c.b16 %v2186, %v2182
        %v2407 = vpack.c.b16 %v2187, %v2183
        %v2408 = vpack.c.b16 %v2188, %v2184
        %v2409 = vpack.c.b16 %v2193, %v2189
        %v2410 = vpack.c.b16 %v2194, %v2190
        %v2411 = vpack.c.b16 %v2195, %v2191
        %v2412 = vpack.c.b16 %v2196, %v2192
        %v2413 = vpack.c.b16 %v2201, %v2197
        %v2414 = vpack.c.b16 %v2202, %v2198
        %v2415 = vpack.c.b16 %v2203, %v2199
        %v2416 = vpack.c.b16 %v2204, %v2200
        %v2417 = vpack.c.b16 %v2209, %v2205
        %v2418 = vpack.c.b16 %v2210, %v2206
        %v2419 = vpack.c.b16 %v2211, %v2207
        %v2420 = vpack.c.b16 %v2212, %v2208
        %v2421 = vpack.c.b16 %v2217, %v2213
        %v2422 = vpack.c.b16 %v2218, %v2214
        %v2423 = vpack.c.b16 %v2219, %v2215
        %v2424 = vpack.c.b16 %v2220, %v2216
        %v2425 = vpack.c.b16 %v2225, %v2221
        %v2426 = vpack.c.b16 %v2226, %v2222
        %v2427 = vpack.c.b16 %v2227, %v2223
        %v2428 = vpack.c.b16 %v2228, %v2224
        %v2429 = vpack.c.b16 %v2233, %v2229
        %v2430 = vpack.c.b16 %v2234, %v2230
        %v2431 = vpack.c.b16 %v2235, %v2231
        %v2432 = vpack.c.b16 %v2236, %v2232
        %v2433 = vpack.c.b16 %v2241, %v2237
        %v2434 = vpack.c.b16 %v2242, %v2238
        %v2435 = vpack.c.b16 %v2243, %v2239
        %v2436 = vpack.c.b16 %v2244, %v2240
        %v2437 = vpack.c.b16 %v2249, %v2245
        %v2438 = vpack.c.b16 %v2250, %v2246
        %v2439 = vpack.c.b16 %v2251, %v2247
        %v2440 = vpack.c.b16 %v2252, %v2248
        %v2441 = vpack.c.b16 %v2257, %v2253
        %v2442 = vpack.c.b16 %v2258, %v2254
        %v2443 = vpack.c.b16 %v2259, %v2255
        %v2444 = vpack.c.b16 %v2260, %v2256
        %v2445 = vpack.c.b16 %v2265, %v2261
        %v2446 = vpack.c.b16 %v2266, %v2262
        %v2447 = vpack.c.b16 %v2267, %v2263
        %v2448 = vpack.c.b16 %v2268, %v2264
        %v2449 = vpack.c.b16 %v2273, %v2269
        %v2450 = vpack.c.b16 %v2274, %v2270
        %v2451 = vpack.c.b16 %v2275, %v2271
        %v2452 = vpack.c.b16 %v2276, %v2272
        %v2453 = vpack.c.b16 %v2281, %v2277
        %v2454 = vpack.c.b16 %v2282, %v2278
        %v2455 = vpack.c.b16 %v2283, %v2279
        %v2456 = vpack.c.b16 %v2284, %v2280
        %v2457 = vpack.c.b16 %v2289, %v2285
        %v2458 = vpack.c.b16 %v2290, %v2286
        %v2459 = vpack.c.b16 %v2291, %v2287
        %v2460 = vpack.c.b16 %v2292, %v2288
        %v2461 = vpack.c.b16 %v2297, %v2293
        %v2462 = vpack.c.b16 %v2298, %v2294
        %v2463 = vpack.c.b16 %v2299, %v2295
        %v2464 = vpack.c.b16 %v2300, %v2296
        %v2465 = vpack.c.b16 %v2305, %v2301
        %v2466 = vpack.c.b16 %v2306, %v2302
        %v2467 = vpack.c.b16 %v2307, %v2303
        %v2468 = vpack.c.b16 %v2308, %v2304
        %v2469 = vpack.c.b16 %v2313, %v2309
        %v2470 = vpack.c.b16 %v2314, %v2310
        %v2471 = vpack.c.b16 %v2315, %v2311
        %v2472 = vpack.c.b16 %v2316, %v2312
        %v2473 = vpack.c.b16 %v2321, %v2317
        %v2474 = vpack.c.b16 %v2322, %v2318
        %v2475 = vpack.c.b16 %v2323, %v2319
        %v2476 = vpack.c.b16 %v2324, %v2320
        %v2477 = vpack.c.b16 %v2329, %v2325
        %v2478 = vpack.c.b16 %v2330, %v2326
        %v2479 = vpack.c.b16 %v2331, %v2327
        %v2480 = vpack.c.b16 %v2332, %v2328
        %v2481 = vpack.c.b16 %v2337, %v2333
        %v2482 = vpack.c.b16 %v2338, %v2334
        %v2483 = vpack.c.b16 %v2339, %v2335
        %v2484 = vpack.c.b16 %v2340, %v2336
        %v2485 = vpack.c.b16 %v2345, %v2341
        %v2486 = vpack.c.b16 %v2346, %v2342
        %v2487 = vpack.c.b16 %v2347, %v2343
        %v2488 = vpack.c.b16 %v2348, %v2344
        %v2489 = vpack.c.b16 %v2353, %v2349
        %v2490 = vpack.c.b16 %v2354, %v2350
        %v2491 = vpack.c.b16 %v2355, %v2351
        %v2492 = vpack.c.b16 %v2356, %v2352
        %v2493 = vpack.c.b16 %v2361, %v2357
        %v2494 = vpack.c.b16 %v2362, %v2358
        %v2495 = vpack.c.b16 %v2363, %v2359
        %v2496 = vpack.c.b16 %v2364, %v2360
        %v2497 = vpack.c.b16 %v2369, %v2365
        %v2498 = vpack.c.b16 %v2370, %v2366
        %v2499 = vpack.c.b16 %v2371, %v2367
        %v2500 = vpack.c.b16 %v2372, %v2368
        %2629 = vmatprep.subr.bf16.mxu0 %v2374
        %2630 = vmatpush1.bf16.msra.mxu0 %v2373
        %2631 = vmatprep.subr.bf16.mxu0 %v2378
        %2632 = vmatpush1.bf16.msra.mxu0 %v2377
        %2633 = vmatprep.subr.bf16.mxu0 %v2382
        %2634 = vmatpush1.bf16.msra.mxu0 %v2381
        %2635 = vmatprep.subr.bf16.mxu0 %v2386
        %2636 = vmatpush1.bf16.msra.mxu0 %v2385
        %2637 = vmatprep.subr.bf16.mxu0 %v2390
        %2638 = vmatpush1.bf16.msra.mxu0 %v2389
        %2639 = vmatprep.subr.bf16.mxu0 %v2394
        %2640 = vmatpush1.bf16.msra.mxu0 %v2393
        %2641 = vmatprep.subr.bf16.mxu0 %v2398
        %2642 = vmatpush1.bf16.msra.mxu0 %v2397
        %2643 = vmatprep.subr.bf16.mxu0 %v2402
        %2644 = vmatpush1.bf16.msra.mxu0 %v2401
        %2645 = vmatprep.subr.bf16.mxu0 %v2406
        %2646 = vmatpush1.bf16.msra.mxu0 %v2405
        %2647 = vmatprep.subr.bf16.mxu0 %v2410
        %2648 = vmatpush1.bf16.msra.mxu0 %v2409
        %2649 = vmatprep.subr.bf16.mxu0 %v2414
        %2650 = vmatpush1.bf16.msra.mxu0 %v2413
        %2651 = vmatprep.subr.bf16.mxu0 %v2418
        %2652 = vmatpush1.bf16.msra.mxu0 %v2417
        %2653 = vmatprep.subr.bf16.mxu0 %v2422
        %2654 = vmatpush1.bf16.msra.mxu0 %v2421
        %2655 = vmatprep.subr.bf16.mxu0 %v2426
        %2656 = vmatpush1.bf16.msra.mxu0 %v2425
        %2657 = vmatprep.subr.bf16.mxu0 %v2430
        %2658 = vmatpush1.bf16.msra.mxu0 %v2429
        %2659 = vmatprep.subr.bf16.mxu0 %v2434
        %2660 = vmatpush1.bf16.msra.mxu0 %v2433
        %2661 = vmatprep.mubr.bf16.mxu0 %v1836
        %2662 = vmatmul.mubr.bf16.gmra.mrb[0].mxu0 %v1835
        %v2663 = vpop.f32.mrb[0].mxu0
        %v2664 = vadd.f32 %v1972, %v2663
        %v2665 = vpop.f32.mrb[0].mxu0
        %v2666 = vadd.f32 %v1976, %v2665
        %v2667 = vpop.f32.mrb[0].mxu0
        %v2668 = vpop.f32.mrb[0].mxu0
        %2669 = vdwg.mxu0
        %2670 = vmatprep.subr.bf16.mxu0 %v2438
        %2671 = vmatpush1.bf16.msra.mxu0 %v2437
        %2672 = vmatprep.subr.bf16.mxu0 %v2442
        %2673 = vmatpush1.bf16.msra.mxu0 %v2441
        %2674 = vmatprep.subr.bf16.mxu0 %v2446
        %2675 = vmatpush1.bf16.msra.mxu0 %v2445
        %2676 = vmatprep.subr.bf16.mxu0 %v2450
        %2677 = vmatpush1.bf16.msra.mxu0 %v2449
        %2678 = vmatprep.subr.bf16.mxu0 %v2454
        %2679 = vmatpush1.bf16.msra.mxu0 %v2453
        %2680 = vmatprep.subr.bf16.mxu0 %v2458
        %2681 = vmatpush1.bf16.msra.mxu0 %v2457
        %2682 = vmatprep.subr.bf16.mxu0 %v2462
        %2683 = vmatpush1.bf16.msra.mxu0 %v2461
        %2684 = vmatprep.subr.bf16.mxu0 %v2466
        %2685 = vmatpush1.bf16.msra.mxu0 %v2465
        %2686 = vmatprep.subr.bf16.mxu0 %v2470
        %2687 = vmatpush1.bf16.msra.mxu0 %v2469
        %2688 = vmatprep.subr.bf16.mxu0 %v2474
        %2689 = vmatpush1.bf16.msra.mxu0 %v2473
        %2690 = vmatprep.subr.bf16.mxu0 %v2478
        %2691 = vmatpush1.bf16.msra.mxu0 %v2477
        %2692 = vmatprep.subr.bf16.mxu0 %v2482
        %2693 = vmatpush1.bf16.msra.mxu0 %v2481
        %2694 = vmatprep.subr.bf16.mxu0 %v2486
        %2695 = vmatpush1.bf16.msra.mxu0 %v2485
        %2696 = vmatprep.subr.bf16.mxu0 %v2490
        %2697 = vmatpush1.bf16.msra.mxu0 %v2489
        %2698 = vmatprep.subr.bf16.mxu0 %v2494
        %2699 = vmatpush1.bf16.msra.mxu0 %v2493
        %2700 = vmatprep.subr.bf16.mxu0 %v2498
        %2701 = vmatpush1.bf16.msra.mxu0 %v2497
        %2702 = vmatprep.mubr.bf16.mxu0 %v1838
        %2703 = vmatmul.mubr.bf16.gmra.mrb[0].mxu0 %v1837
        %v2704 = vpop.f32.mrb[0].mxu0
        %v2705 = vadd.f32 %v2664, %v2704
        %v2706 = vpop.f32.mrb[0].mxu0
        %v2707 = vadd.f32 %v2666, %v2706
        %v2708 = vpop.f32.mrb[0].mxu0
        %v2709 = vpop.f32.mrb[0].mxu0
        %2710 = vdwg.mxu0
        %2711 = vmatprep.subr.bf16.mxu0 %v2376
        %2712 = vmatpush1.bf16.msra.mxu0 %v2375
        %2713 = vmatprep.subr.bf16.mxu0 %v2380
        %2714 = vmatpush1.bf16.msra.mxu0 %v2379
        %2715 = vmatprep.subr.bf16.mxu0 %v2384
        %2716 = vmatpush1.bf16.msra.mxu0 %v2383
        %2717 = vmatprep.subr.bf16.mxu0 %v2388
        %2718 = vmatpush1.bf16.msra.mxu0 %v2387
        %2719 = vmatprep.subr.bf16.mxu0 %v2392
        %2720 = vmatpush1.bf16.msra.mxu0 %v2391
        %2721 = vmatprep.subr.bf16.mxu0 %v2396
        %2722 = vmatpush1.bf16.msra.mxu0 %v2395
        %2723 = vmatprep.subr.bf16.mxu0 %v2400
        %2724 = vmatpush1.bf16.msra.mxu0 %v2399
        %2725 = vmatprep.subr.bf16.mxu0 %v2404
        %2726 = vmatpush1.bf16.msra.mxu0 %v2403
        %2727 = vmatprep.subr.bf16.mxu0 %v2408
        %2728 = vmatpush1.bf16.msra.mxu0 %v2407
        %2729 = vmatprep.subr.bf16.mxu0 %v2412
        %2730 = vmatpush1.bf16.msra.mxu0 %v2411
        %2731 = vmatprep.subr.bf16.mxu0 %v2416
        %2732 = vmatpush1.bf16.msra.mxu0 %v2415
        %2733 = vmatprep.subr.bf16.mxu0 %v2420
        %2734 = vmatpush1.bf16.msra.mxu0 %v2419
        %2735 = vmatprep.subr.bf16.mxu0 %v2424
        %2736 = vmatpush1.bf16.msra.mxu0 %v2423
        %2737 = vmatprep.subr.bf16.mxu0 %v2428
        %2738 = vmatpush1.bf16.msra.mxu0 %v2427
        %2739 = vmatprep.subr.bf16.mxu0 %v2432
        %2740 = vmatpush1.bf16.msra.mxu0 %v2431
        %2741 = vmatprep.subr.bf16.mxu0 %v2436
        %2742 = vmatpush1.bf16.msra.mxu0 %v2435
        %2743 = vmatprep.mubr.bf16.mxu0 %v1836
        %2744 = vmatmul.mubr.bf16.gmra.mrb[0].mxu0 %v1835
        %v2745 = vpop.f32.mrb[0].mxu0
        %v2746 = vadd.f32 %v1980, %v2745
        %v2747 = vpop.f32.mrb[0].mxu0
        %v2748 = vadd.f32 %v1984, %v2747
        %v2749 = vpop.f32.mrb[0].mxu0
        %v2750 = vpop.f32.mrb[0].mxu0
        %2751 = vdwg.mxu0
        %2752 = vmatprep.subr.bf16.mxu0 %v2440
        %2753 = vmatpush1.bf16.msra.mxu0 %v2439
        %2754 = vmatprep.subr.bf16.mxu0 %v2444
        %2755 = vmatpush1.bf16.msra.mxu0 %v2443
        %2756 = vmatprep.subr.bf16.mxu0 %v2448
        %2757 = vmatpush1.bf16.msra.mxu0 %v2447
        %2758 = vmatprep.subr.bf16.mxu0 %v2452
        %2759 = vmatpush1.bf16.msra.mxu0 %v2451
        %2760 = vmatprep.subr.bf16.mxu0 %v2456
        %2761 = vmatpush1.bf16.msra.mxu0 %v2455
        %2762 = vmatprep.subr.bf16.mxu0 %v2460
        %2763 = vmatpush1.bf16.msra.mxu0 %v2459
        %2764 = vmatprep.subr.bf16.mxu0 %v2464
        %2765 = vmatpush1.bf16.msra.mxu0 %v2463
        %2766 = vmatprep.subr.bf16.mxu0 %v2468
        %2767 = vmatpush1.bf16.msra.mxu0 %v2467
        %2768 = vmatprep.subr.bf16.mxu0 %v2472
        %2769 = vmatpush1.bf16.msra.mxu0 %v2471
        %2770 = vmatprep.subr.bf16.mxu0 %v2476
        %2771 = vmatpush1.bf16.msra.mxu0 %v2475
        %2772 = vmatprep.subr.bf16.mxu0 %v2480
        %2773 = vmatpush1.bf16.msra.mxu0 %v2479
        %2774 = vmatprep.subr.bf16.mxu0 %v2484
        %2775 = vmatpush1.bf16.msra.mxu0 %v2483
        %2776 = vmatprep.subr.bf16.mxu0 %v2488
        %2777 = vmatpush1.bf16.msra.mxu0 %v2487
        %2778 = vmatprep.subr.bf16.mxu0 %v2492
        %2779 = vmatpush1.bf16.msra.mxu0 %v2491
        %2780 = vmatprep.subr.bf16.mxu0 %v2496
        %2781 = vmatpush1.bf16.msra.mxu0 %v2495
        %2782 = vmatprep.subr.bf16.mxu0 %v2500
        %2783 = vmatpush1.bf16.msra.mxu0 %v2499
        %2784 = vmatprep.mubr.bf16.mxu0 %v1838
        %2785 = vmatmul.mubr.bf16.gmra.mrb[0].mxu0 %v1837
        %v2786 = vpop.f32.mrb[0].mxu0
        %v2787 = vadd.f32 %v2746, %v2786
        %v2788 = vpop.f32.mrb[0].mxu0
        %v2789 = vadd.f32 %v2748, %v2788
        %v2790 = vpop.f32.mrb[0].mxu0
        %v2791 = vpop.f32.mrb[0].mxu0
        %2792 = vdwg.mxu0
        %v2793 = vld [vmem:[%s761] sm:$0xf]
        %v2794 = vld [vmem:[%s770] sm:$0xf]
        %v2795 = vmul.f32 %v2705, %v2705
        %v2796 = vmul.f32 %v2707, %v2707
        %v2797 = vmul.f32 %v2787, %v2787
        %v2798 = vmul.f32 %v2789, %v2789
        %2799 = vmatprep.subr.mxu0 0.0
        %2800 = vmatpush1.msra.mxu0 %v1751
        %2801 = vmatprep.subr.mxu0 0.0
        %2802 = vmatpush1.msra.mxu0 %v1752
        %2803 = vmatprep.subr.mxu0 0.0
        %2804 = vmatpush1.msra.mxu0 %v1753
        %2805 = vmatprep.subr.mxu0 0.0
        %2806 = vmatpush1.msra.mxu0 %v1754
        %2807 = vmatprep.subr.mxu0 0.0
        %2808 = vmatpush1.msra.mxu0 %v1755
        %2809 = vmatprep.subr.mxu0 0.0
        %2810 = vmatpush1.msra.mxu0 %v1756
        %2811 = vmatprep.subr.mxu0 0.0
        %2812 = vmatpush1.msra.mxu0 %v1757
        %2813 = vmatprep.subr.mxu0 0.0
        %2814 = vmatpush1.msra.mxu0 %v1758
        %2815 = vmatprep.subr.mxu0 0.0
        %2816 = vmatpush1.msra.mxu0 %v1759
        %2817 = vmatprep.subr.mxu0 0.0
        %2818 = vmatpush1.msra.mxu0 %v1760
        %2819 = vmatprep.subr.mxu0 0.0
        %2820 = vmatpush1.msra.mxu0 %v1761
        %2821 = vmatprep.subr.mxu0 0.0
        %2822 = vmatpush1.msra.mxu0 %v1762
        %2823 = vmatprep.subr.mxu0 0.0
        %2824 = vmatpush1.msra.mxu0 %v1763
        %2825 = vmatprep.subr.mxu0 0.0
        %2826 = vmatpush1.msra.mxu0 %v1764
        %2827 = vmatprep.subr.mxu0 0.0
        %2828 = vmatpush1.msra.mxu0 %v1765
        %2829 = vmatprep.subr.mxu0 0.0
        %2830 = vmatpush1.msra.mxu0 %v1766
        %2831 = vmatprep.subr.mxu0 0.0
        %2832 = vmatpush1.msra.mxu0 %v1767
        %2833 = vmatprep.subr.mxu0 0.0
        %2834 = vmatpush1.msra.mxu0 %v1768
        %2835 = vmatprep.subr.mxu0 0.0
        %2836 = vmatpush1.msra.mxu0 %v1769
        %2837 = vmatprep.subr.mxu0 0.0
        %2838 = vmatpush1.msra.mxu0 %v1770
        %2839 = vmatprep.subr.mxu0 0.0
        %2840 = vmatpush1.msra.mxu0 %v1771
        %2841 = vmatprep.subr.mxu0 0.0
        %2842 = vmatpush1.msra.mxu0 %v1772
        %2843 = vmatprep.subr.mxu0 0.0
        %2844 = vmatpush1.msra.mxu0 %v1773
        %2845 = vmatprep.subr.mxu0 0.0
        %2846 = vmatpush1.msra.mxu0 %v1774
        %2847 = vmatprep.subr.mxu0 0.0
        %2848 = vmatpush1.msra.mxu0 %v1775
        %2849 = vmatprep.subr.mxu0 0.0
        %2850 = vmatpush1.msra.mxu0 %v1776
        %2851 = vmatprep.subr.mxu0 0.0
        %2852 = vmatpush1.msra.mxu0 %v1777
        %2853 = vmatprep.subr.mxu0 0.0
        %2854 = vmatpush1.msra.mxu0 %v1778
        %2855 = vmatprep.subr.mxu0 0.0
        %2856 = vmatpush1.msra.mxu0 %v1779
        %2857 = vmatprep.subr.mxu0 0.0
        %2858 = vmatpush1.msra.mxu0 %v1780
        %2859 = vmatprep.subr.mxu0 0.0
        %2860 = vmatpush1.msra.mxu0 %v1781
        %2861 = vmatprep.subr.mxu0 0.0
        %2862 = vmatpush1.msra.mxu0 %v1782
        %2863 = vmatprep.mubr.f32.mxu0 %v2707
        %2864 = vmatmul.mubr.f32.gmra.mrb[0].mxu0 %v2705
        %v2865 = vpop.f32.mrb[0].mxu0
        %v2866 = vadd.f32 0.0, %v2865
        %v2867 = vpop.f32.mrb[0].mxu0
        %2868 = vmatprep.mubr.f32.mxu0 %v2796
        %2869 = vmatmul.mubr.f32.gmra.mrb[0].mxu0 %v2795
        %v2870 = vpop.f32.mrb[0].mxu0
        %v2871 = vadd.f32 0.0, %v2870
        %v2872 = vpop.f32.mrb[0].mxu0
        %2873 = vdwg.mxu0
        %2874 = vmatprep.subr.mxu0 0.0
        %2875 = vmatpush1.msra.mxu0 %v1783
        %2876 = vmatprep.subr.mxu0 0.0
        %2877 = vmatpush1.msra.mxu0 %v1784
        %2878 = vmatprep.subr.mxu0 0.0
        %2879 = vmatpush1.msra.mxu0 %v1785
        %2880 = vmatprep.subr.mxu0 0.0
        %2881 = vmatpush1.msra.mxu0 %v1786
        %2882 = vmatprep.subr.mxu0 0.0
        %2883 = vmatpush1.msra.mxu0 %v1787
        %2884 = vmatprep.subr.mxu0 0.0
        %2885 = vmatpush1.msra.mxu0 %v1788
        %2886 = vmatprep.subr.mxu0 0.0
        %2887 = vmatpush1.msra.mxu0 %v1789
        %2888 = vmatprep.subr.mxu0 0.0
        %2889 = vmatpush1.msra.mxu0 %v1790
        %2890 = vmatprep.subr.mxu0 0.0
        %2891 = vmatpush1.msra.mxu0 %v1791
        %2892 = vmatprep.subr.mxu0 0.0
        %2893 = vmatpush1.msra.mxu0 %v1792
        %2894 = vmatprep.subr.mxu0 0.0
        %2895 = vmatpush1.msra.mxu0 %v1793
        %2896 = vmatprep.subr.mxu0 0.0
        %2897 = vmatpush1.msra.mxu0 %v1794
        %2898 = vmatprep.subr.mxu0 0.0
        %2899 = vmatpush1.msra.mxu0 %v1795
        %2900 = vmatprep.subr.mxu0 0.0
        %2901 = vmatpush1.msra.mxu0 %v1796
        %2902 = vmatprep.subr.mxu0 0.0
        %2903 = vmatpush1.msra.mxu0 %v1797
        %2904 = vmatprep.subr.mxu0 0.0
        %2905 = vmatpush1.msra.mxu0 %v1798
        %2906 = vmatprep.subr.mxu0 0.0
        %2907 = vmatpush1.msra.mxu0 %v1799
        %2908 = vmatprep.subr.mxu0 0.0
        %2909 = vmatpush1.msra.mxu0 %v1800
        %2910 = vmatprep.subr.mxu0 0.0
        %2911 = vmatpush1.msra.mxu0 %v1801
        %2912 = vmatprep.subr.mxu0 0.0
        %2913 = vmatpush1.msra.mxu0 %v1802
        %2914 = vmatprep.subr.mxu0 0.0
        %2915 = vmatpush1.msra.mxu0 %v1803
        %2916 = vmatprep.subr.mxu0 0.0
        %2917 = vmatpush1.msra.mxu0 %v1804
        %2918 = vmatprep.subr.mxu0 0.0
        %2919 = vmatpush1.msra.mxu0 %v1805
        %2920 = vmatprep.subr.mxu0 0.0
        %2921 = vmatpush1.msra.mxu0 %v1806
        %2922 = vmatprep.subr.mxu0 0.0
        %2923 = vmatpush1.msra.mxu0 %v1807
        %2924 = vmatprep.subr.mxu0 0.0
        %2925 = vmatpush1.msra.mxu0 %v1808
        %2926 = vmatprep.subr.mxu0 0.0
        %2927 = vmatpush1.msra.mxu0 %v1809
        %2928 = vmatprep.subr.mxu0 0.0
        %2929 = vmatpush1.msra.mxu0 %v1810
        %2930 = vmatprep.subr.mxu0 0.0
        %2931 = vmatpush1.msra.mxu0 %v1811
        %2932 = vmatprep.subr.mxu0 0.0
        %2933 = vmatpush1.msra.mxu0 %v1812
        %2934 = vmatprep.subr.mxu0 0.0
        %2935 = vmatpush1.msra.mxu0 %v1813
        %2936 = vmatprep.subr.mxu0 0.0
        %2937 = vmatpush1.msra.mxu0 %v1814
        %2938 = vmatprep.mubr.f32.mxu0 %v2789
        %2939 = vmatmul.mubr.f32.gmra.mrb[0].mxu0 %v2787
        %v2940 = vpop.f32.mrb[0].mxu0
        %v2941 = vadd.f32 %v2866, %v2940
        %v2942 = vpop.f32.mrb[0].mxu0
        %2943 = vmatprep.mubr.f32.mxu0 %v2798
        %2944 = vmatmul.mubr.f32.gmra.mrb[0].mxu0 %v2797
        %v2945 = vpop.f32.mrb[0].mxu0
        %v2946 = vadd.f32 %v2871, %v2945
        %v2947 = vpop.f32.mrb[0].mxu0
        %2948 = vdwg.mxu0
        %vm2949 = vcmask 261120
        %v2951 = vsel %vm2949, %v2941, 0
        %v2954 = vsel %vm2949, %v2946, 0
        %2956 = vmatprep.subr.mxu0 %v1816
        %2957 = vmatpush1.msra.mxu0 %v1815
        %2958 = vmatprep.subr.mxu0 %v1820
        %2959 = vmatpush1.msra.mxu0 %v1819
        %2960 = vmatprep.subr.mxu0 %v1824
        %2961 = vmatpush1.msra.mxu0 %v1823
        %2962 = vmatprep.subr.mxu0 %v1828
        %2963 = vmatpush1.msra.mxu0 %v1827
        %2964 = vmatprep.subr.mxu0 0.0
        %2965 = vmatpush1.msra.mxu0 0.0
        %2966 = vmatprep.subr.mxu0 0.0
        %2967 = vmatpush1.msra.mxu0 0.0
        %2968 = vmatprep.subr.mxu0 0.0
        %2969 = vmatpush1.msra.mxu0 0.0
        %2970 = vmatprep.subr.mxu0 0.0
        %2971 = vmatpush1.msra.mxu0 0.0
        %2972 = vmatprep.subr.mxu0 0.0
        %2973 = vmatpush1.msra.mxu0 0.0
        %2974 = vmatprep.subr.mxu0 0.0
        %2975 = vmatpush1.msra.mxu0 0.0
        %2976 = vmatprep.subr.mxu0 0.0
        %2977 = vmatpush1.msra.mxu0 0.0
        %2978 = vmatprep.subr.mxu0 0.0
        %2979 = vmatpush1.msra.mxu0 0.0
        %2980 = vmatprep.subr.mxu0 0.0
        %2981 = vmatpush1.msra.mxu0 0.0
        %2982 = vmatprep.subr.mxu0 0.0
        %2983 = vmatpush1.msra.mxu0 0.0
        %2984 = vmatprep.subr.mxu0 0.0
        %2985 = vmatpush1.msra.mxu0 0.0
        %2986 = vmatprep.subr.mxu0 0.0
        %2987 = vmatpush1.msra.mxu0 0.0
        %2988 = vmatprep.subr.mxu0 0.0
        %2989 = vmatpush1.msra.mxu0 0.0
        %2990 = vmatprep.subr.mxu0 0.0
        %2991 = vmatpush1.msra.mxu0 0.0
        %2992 = vmatprep.subr.mxu0 0.0
        %2993 = vmatpush1.msra.mxu0 0.0
        %2994 = vmatprep.subr.mxu0 0.0
        %2995 = vmatpush1.msra.mxu0 0.0
        %2996 = vmatprep.subr.mxu0 0.0
        %2997 = vmatpush1.msra.mxu0 0.0
        %2998 = vmatprep.subr.mxu0 0.0
        %2999 = vmatpush1.msra.mxu0 0.0
        %3000 = vmatprep.subr.mxu0 0.0
        %3001 = vmatpush1.msra.mxu0 0.0
        %3002 = vmatprep.subr.mxu0 0.0
        %3003 = vmatpush1.msra.mxu0 0.0
        %3004 = vmatprep.subr.mxu0 0.0
        %3005 = vmatpush1.msra.mxu0 0.0
        %3006 = vmatprep.subr.mxu0 0.0
        %3007 = vmatpush1.msra.mxu0 0.0
        %3008 = vmatprep.subr.mxu0 0.0
        %3009 = vmatpush1.msra.mxu0 0.0
        %3010 = vmatprep.subr.mxu0 0.0
        %3011 = vmatpush1.msra.mxu0 0.0
        %3012 = vmatprep.subr.mxu0 0.0
        %3013 = vmatpush1.msra.mxu0 0.0
        %3014 = vmatprep.subr.mxu0 0.0
        %3015 = vmatpush1.msra.mxu0 0.0
        %3016 = vmatprep.subr.mxu0 0.0
        %3017 = vmatpush1.msra.mxu0 0.0
        %3018 = vmatprep.subr.mxu0 0.0
        %3019 = vmatpush1.msra.mxu0 0.0
        %3020 = vmatprep.mubr.f32.mxu0 0.0
        %3021 = vmatmul.mubr.f32.gmra.mrb[0].mxu0 %v2951
        %v3022 = vpop.f32.mrb[0].mxu0
        %v3023 = vadd.f32 0.0, %v3022
        %v3024 = vpop.f32.mrb[0].mxu0
        %v3025 = vadd.f32 0.0, %v3024
        %3026 = vmatprep.mubr.f32.mxu0 0.0
        %3027 = vmatmul.mubr.f32.gmra.mrb[0].mxu0 %v2954
        %v3028 = vpop.f32.mrb[0].mxu0
        %v3029 = vadd.f32 0.0, %v3028
        %v3030 = vpop.f32.mrb[0].mxu0
        %v3031 = vadd.f32 0.0, %v3030
        %3032 = vdwg.mxu0
        %3033 = vmatprep.subr.mxu0 %v1818
        %3034 = vmatpush1.msra.mxu0 %v1817
        %3035 = vmatprep.subr.mxu0 %v1822
        %3036 = vmatpush1.msra.mxu0 %v1821
        %3037 = vmatprep.subr.mxu0 %v1826
        %3038 = vmatpush1.msra.mxu0 %v1825
        %3039 = vmatprep.subr.mxu0 %v1830
        %3040 = vmatpush1.msra.mxu0 %v1829
        %3041 = vmatprep.subr.mxu0 0.0
        %3042 = vmatpush1.msra.mxu0 0.0
        %3043 = vmatprep.subr.mxu0 0.0
        %3044 = vmatpush1.msra.mxu0 0.0
        %3045 = vmatprep.subr.mxu0 0.0
        %3046 = vmatpush1.msra.mxu0 0.0
        %3047 = vmatprep.subr.mxu0 0.0
        %3048 = vmatpush1.msra.mxu0 0.0
        %3049 = vmatprep.subr.mxu0 0.0
        %3050 = vmatpush1.msra.mxu0 0.0
        %3051 = vmatprep.subr.mxu0 0.0
        %3052 = vmatpush1.msra.mxu0 0.0
        %3053 = vmatprep.subr.mxu0 0.0
        %3054 = vmatpush1.msra.mxu0 0.0
        %3055 = vmatprep.subr.mxu0 0.0
        %3056 = vmatpush1.msra.mxu0 0.0
        %3057 = vmatprep.subr.mxu0 0.0
        %3058 = vmatpush1.msra.mxu0 0.0
        %3059 = vmatprep.subr.mxu0 0.0
        %3060 = vmatpush1.msra.mxu0 0.0
        %3061 = vmatprep.subr.mxu0 0.0
        %3062 = vmatpush1.msra.mxu0 0.0
        %3063 = vmatprep.subr.mxu0 0.0
        %3064 = vmatpush1.msra.mxu0 0.0
        %3065 = vmatprep.subr.mxu0 0.0
        %3066 = vmatpush1.msra.mxu0 0.0
        %3067 = vmatprep.subr.mxu0 0.0
        %3068 = vmatpush1.msra.mxu0 0.0
        %3069 = vmatprep.subr.mxu0 0.0
        %3070 = vmatpush1.msra.mxu0 0.0
        %3071 = vmatprep.subr.mxu0 0.0
        %3072 = vmatpush1.msra.mxu0 0.0
        %3073 = vmatprep.subr.mxu0 0.0
        %3074 = vmatpush1.msra.mxu0 0.0
        %3075 = vmatprep.subr.mxu0 0.0
        %3076 = vmatpush1.msra.mxu0 0.0
        %3077 = vmatprep.subr.mxu0 0.0
        %3078 = vmatpush1.msra.mxu0 0.0
        %3079 = vmatprep.subr.mxu0 0.0
        %3080 = vmatpush1.msra.mxu0 0.0
        %3081 = vmatprep.subr.mxu0 0.0
        %3082 = vmatpush1.msra.mxu0 0.0
        %3083 = vmatprep.subr.mxu0 0.0
        %3084 = vmatpush1.msra.mxu0 0.0
        %3085 = vmatprep.subr.mxu0 0.0
        %3086 = vmatpush1.msra.mxu0 0.0
        %3087 = vmatprep.subr.mxu0 0.0
        %3088 = vmatpush1.msra.mxu0 0.0
        %3089 = vmatprep.subr.mxu0 0.0
        %3090 = vmatpush1.msra.mxu0 0.0
        %3091 = vmatprep.subr.mxu0 0.0
        %3092 = vmatpush1.msra.mxu0 0.0
        %3093 = vmatprep.subr.mxu0 0.0
        %3094 = vmatpush1.msra.mxu0 0.0
        %3095 = vmatprep.subr.mxu0 0.0
        %3096 = vmatpush1.msra.mxu0 0.0
        %3097 = vmatprep.mubr.f32.mxu0 0.0
        %3098 = vmatmul.mubr.f32.gmra.mrb[0].mxu0 %v2951
        %v3099 = vpop.f32.mrb[0].mxu0
        %v3100 = vadd.f32 0.0, %v3099
        %v3101 = vpop.f32.mrb[0].mxu0
        %v3102 = vadd.f32 0.0, %v3101
        %3103 = vmatprep.mubr.f32.mxu0 0.0
        %3104 = vmatmul.mubr.f32.gmra.mrb[0].mxu0 %v2954
        %v3105 = vpop.f32.mrb[0].mxu0
        %v3106 = vadd.f32 0.0, %v3105
        %v3107 = vpop.f32.mrb[0].mxu0
        %v3108 = vadd.f32 0.0, %v3107
        %3109 = vdwg.mxu0
        %v3110 = vmul.f32 %v3023, %v3023
        %v3111 = vmul.f32 %v3025, %v3025
        %v3112 = vmul.f32 %v3100, %v3100
        %v3113 = vmul.f32 %v3102, %v3102
        %v3114 = vsub.f32 %v3029, %v3110
        %v3115 = vsub.f32 %v3031, %v3111
        %v3116 = vsub.f32 %v3106, %v3112
        %v3117 = vsub.f32 %v3108, %v3113
        %v3118 = vmax.f32 %v3114, 0.0
        %v3119 = vmax.f32 %v3115, 0.0
        %v3120 = vmax.f32 %v3116, 0.0
        %v3121 = vmax.f32 %v3117, 0.0
        %v3122 = vsub.f32 %v2705, %v3023
        %v3123 = vsub.f32 %v2707, %v3025
        %v3124 = vsub.f32 %v2787, %v3100
        %v3125 = vsub.f32 %v2789, %v3102
        %v3126 = vadd.f32 %v3118, 1e-05
        %v3127 = vadd.f32 %v3119, 1e-05
        %v3128 = vadd.f32 %v3120, 1e-05
        %v3129 = vadd.f32 %v3121, 1e-05
        %v3130 = vrsqrt.pop %v3126
        %v3131 = vrsqrt.pop %v3127
        %v3132 = vrsqrt.pop %v3128
        %v3133 = vrsqrt.pop %v3129
        %v3134 = vmul.f32 %v3122, %v3130
        %v3135 = vmul.f32 %v3123, %v3131
        %v3136 = vmul.f32 %v3124, %v3132
        %v3137 = vmul.f32 %v3125, %v3133
        %v3139 = vlaneseq
        %v3140 = vshrl.u32 %v3139, 7
        %v3141 = vsub.s32 0, %v3140
        %v3142 = vrot.slane %v2793, %v3141
        %v3143 = vlaneseq
        %v3144 = vshrl.u32 %v3143, 7
        %v3145 = vsub.s32 1, %v3144
        %v3146 = vrot.slane %v2793, %v3145
        %v3147 = vlaneseq
        %v3148 = vshrl.u32 %v3147, 7
        %v3149 = vsub.s32 2, %v3148
        %v3150 = vrot.slane %v2793, %v3149
        %v3151 = vlaneseq
        %v3152 = vshrl.u32 %v3151, 7
        %v3153 = vsub.s32 3, %v3152
        %v3154 = vrot.slane %v2793, %v3153
        %v3159 = vmul.f32 %v3134, %v3142
        %v3160 = vmul.f32 %v3135, %v3146
        %v3161 = vmul.f32 %v3136, %v3150
        %v3162 = vmul.f32 %v3137, %v3154
        %v3164 = vlaneseq
        %v3165 = vshrl.u32 %v3164, 7
        %v3166 = vsub.s32 0, %v3165
        %v3167 = vrot.slane %v2794, %v3166
        %v3168 = vlaneseq
        %v3169 = vshrl.u32 %v3168, 7
        %v3170 = vsub.s32 1, %v3169
        %v3171 = vrot.slane %v2794, %v3170
        %v3172 = vlaneseq
        %v3173 = vshrl.u32 %v3172, 7
        %v3174 = vsub.s32 2, %v3173
        %v3175 = vrot.slane %v2794, %v3174
        %v3176 = vlaneseq
        %v3177 = vshrl.u32 %v3176, 7
        %v3178 = vsub.s32 3, %v3177
        %v3179 = vrot.slane %v2794, %v3178
        %v3184 = vadd.f32 %v3159, %v3167
        %v3185 = vadd.f32 %v3160, %v3171
        %v3186 = vadd.f32 %v3161, %v3175
        %v3187 = vadd.f32 %v3162, %v3179
        %v3188 = vxor.u32 %v3184, 2147483648
        %v3189 = vxor.u32 %v3185, 2147483648
        %v3190 = vxor.u32 %v3186, 2147483648
        %v3191 = vxor.u32 %v3187, 2147483648
        %v3192 = vmul.f32 %v3188, 1.442695
        %v3193 = vpow.pop %v3192
        %v3194 = vmul.f32 %v3189, 1.442695
        %v3195 = vpow.pop %v3194
        %v3196 = vmul.f32 %v3190, 1.442695
        %v3197 = vpow.pop %v3196
        %v3198 = vmul.f32 %v3191, 1.442695
        %v3199 = vpow.pop %v3198
        %v3200 = vadd.f32 %v3193, 1.0
        %v3201 = vadd.f32 %v3195, 1.0
        %v3202 = vadd.f32 %v3197, 1.0
        %v3203 = vadd.f32 %v3199, 1.0
        %v3204 = vrcp.pop %v3200
        %v3205 = vmul.f32 1.0, %v3204
        %v3206 = vrcp.pop %v3201
        %v3207 = vmul.f32 1.0, %v3206
        %v3208 = vrcp.pop %v3202
        %v3209 = vmul.f32 1.0, %v3208
        %v3210 = vrcp.pop %v3203
        %v3211 = vmul.f32 1.0, %v3210
        %v3212 = vmul.f32 %v3184, %v3205
        %v3213 = vmul.f32 %v3185, %v3207
        %v3214 = vmul.f32 %v3186, %v3209
        %v3215 = vmul.f32 %v3187, %v3211
        %v3216 = vpack.c.bf16 %v3212, %v3212
        %v3217 = vpack.c.bf16 %v3213, %v3213
        %v3218 = vpack.c.bf16 %v3214, %v3214
        %v3219 = vpack.c.bf16 %v3215, %v3215
        %v3220 = vld [vmem:[%s779] sm:$0xff]
        %v3221 = vld [vmem:[%s779 + $0x8] sm:$0xff]
        %v3222 = vld [vmem:[%s779 + $0x10] sm:$0xff]
        %v3223 = vld [vmem:[%s779 + $0x18] sm:$0xff]
        %v3224 = vld [vmem:[%s779 + $0x20] sm:$0xff]
        %v3225 = vld [vmem:[%s779 + $0x28] sm:$0xff]
        %v3226 = vld [vmem:[%s779 + $0x30] sm:$0xff]
        %v3227 = vld [vmem:[%s779 + $0x38] sm:$0xff]
        %v3228 = vld [vmem:[%s779 + $0x40] sm:$0xff]
        %v3229 = vld [vmem:[%s779 + $0x48] sm:$0xff]
        %v3230 = vld [vmem:[%s779 + $0x50] sm:$0xff]
        %v3231 = vld [vmem:[%s779 + $0x58] sm:$0xff]
        %v3232 = vld [vmem:[%s779 + $0x60] sm:$0xff]
        %v3233 = vld [vmem:[%s779 + $0x68] sm:$0xff]
        %v3234 = vld [vmem:[%s779 + $0x70] sm:$0xff]
        %v3235 = vld [vmem:[%s779 + $0x78] sm:$0xff]
        %v3236 = vld [vmem:[%s779 + $0x80] sm:$0xff]
        %v3237 = vld [vmem:[%s779 + $0x88] sm:$0xff]
        %v3238 = vld [vmem:[%s779 + $0x90] sm:$0xff]
        %v3239 = vld [vmem:[%s779 + $0x98] sm:$0xff]
        %v3240 = vld [vmem:[%s779 + $0xa0] sm:$0xff]
        %v3241 = vld [vmem:[%s779 + $0xa8] sm:$0xff]
        %v3242 = vld [vmem:[%s779 + $0xb0] sm:$0xff]
        %v3243 = vld [vmem:[%s779 + $0xb8] sm:$0xff]
        %v3244 = vld [vmem:[%s779 + $0xc0] sm:$0xff]
        %v3245 = vld [vmem:[%s779 + $0xc8] sm:$0xff]
        %v3246 = vld [vmem:[%s779 + $0xd0] sm:$0xff]
        %v3247 = vld [vmem:[%s779 + $0xd8] sm:$0xff]
        %v3248 = vld [vmem:[%s779 + $0xe0] sm:$0xff]
        %v3249 = vld [vmem:[%s779 + $0xe8] sm:$0xff]
        %v3250 = vld [vmem:[%s779 + $0xf0] sm:$0xff]
        %v3251 = vld [vmem:[%s779 + $0xf8] sm:$0xff]
        %v3252 = vld [vmem:[%s779 + $0x100] sm:$0xff]
        %v3253 = vld [vmem:[%s779 + $0x108] sm:$0xff]
        %v3254 = vld [vmem:[%s779 + $0x110] sm:$0xff]
        %v3255 = vld [vmem:[%s779 + $0x118] sm:$0xff]
        %v3256 = vld [vmem:[%s779 + $0x120] sm:$0xff]
        %v3257 = vld [vmem:[%s779 + $0x128] sm:$0xff]
        %v3258 = vld [vmem:[%s779 + $0x130] sm:$0xff]
        %v3259 = vld [vmem:[%s779 + $0x138] sm:$0xff]
        %v3260 = vld [vmem:[%s779 + $0x140] sm:$0xff]
        %v3261 = vld [vmem:[%s779 + $0x148] sm:$0xff]
        %v3262 = vld [vmem:[%s779 + $0x150] sm:$0xff]
        %v3263 = vld [vmem:[%s779 + $0x158] sm:$0xff]
        %v3264 = vld [vmem:[%s779 + $0x160] sm:$0xff]
        %v3265 = vld [vmem:[%s779 + $0x168] sm:$0xff]
        %v3266 = vld [vmem:[%s779 + $0x170] sm:$0xff]
        %v3267 = vld [vmem:[%s779 + $0x178] sm:$0xff]
        %v3268 = vld [vmem:[%s779 + $0x180] sm:$0xff]
        %v3269 = vld [vmem:[%s779 + $0x188] sm:$0xff]
        %v3270 = vld [vmem:[%s779 + $0x190] sm:$0xff]
        %v3271 = vld [vmem:[%s779 + $0x198] sm:$0xff]
        %v3272 = vld [vmem:[%s779 + $0x1a0] sm:$0xff]
        %v3273 = vld [vmem:[%s779 + $0x1a8] sm:$0xff]
        %v3274 = vld [vmem:[%s779 + $0x1b0] sm:$0xff]
        %v3275 = vld [vmem:[%s779 + $0x1b8] sm:$0xff]
        %v3276 = vld [vmem:[%s779 + $0x1c0] sm:$0xff]
        %v3277 = vld [vmem:[%s779 + $0x1c8] sm:$0xff]
        %v3278 = vld [vmem:[%s779 + $0x1d0] sm:$0xff]
        %v3279 = vld [vmem:[%s779 + $0x1d8] sm:$0xff]
        %v3280 = vld [vmem:[%s779 + $0x1e0] sm:$0xff]
        %v3281 = vld [vmem:[%s779 + $0x1e8] sm:$0xff]
        %v3282 = vld [vmem:[%s779 + $0x1f0] sm:$0xff]
        %v3283 = vld [vmem:[%s779 + $0x1f8] sm:$0xff]
        %v3284 = vld [vmem:[%s779 + $0x200] sm:$0xff]
        %v3285 = vld [vmem:[%s779 + $0x208] sm:$0xff]
        %v3286 = vld [vmem:[%s779 + $0x210] sm:$0xff]
        %v3287 = vld [vmem:[%s779 + $0x218] sm:$0xff]
        %v3288 = vld [vmem:[%s779 + $0x220] sm:$0xff]
        %v3289 = vld [vmem:[%s779 + $0x228] sm:$0xff]
        %v3290 = vld [vmem:[%s779 + $0x230] sm:$0xff]
        %v3291 = vld [vmem:[%s779 + $0x238] sm:$0xff]
        %v3292 = vld [vmem:[%s779 + $0x240] sm:$0xff]
        %v3293 = vld [vmem:[%s779 + $0x248] sm:$0xff]
        %v3294 = vld [vmem:[%s779 + $0x250] sm:$0xff]
        %v3295 = vld [vmem:[%s779 + $0x258] sm:$0xff]
        %v3296 = vld [vmem:[%s779 + $0x260] sm:$0xff]
        %v3297 = vld [vmem:[%s779 + $0x268] sm:$0xff]
        %v3298 = vld [vmem:[%s779 + $0x270] sm:$0xff]
        %v3299 = vld [vmem:[%s779 + $0x278] sm:$0xff]
        %v3300 = vld [vmem:[%s779 + $0x280] sm:$0xff]
        %v3301 = vld [vmem:[%s779 + $0x288] sm:$0xff]
        %v3302 = vld [vmem:[%s779 + $0x290] sm:$0xff]
        %v3303 = vld [vmem:[%s779 + $0x298] sm:$0xff]
        %v3304 = vld [vmem:[%s779 + $0x2a0] sm:$0xff]
        %v3305 = vld [vmem:[%s779 + $0x2a8] sm:$0xff]
        %v3306 = vld [vmem:[%s779 + $0x2b0] sm:$0xff]
        %v3307 = vld [vmem:[%s779 + $0x2b8] sm:$0xff]
        %v3308 = vld [vmem:[%s779 + $0x2c0] sm:$0xff]
        %v3309 = vld [vmem:[%s779 + $0x2c8] sm:$0xff]
        %v3310 = vld [vmem:[%s779 + $0x2d0] sm:$0xff]
        %v3311 = vld [vmem:[%s779 + $0x2d8] sm:$0xff]
        %v3312 = vld [vmem:[%s779 + $0x2e0] sm:$0xff]
        %v3313 = vld [vmem:[%s779 + $0x2e8] sm:$0xff]
        %v3314 = vld [vmem:[%s779 + $0x2f0] sm:$0xff]
        %v3315 = vld [vmem:[%s779 + $0x2f8] sm:$0xff]
        %v3316 = vld [vmem:[%s779 + $0x300] sm:$0xff]
        %v3317 = vld [vmem:[%s779 + $0x308] sm:$0xff]
        %v3318 = vld [vmem:[%s779 + $0x310] sm:$0xff]
        %v3319 = vld [vmem:[%s779 + $0x318] sm:$0xff]
        %v3320 = vld [vmem:[%s779 + $0x320] sm:$0xff]
        %v3321 = vld [vmem:[%s779 + $0x328] sm:$0xff]
        %v3322 = vld [vmem:[%s779 + $0x330] sm:$0xff]
        %v3323 = vld [vmem:[%s779 + $0x338] sm:$0xff]
        %v3324 = vld [vmem:[%s779 + $0x340] sm:$0xff]
        %v3325 = vld [vmem:[%s779 + $0x348] sm:$0xff]
        %v3326 = vld [vmem:[%s779 + $0x350] sm:$0xff]
        %v3327 = vld [vmem:[%s779 + $0x358] sm:$0xff]
        %v3328 = vld [vmem:[%s779 + $0x360] sm:$0xff]
        %v3329 = vld [vmem:[%s779 + $0x368] sm:$0xff]
        %v3330 = vld [vmem:[%s779 + $0x370] sm:$0xff]
        %v3331 = vld [vmem:[%s779 + $0x378] sm:$0xff]
        %v3332 = vld [vmem:[%s779 + $0x380] sm:$0xff]
        %v3333 = vld [vmem:[%s779 + $0x388] sm:$0xff]
        %v3334 = vld [vmem:[%s779 + $0x390] sm:$0xff]
        %v3335 = vld [vmem:[%s779 + $0x398] sm:$0xff]
        %v3336 = vld [vmem:[%s779 + $0x3a0] sm:$0xff]
        %v3337 = vld [vmem:[%s779 + $0x3a8] sm:$0xff]
        %v3338 = vld [vmem:[%s779 + $0x3b0] sm:$0xff]
        %v3339 = vld [vmem:[%s779 + $0x3b8] sm:$0xff]
        %v3340 = vld [vmem:[%s779 + $0x3c0] sm:$0xff]
        %v3341 = vld [vmem:[%s779 + $0x3c8] sm:$0xff]
        %v3342 = vld [vmem:[%s779 + $0x3d0] sm:$0xff]
        %v3343 = vld [vmem:[%s779 + $0x3d8] sm:$0xff]
        %v3344 = vld [vmem:[%s779 + $0x3e0] sm:$0xff]
        %v3345 = vld [vmem:[%s779 + $0x3e8] sm:$0xff]
        %v3346 = vld [vmem:[%s779 + $0x3f0] sm:$0xff]
        %v3347 = vld [vmem:[%s779 + $0x3f8] sm:$0xff]
        %v3348 = vld [vmem:[%s788] sm:$0xf]
        %v3350 = vlaneseq
        %v3351 = vshrl.u32 %v3350, 7
        %v3352 = vsub.s32 0, %v3351
        %v3353 = vrot.slane %v3348, %v3352
        %v3354 = vlaneseq
        %v3355 = vshrl.u32 %v3354, 7
        %v3356 = vsub.s32 1, %v3355
        %v3357 = vrot.slane %v3348, %v3356
        %v3358 = vlaneseq
        %v3359 = vshrl.u32 %v3358, 7
        %v3360 = vsub.s32 2, %v3359
        %v3361 = vrot.slane %v3348, %v3360
        %v3362 = vlaneseq
        %v3363 = vshrl.u32 %v3362, 7
        %v3364 = vsub.s32 3, %v3363
        %v3365 = vrot.slane %v3348, %v3364
        %v3498 = vunpack.c.l.b16 %v3220
        %v3499 = vunpack.c.h.b16 %v3220
        %v3500 = vunpack.c.l.b16 %v3221
        %v3501 = vunpack.c.h.b16 %v3221
        %v3502 = vunpack.c.l.b16 %v3222
        %v3503 = vunpack.c.h.b16 %v3222
        %v3504 = vunpack.c.l.b16 %v3223
        %v3505 = vunpack.c.h.b16 %v3223
        %v3506 = vunpack.c.l.b16 %v3224
        %v3507 = vunpack.c.h.b16 %v3224
        %v3508 = vunpack.c.l.b16 %v3225
        %v3509 = vunpack.c.h.b16 %v3225
        %v3510 = vunpack.c.l.b16 %v3226
        %v3511 = vunpack.c.h.b16 %v3226
        %v3512 = vunpack.c.l.b16 %v3227
        %v3513 = vunpack.c.h.b16 %v3227
        %v3514 = vunpack.c.l.b16 %v3228
        %v3515 = vunpack.c.h.b16 %v3228
        %v3516 = vunpack.c.l.b16 %v3229
        %v3517 = vunpack.c.h.b16 %v3229
        %v3518 = vunpack.c.l.b16 %v3230
        %v3519 = vunpack.c.h.b16 %v3230
        %v3520 = vunpack.c.l.b16 %v3231
        %v3521 = vunpack.c.h.b16 %v3231
        %v3522 = vunpack.c.l.b16 %v3232
        %v3523 = vunpack.c.h.b16 %v3232
        %v3524 = vunpack.c.l.b16 %v3233
        %v3525 = vunpack.c.h.b16 %v3233
        %v3526 = vunpack.c.l.b16 %v3234
        %v3527 = vunpack.c.h.b16 %v3234
        %v3528 = vunpack.c.l.b16 %v3235
        %v3529 = vunpack.c.h.b16 %v3235
        %v3530 = vunpack.c.l.b16 %v3236
        %v3531 = vunpack.c.h.b16 %v3236
        %v3532 = vunpack.c.l.b16 %v3237
        %v3533 = vunpack.c.h.b16 %v3237
        %v3534 = vunpack.c.l.b16 %v3238
        %v3535 = vunpack.c.h.b16 %v3238
        %v3536 = vunpack.c.l.b16 %v3239
        %v3537 = vunpack.c.h.b16 %v3239
        %v3538 = vunpack.c.l.b16 %v3240
        %v3539 = vunpack.c.h.b16 %v3240
        %v3540 = vunpack.c.l.b16 %v3241
        %v3541 = vunpack.c.h.b16 %v3241
        %v3542 = vunpack.c.l.b16 %v3242
        %v3543 = vunpack.c.h.b16 %v3242
        %v3544 = vunpack.c.l.b16 %v3243
        %v3545 = vunpack.c.h.b16 %v3243
        %v3546 = vunpack.c.l.b16 %v3244
        %v3547 = vunpack.c.h.b16 %v3244
        %v3548 = vunpack.c.l.b16 %v3245
        %v3549 = vunpack.c.h.b16 %v3245
        %v3550 = vunpack.c.l.b16 %v3246
        %v3551 = vunpack.c.h.b16 %v3246
        %v3552 = vunpack.c.l.b16 %v3247
        %v3553 = vunpack.c.h.b16 %v3247
        %v3554 = vunpack.c.l.b16 %v3248
        %v3555 = vunpack.c.h.b16 %v3248
        %v3556 = vunpack.c.l.b16 %v3249
        %v3557 = vunpack.c.h.b16 %v3249
        %v3558 = vunpack.c.l.b16 %v3250
        %v3559 = vunpack.c.h.b16 %v3250
        %v3560 = vunpack.c.l.b16 %v3251
        %v3561 = vunpack.c.h.b16 %v3251
        %v3562 = vunpack.c.l.b16 %v3252
        %v3563 = vunpack.c.h.b16 %v3252
        %v3564 = vunpack.c.l.b16 %v3253
        %v3565 = vunpack.c.h.b16 %v3253
        %v3566 = vunpack.c.l.b16 %v3254
        %v3567 = vunpack.c.h.b16 %v3254
        %v3568 = vunpack.c.l.b16 %v3255
        %v3569 = vunpack.c.h.b16 %v3255
        %v3570 = vunpack.c.l.b16 %v3256
        %v3571 = vunpack.c.h.b16 %v3256
        %v3572 = vunpack.c.l.b16 %v3257
        %v3573 = vunpack.c.h.b16 %v3257
        %v3574 = vunpack.c.l.b16 %v3258
        %v3575 = vunpack.c.h.b16 %v3258
        %v3576 = vunpack.c.l.b16 %v3259
        %v3577 = vunpack.c.h.b16 %v3259
        %v3578 = vunpack.c.l.b16 %v3260
        %v3579 = vunpack.c.h.b16 %v3260
        %v3580 = vunpack.c.l.b16 %v3261
        %v3581 = vunpack.c.h.b16 %v3261
        %v3582 = vunpack.c.l.b16 %v3262
        %v3583 = vunpack.c.h.b16 %v3262
        %v3584 = vunpack.c.l.b16 %v3263
        %v3585 = vunpack.c.h.b16 %v3263
        %v3586 = vunpack.c.l.b16 %v3264
        %v3587 = vunpack.c.h.b16 %v3264
        %v3588 = vunpack.c.l.b16 %v3265
        %v3589 = vunpack.c.h.b16 %v3265
        %v3590 = vunpack.c.l.b16 %v3266
        %v3591 = vunpack.c.h.b16 %v3266
        %v3592 = vunpack.c.l.b16 %v3267
        %v3593 = vunpack.c.h.b16 %v3267
        %v3594 = vunpack.c.l.b16 %v3268
        %v3595 = vunpack.c.h.b16 %v3268
        %v3596 = vunpack.c.l.b16 %v3269
        %v3597 = vunpack.c.h.b16 %v3269
        %v3598 = vunpack.c.l.b16 %v3270
        %v3599 = vunpack.c.h.b16 %v3270
        %v3600 = vunpack.c.l.b16 %v3271
        %v3601 = vunpack.c.h.b16 %v3271
        %v3602 = vunpack.c.l.b16 %v3272
        %v3603 = vunpack.c.h.b16 %v3272
        %v3604 = vunpack.c.l.b16 %v3273
        %v3605 = vunpack.c.h.b16 %v3273
        %v3606 = vunpack.c.l.b16 %v3274
        %v3607 = vunpack.c.h.b16 %v3274
        %v3608 = vunpack.c.l.b16 %v3275
        %v3609 = vunpack.c.h.b16 %v3275
        %v3610 = vunpack.c.l.b16 %v3276
        %v3611 = vunpack.c.h.b16 %v3276
        %v3612 = vunpack.c.l.b16 %v3277
        %v3613 = vunpack.c.h.b16 %v3277
        %v3614 = vunpack.c.l.b16 %v3278
        %v3615 = vunpack.c.h.b16 %v3278
        %v3616 = vunpack.c.l.b16 %v3279
        %v3617 = vunpack.c.h.b16 %v3279
        %v3618 = vunpack.c.l.b16 %v3280
        %v3619 = vunpack.c.h.b16 %v3280
        %v3620 = vunpack.c.l.b16 %v3281
        %v3621 = vunpack.c.h.b16 %v3281
        %v3622 = vunpack.c.l.b16 %v3282
        %v3623 = vunpack.c.h.b16 %v3282
        %v3624 = vunpack.c.l.b16 %v3283
        %v3625 = vunpack.c.h.b16 %v3283
        %v3626 = vunpack.c.l.b16 %v3284
        %v3627 = vunpack.c.h.b16 %v3284
        %v3628 = vunpack.c.l.b16 %v3285
        %v3629 = vunpack.c.h.b16 %v3285
        %v3630 = vunpack.c.l.b16 %v3286
        %v3631 = vunpack.c.h.b16 %v3286
        %v3632 = vunpack.c.l.b16 %v3287
        %v3633 = vunpack.c.h.b16 %v3287
        %v3634 = vunpack.c.l.b16 %v3288
        %v3635 = vunpack.c.h.b16 %v3288
        %v3636 = vunpack.c.l.b16 %v3289
        %v3637 = vunpack.c.h.b16 %v3289
        %v3638 = vunpack.c.l.b16 %v3290
        %v3639 = vunpack.c.h.b16 %v3290
        %v3640 = vunpack.c.l.b16 %v3291
        %v3641 = vunpack.c.h.b16 %v3291
        %v3642 = vunpack.c.l.b16 %v3292
        %v3643 = vunpack.c.h.b16 %v3292
        %v3644 = vunpack.c.l.b16 %v3293
        %v3645 = vunpack.c.h.b16 %v3293
        %v3646 = vunpack.c.l.b16 %v3294
        %v3647 = vunpack.c.h.b16 %v3294
        %v3648 = vunpack.c.l.b16 %v3295
        %v3649 = vunpack.c.h.b16 %v3295
        %v3650 = vunpack.c.l.b16 %v3296
        %v3651 = vunpack.c.h.b16 %v3296
        %v3652 = vunpack.c.l.b16 %v3297
        %v3653 = vunpack.c.h.b16 %v3297
        %v3654 = vunpack.c.l.b16 %v3298
        %v3655 = vunpack.c.h.b16 %v3298
        %v3656 = vunpack.c.l.b16 %v3299
        %v3657 = vunpack.c.h.b16 %v3299
        %v3658 = vunpack.c.l.b16 %v3300
        %v3659 = vunpack.c.h.b16 %v3300
        %v3660 = vunpack.c.l.b16 %v3301
        %v3661 = vunpack.c.h.b16 %v3301
        %v3662 = vunpack.c.l.b16 %v3302
        %v3663 = vunpack.c.h.b16 %v3302
        %v3664 = vunpack.c.l.b16 %v3303
        %v3665 = vunpack.c.h.b16 %v3303
        %v3666 = vunpack.c.l.b16 %v3304
        %v3667 = vunpack.c.h.b16 %v3304
        %v3668 = vunpack.c.l.b16 %v3305
        %v3669 = vunpack.c.h.b16 %v3305
        %v3670 = vunpack.c.l.b16 %v3306
        %v3671 = vunpack.c.h.b16 %v3306
        %v3672 = vunpack.c.l.b16 %v3307
        %v3673 = vunpack.c.h.b16 %v3307
        %v3674 = vunpack.c.l.b16 %v3308
        %v3675 = vunpack.c.h.b16 %v3308
        %v3676 = vunpack.c.l.b16 %v3309
        %v3677 = vunpack.c.h.b16 %v3309
        %v3678 = vunpack.c.l.b16 %v3310
        %v3679 = vunpack.c.h.b16 %v3310
        %v3680 = vunpack.c.l.b16 %v3311
        %v3681 = vunpack.c.h.b16 %v3311
        %v3682 = vunpack.c.l.b16 %v3312
        %v3683 = vunpack.c.h.b16 %v3312
        %v3684 = vunpack.c.l.b16 %v3313
        %v3685 = vunpack.c.h.b16 %v3313
        %v3686 = vunpack.c.l.b16 %v3314
        %v3687 = vunpack.c.h.b16 %v3314
        %v3688 = vunpack.c.l.b16 %v3315
        %v3689 = vunpack.c.h.b16 %v3315
        %v3690 = vunpack.c.l.b16 %v3316
        %v3691 = vunpack.c.h.b16 %v3316
        %v3692 = vunpack.c.l.b16 %v3317
        %v3693 = vunpack.c.h.b16 %v3317
        %v3694 = vunpack.c.l.b16 %v3318
        %v3695 = vunpack.c.h.b16 %v3318
        %v3696 = vunpack.c.l.b16 %v3319
        %v3697 = vunpack.c.h.b16 %v3319
        %v3698 = vunpack.c.l.b16 %v3320
        %v3699 = vunpack.c.h.b16 %v3320
        %v3700 = vunpack.c.l.b16 %v3321
        %v3701 = vunpack.c.h.b16 %v3321
        %v3702 = vunpack.c.l.b16 %v3322
        %v3703 = vunpack.c.h.b16 %v3322
        %v3704 = vunpack.c.l.b16 %v3323
        %v3705 = vunpack.c.h.b16 %v3323
        %v3706 = vunpack.c.l.b16 %v3324
        %v3707 = vunpack.c.h.b16 %v3324
        %v3708 = vunpack.c.l.b16 %v3325
        %v3709 = vunpack.c.h.b16 %v3325
        %v3710 = vunpack.c.l.b16 %v3326
        %v3711 = vunpack.c.h.b16 %v3326
        %v3712 = vunpack.c.l.b16 %v3327
        %v3713 = vunpack.c.h.b16 %v3327
        %v3714 = vunpack.c.l.b16 %v3328
        %v3715 = vunpack.c.h.b16 %v3328
        %v3716 = vunpack.c.l.b16 %v3329
        %v3717 = vunpack.c.h.b16 %v3329
        %v3718 = vunpack.c.l.b16 %v3330
        %v3719 = vunpack.c.h.b16 %v3330
        %v3720 = vunpack.c.l.b16 %v3331
        %v3721 = vunpack.c.h.b16 %v3331
        %v3722 = vunpack.c.l.b16 %v3332
        %v3723 = vunpack.c.h.b16 %v3332
        %v3724 = vunpack.c.l.b16 %v3333
        %v3725 = vunpack.c.h.b16 %v3333
        %v3726 = vunpack.c.l.b16 %v3334
        %v3727 = vunpack.c.h.b16 %v3334
        %v3728 = vunpack.c.l.b16 %v3335
        %v3729 = vunpack.c.h.b16 %v3335
        %v3730 = vunpack.c.l.b16 %v3336
        %v3731 = vunpack.c.h.b16 %v3336
        %v3732 = vunpack.c.l.b16 %v3337
        %v3733 = vunpack.c.h.b16 %v3337
        %v3734 = vunpack.c.l.b16 %v3338
        %v3735 = vunpack.c.h.b16 %v3338
        %v3736 = vunpack.c.l.b16 %v3339
        %v3737 = vunpack.c.h.b16 %v3339
        %v3738 = vunpack.c.l.b16 %v3340
        %v3739 = vunpack.c.h.b16 %v3340
        %v3740 = vunpack.c.l.b16 %v3341
        %v3741 = vunpack.c.h.b16 %v3341
        %v3742 = vunpack.c.l.b16 %v3342
        %v3743 = vunpack.c.h.b16 %v3342
        %v3744 = vunpack.c.l.b16 %v3343
        %v3745 = vunpack.c.h.b16 %v3343
        %v3746 = vunpack.c.l.b16 %v3344
        %v3747 = vunpack.c.h.b16 %v3344
        %v3748 = vunpack.c.l.b16 %v3345
        %v3749 = vunpack.c.h.b16 %v3345
        %v3750 = vunpack.c.l.b16 %v3346
        %v3751 = vunpack.c.h.b16 %v3346
        %v3752 = vunpack.c.l.b16 %v3347
        %v3753 = vunpack.c.h.b16 %v3347
        %v3754 = vpack.c.b16 %v3502, %v3498
        %v3755 = vpack.c.b16 %v3503, %v3499
        %v3756 = vpack.c.b16 %v3504, %v3500
        %v3757 = vpack.c.b16 %v3505, %v3501
        %v3758 = vpack.c.b16 %v3510, %v3506
        %v3759 = vpack.c.b16 %v3511, %v3507
        %v3760 = vpack.c.b16 %v3512, %v3508
        %v3761 = vpack.c.b16 %v3513, %v3509
        %v3762 = vpack.c.b16 %v3518, %v3514
        %v3763 = vpack.c.b16 %v3519, %v3515
        %v3764 = vpack.c.b16 %v3520, %v3516
        %v3765 = vpack.c.b16 %v3521, %v3517
        %v3766 = vpack.c.b16 %v3526, %v3522
        %v3767 = vpack.c.b16 %v3527, %v3523
        %v3768 = vpack.c.b16 %v3528, %v3524
        %v3769 = vpack.c.b16 %v3529, %v3525
        %v3770 = vpack.c.b16 %v3534, %v3530
        %v3771 = vpack.c.b16 %v3535, %v3531
        %v3772 = vpack.c.b16 %v3536, %v3532
        %v3773 = vpack.c.b16 %v3537, %v3533
        %v3774 = vpack.c.b16 %v3542, %v3538
        %v3775 = vpack.c.b16 %v3543, %v3539
        %v3776 = vpack.c.b16 %v3544, %v3540
        %v3777 = vpack.c.b16 %v3545, %v3541
        %v3778 = vpack.c.b16 %v3550, %v3546
        %v3779 = vpack.c.b16 %v3551, %v3547
        %v3780 = vpack.c.b16 %v3552, %v3548
        %v3781 = vpack.c.b16 %v3553, %v3549
        %v3782 = vpack.c.b16 %v3558, %v3554
        %v3783 = vpack.c.b16 %v3559, %v3555
        %v3784 = vpack.c.b16 %v3560, %v3556
        %v3785 = vpack.c.b16 %v3561, %v3557
        %v3786 = vpack.c.b16 %v3566, %v3562
        %v3787 = vpack.c.b16 %v3567, %v3563
        %v3788 = vpack.c.b16 %v3568, %v3564
        %v3789 = vpack.c.b16 %v3569, %v3565
        %v3790 = vpack.c.b16 %v3574, %v3570
        %v3791 = vpack.c.b16 %v3575, %v3571
        %v3792 = vpack.c.b16 %v3576, %v3572
        %v3793 = vpack.c.b16 %v3577, %v3573
        %v3794 = vpack.c.b16 %v3582, %v3578
        %v3795 = vpack.c.b16 %v3583, %v3579
        %v3796 = vpack.c.b16 %v3584, %v3580
        %v3797 = vpack.c.b16 %v3585, %v3581
        %v3798 = vpack.c.b16 %v3590, %v3586
        %v3799 = vpack.c.b16 %v3591, %v3587
        %v3800 = vpack.c.b16 %v3592, %v3588
        %v3801 = vpack.c.b16 %v3593, %v3589
        %v3802 = vpack.c.b16 %v3598, %v3594
        %v3803 = vpack.c.b16 %v3599, %v3595
        %v3804 = vpack.c.b16 %v3600, %v3596
        %v3805 = vpack.c.b16 %v3601, %v3597
        %v3806 = vpack.c.b16 %v3606, %v3602
        %v3807 = vpack.c.b16 %v3607, %v3603
        %v3808 = vpack.c.b16 %v3608, %v3604
        %v3809 = vpack.c.b16 %v3609, %v3605
        %v3810 = vpack.c.b16 %v3614, %v3610
        %v3811 = vpack.c.b16 %v3615, %v3611
        %v3812 = vpack.c.b16 %v3616, %v3612
        %v3813 = vpack.c.b16 %v3617, %v3613
        %v3814 = vpack.c.b16 %v3622, %v3618
        %v3815 = vpack.c.b16 %v3623, %v3619
        %v3816 = vpack.c.b16 %v3624, %v3620
        %v3817 = vpack.c.b16 %v3625, %v3621
        %v3818 = vpack.c.b16 %v3630, %v3626
        %v3819 = vpack.c.b16 %v3631, %v3627
        %v3820 = vpack.c.b16 %v3632, %v3628
        %v3821 = vpack.c.b16 %v3633, %v3629
        %v3822 = vpack.c.b16 %v3638, %v3634
        %v3823 = vpack.c.b16 %v3639, %v3635
        %v3824 = vpack.c.b16 %v3640, %v3636
        %v3825 = vpack.c.b16 %v3641, %v3637
        %v3826 = vpack.c.b16 %v3646, %v3642
        %v3827 = vpack.c.b16 %v3647, %v3643
        %v3828 = vpack.c.b16 %v3648, %v3644
        %v3829 = vpack.c.b16 %v3649, %v3645
        %v3830 = vpack.c.b16 %v3654, %v3650
        %v3831 = vpack.c.b16 %v3655, %v3651
        %v3832 = vpack.c.b16 %v3656, %v3652
        %v3833 = vpack.c.b16 %v3657, %v3653
        %v3834 = vpack.c.b16 %v3662, %v3658
        %v3835 = vpack.c.b16 %v3663, %v3659
        %v3836 = vpack.c.b16 %v3664, %v3660
        %v3837 = vpack.c.b16 %v3665, %v3661
        %v3838 = vpack.c.b16 %v3670, %v3666
        %v3839 = vpack.c.b16 %v3671, %v3667
        %v3840 = vpack.c.b16 %v3672, %v3668
        %v3841 = vpack.c.b16 %v3673, %v3669
        %v3842 = vpack.c.b16 %v3678, %v3674
        %v3843 = vpack.c.b16 %v3679, %v3675
        %v3844 = vpack.c.b16 %v3680, %v3676
        %v3845 = vpack.c.b16 %v3681, %v3677
        %v3846 = vpack.c.b16 %v3686, %v3682
        %v3847 = vpack.c.b16 %v3687, %v3683
        %v3848 = vpack.c.b16 %v3688, %v3684
        %v3849 = vpack.c.b16 %v3689, %v3685
        %v3850 = vpack.c.b16 %v3694, %v3690
        %v3851 = vpack.c.b16 %v3695, %v3691
        %v3852 = vpack.c.b16 %v3696, %v3692
        %v3853 = vpack.c.b16 %v3697, %v3693
        %v3854 = vpack.c.b16 %v3702, %v3698
        %v3855 = vpack.c.b16 %v3703, %v3699
        %v3856 = vpack.c.b16 %v3704, %v3700
        %v3857 = vpack.c.b16 %v3705, %v3701
        %v3858 = vpack.c.b16 %v3710, %v3706
        %v3859 = vpack.c.b16 %v3711, %v3707
        %v3860 = vpack.c.b16 %v3712, %v3708
        %v3861 = vpack.c.b16 %v3713, %v3709
        %v3862 = vpack.c.b16 %v3718, %v3714
        %v3863 = vpack.c.b16 %v3719, %v3715
        %v3864 = vpack.c.b16 %v3720, %v3716
        %v3865 = vpack.c.b16 %v3721, %v3717
        %v3866 = vpack.c.b16 %v3726, %v3722
        %v3867 = vpack.c.b16 %v3727, %v3723
        %v3868 = vpack.c.b16 %v3728, %v3724
        %v3869 = vpack.c.b16 %v3729, %v3725
        %v3870 = vpack.c.b16 %v3734, %v3730
        %v3871 = vpack.c.b16 %v3735, %v3731
        %v3872 = vpack.c.b16 %v3736, %v3732
        %v3873 = vpack.c.b16 %v3737, %v3733
        %v3874 = vpack.c.b16 %v3742, %v3738
        %v3875 = vpack.c.b16 %v3743, %v3739
        %v3876 = vpack.c.b16 %v3744, %v3740
        %v3877 = vpack.c.b16 %v3745, %v3741
        %v3878 = vpack.c.b16 %v3750, %v3746
        %v3879 = vpack.c.b16 %v3751, %v3747
        %v3880 = vpack.c.b16 %v3752, %v3748
        %v3881 = vpack.c.b16 %v3753, %v3749
        %4010 = vmatprep.subr.bf16.mxu0 %v3755
        %4011 = vmatpush1.bf16.msra.mxu0 %v3754
        %4012 = vmatprep.subr.bf16.mxu0 %v3759
        %4013 = vmatpush1.bf16.msra.mxu0 %v3758
        %4014 = vmatprep.subr.bf16.mxu0 %v3763
        %4015 = vmatpush1.bf16.msra.mxu0 %v3762
        %4016 = vmatprep.subr.bf16.mxu0 %v3767
        %4017 = vmatpush1.bf16.msra.mxu0 %v3766
        %4018 = vmatprep.subr.bf16.mxu0 %v3771
        %4019 = vmatpush1.bf16.msra.mxu0 %v3770
        %4020 = vmatprep.subr.bf16.mxu0 %v3775
        %4021 = vmatpush1.bf16.msra.mxu0 %v3774
        %4022 = vmatprep.subr.bf16.mxu0 %v3779
        %4023 = vmatpush1.bf16.msra.mxu0 %v3778
        %4024 = vmatprep.subr.bf16.mxu0 %v3783
        %4025 = vmatpush1.bf16.msra.mxu0 %v3782
        %4026 = vmatprep.subr.bf16.mxu0 %v3787
        %4027 = vmatpush1.bf16.msra.mxu0 %v3786
        %4028 = vmatprep.subr.bf16.mxu0 %v3791
        %4029 = vmatpush1.bf16.msra.mxu0 %v3790
        %4030 = vmatprep.subr.bf16.mxu0 %v3795
        %4031 = vmatpush1.bf16.msra.mxu0 %v3794
        %4032 = vmatprep.subr.bf16.mxu0 %v3799
        %4033 = vmatpush1.bf16.msra.mxu0 %v3798
        %4034 = vmatprep.subr.bf16.mxu0 %v3803
        %4035 = vmatpush1.bf16.msra.mxu0 %v3802
        %4036 = vmatprep.subr.bf16.mxu0 %v3807
        %4037 = vmatpush1.bf16.msra.mxu0 %v3806
        %4038 = vmatprep.subr.bf16.mxu0 %v3811
        %4039 = vmatpush1.bf16.msra.mxu0 %v3810
        %4040 = vmatprep.subr.bf16.mxu0 %v3815
        %4041 = vmatpush1.bf16.msra.mxu0 %v3814
        %4042 = vmatprep.mubr.bf16.mxu0 %v3217
        %4043 = vmatmul.mubr.bf16.gmra.mrb[0].mxu0 %v3216
        %v4044 = vpop.f32.mrb[0].mxu0
        %v4045 = vadd.f32 %v3353, %v4044
        %v4046 = vpop.f32.mrb[0].mxu0
        %v4047 = vadd.f32 %v3357, %v4046
        %v4048 = vpop.f32.mrb[0].mxu0
        %v4049 = vpop.f32.mrb[0].mxu0
        %4050 = vdwg.mxu0
        %4051 = vmatprep.subr.bf16.mxu0 %v3819
        %4052 = vmatpush1.bf16.msra.mxu0 %v3818
        %4053 = vmatprep.subr.bf16.mxu0 %v3823
        %4054 = vmatpush1.bf16.msra.mxu0 %v3822
        %4055 = vmatprep.subr.bf16.mxu0 %v3827
        %4056 = vmatpush1.bf16.msra.mxu0 %v3826
        %4057 = vmatprep.subr.bf16.mxu0 %v3831
        %4058 = vmatpush1.bf16.msra.mxu0 %v3830
        %4059 = vmatprep.subr.bf16.mxu0 %v3835
        %4060 = vmatpush1.bf16.msra.mxu0 %v3834
        %4061 = vmatprep.subr.bf16.mxu0 %v3839
        %4062 = vmatpush1.bf16.msra.mxu0 %v3838
        %4063 = vmatprep.subr.bf16.mxu0 %v3843
        %4064 = vmatpush1.bf16.msra.mxu0 %v3842
        %4065 = vmatprep.subr.bf16.mxu0 %v3847
        %4066 = vmatpush1.bf16.msra.mxu0 %v3846
        %4067 = vmatprep.subr.bf16.mxu0 %v3851
        %4068 = vmatpush1.bf16.msra.mxu0 %v3850
        %4069 = vmatprep.subr.bf16.mxu0 %v3855
        %4070 = vmatpush1.bf16.msra.mxu0 %v3854
        %4071 = vmatprep.subr.bf16.mxu0 %v3859
        %4072 = vmatpush1.bf16.msra.mxu0 %v3858
        %4073 = vmatprep.subr.bf16.mxu0 %v3863
        %4074 = vmatpush1.bf16.msra.mxu0 %v3862
        %4075 = vmatprep.subr.bf16.mxu0 %v3867
        %4076 = vmatpush1.bf16.msra.mxu0 %v3866
        %4077 = vmatprep.subr.bf16.mxu0 %v3871
        %4078 = vmatpush1.bf16.msra.mxu0 %v3870
        %4079 = vmatprep.subr.bf16.mxu0 %v3875
        %4080 = vmatpush1.bf16.msra.mxu0 %v3874
        %4081 = vmatprep.subr.bf16.mxu0 %v3879
        %4082 = vmatpush1.bf16.msra.mxu0 %v3878
        %4083 = vmatprep.mubr.bf16.mxu0 %v3219
        %4084 = vmatmul.mubr.bf16.gmra.mrb[0].mxu0 %v3218
        %v4085 = vpop.f32.mrb[0].mxu0
        %v4086 = vadd.f32 %v4045, %v4085
        %v4087 = vpop.f32.mrb[0].mxu0
        %v4088 = vadd.f32 %v4047, %v4087
        %v4089 = vpop.f32.mrb[0].mxu0
        %v4090 = vpop.f32.mrb[0].mxu0
        %4091 = vdwg.mxu0
        %4092 = vmatprep.subr.bf16.mxu0 %v3757
        %4093 = vmatpush1.bf16.msra.mxu0 %v3756
        %4094 = vmatprep.subr.bf16.mxu0 %v3761
        %4095 = vmatpush1.bf16.msra.mxu0 %v3760
        %4096 = vmatprep.subr.bf16.mxu0 %v3765
        %4097 = vmatpush1.bf16.msra.mxu0 %v3764
        %4098 = vmatprep.subr.bf16.mxu0 %v3769
        %4099 = vmatpush1.bf16.msra.mxu0 %v3768
        %4100 = vmatprep.subr.bf16.mxu0 %v3773
        %4101 = vmatpush1.bf16.msra.mxu0 %v3772
        %4102 = vmatprep.subr.bf16.mxu0 %v3777
        %4103 = vmatpush1.bf16.msra.mxu0 %v3776
        %4104 = vmatprep.subr.bf16.mxu0 %v3781
        %4105 = vmatpush1.bf16.msra.mxu0 %v3780
        %4106 = vmatprep.subr.bf16.mxu0 %v3785
        %4107 = vmatpush1.bf16.msra.mxu0 %v3784
        %4108 = vmatprep.subr.bf16.mxu0 %v3789
        %4109 = vmatpush1.bf16.msra.mxu0 %v3788
        %4110 = vmatprep.subr.bf16.mxu0 %v3793
        %4111 = vmatpush1.bf16.msra.mxu0 %v3792
        %4112 = vmatprep.subr.bf16.mxu0 %v3797
        %4113 = vmatpush1.bf16.msra.mxu0 %v3796
        %4114 = vmatprep.subr.bf16.mxu0 %v3801
        %4115 = vmatpush1.bf16.msra.mxu0 %v3800
        %4116 = vmatprep.subr.bf16.mxu0 %v3805
        %4117 = vmatpush1.bf16.msra.mxu0 %v3804
        %4118 = vmatprep.subr.bf16.mxu0 %v3809
        %4119 = vmatpush1.bf16.msra.mxu0 %v3808
        %4120 = vmatprep.subr.bf16.mxu0 %v3813
        %4121 = vmatpush1.bf16.msra.mxu0 %v3812
        %4122 = vmatprep.subr.bf16.mxu0 %v3817
        %4123 = vmatpush1.bf16.msra.mxu0 %v3816
        %4124 = vmatprep.mubr.bf16.mxu0 %v3217
        %4125 = vmatmul.mubr.bf16.gmra.mrb[0].mxu0 %v3216
        %v4126 = vpop.f32.mrb[0].mxu0
        %v4127 = vadd.f32 %v3361, %v4126
        %v4128 = vpop.f32.mrb[0].mxu0
        %v4129 = vadd.f32 %v3365, %v4128
        %v4130 = vpop.f32.mrb[0].mxu0
        %v4131 = vpop.f32.mrb[0].mxu0
        %4132 = vdwg.mxu0
        %4133 = vmatprep.subr.bf16.mxu0 %v3821
        %4134 = vmatpush1.bf16.msra.mxu0 %v3820
        %4135 = vmatprep.subr.bf16.mxu0 %v3825
        %4136 = vmatpush1.bf16.msra.mxu0 %v3824
        %4137 = vmatprep.subr.bf16.mxu0 %v3829
        %4138 = vmatpush1.bf16.msra.mxu0 %v3828
        %4139 = vmatprep.subr.bf16.mxu0 %v3833
        %4140 = vmatpush1.bf16.msra.mxu0 %v3832
        %4141 = vmatprep.subr.bf16.mxu0 %v3837
        %4142 = vmatpush1.bf16.msra.mxu0 %v3836
        %4143 = vmatprep.subr.bf16.mxu0 %v3841
        %4144 = vmatpush1.bf16.msra.mxu0 %v3840
        %4145 = vmatprep.subr.bf16.mxu0 %v3845
        %4146 = vmatpush1.bf16.msra.mxu0 %v3844
        %4147 = vmatprep.subr.bf16.mxu0 %v3849
        %4148 = vmatpush1.bf16.msra.mxu0 %v3848
        %4149 = vmatprep.subr.bf16.mxu0 %v3853
        %4150 = vmatpush1.bf16.msra.mxu0 %v3852
        %4151 = vmatprep.subr.bf16.mxu0 %v3857
        %4152 = vmatpush1.bf16.msra.mxu0 %v3856
        %4153 = vmatprep.subr.bf16.mxu0 %v3861
        %4154 = vmatpush1.bf16.msra.mxu0 %v3860
        %4155 = vmatprep.subr.bf16.mxu0 %v3865
        %4156 = vmatpush1.bf16.msra.mxu0 %v3864
        %4157 = vmatprep.subr.bf16.mxu0 %v3869
        %4158 = vmatpush1.bf16.msra.mxu0 %v3868
        %4159 = vmatprep.subr.bf16.mxu0 %v3873
        %4160 = vmatpush1.bf16.msra.mxu0 %v3872
        %4161 = vmatprep.subr.bf16.mxu0 %v3877
        %4162 = vmatpush1.bf16.msra.mxu0 %v3876
        %4163 = vmatprep.subr.bf16.mxu0 %v3881
        %4164 = vmatpush1.bf16.msra.mxu0 %v3880
        %4165 = vmatprep.mubr.bf16.mxu0 %v3219
        %4166 = vmatmul.mubr.bf16.gmra.mrb[0].mxu0 %v3218
        %v4167 = vpop.f32.mrb[0].mxu0
        %v4168 = vadd.f32 %v4127, %v4167
        %v4169 = vpop.f32.mrb[0].mxu0
        %v4170 = vadd.f32 %v4129, %v4169
        %v4171 = vpop.f32.mrb[0].mxu0
        %v4172 = vpop.f32.mrb[0].mxu0
        %4173 = vdwg.mxu0
        %v4174 = vld [vmem:[%s797] sm:$0xf]
        %v4175 = vld [vmem:[%s806] sm:$0xf]
        %v4176 = vmul.f32 %v4086, %v4086
        %v4177 = vmul.f32 %v4088, %v4088
        %v4178 = vmul.f32 %v4168, %v4168
        %v4179 = vmul.f32 %v4170, %v4170
        %4180 = vmatprep.subr.mxu0 0.0
        %4181 = vmatpush1.msra.mxu0 %v1751
        %4182 = vmatprep.subr.mxu0 0.0
        %4183 = vmatpush1.msra.mxu0 %v1752
        %4184 = vmatprep.subr.mxu0 0.0
        %4185 = vmatpush1.msra.mxu0 %v1753
        %4186 = vmatprep.subr.mxu0 0.0
        %4187 = vmatpush1.msra.mxu0 %v1754
        %4188 = vmatprep.subr.mxu0 0.0
        %4189 = vmatpush1.msra.mxu0 %v1755
        %4190 = vmatprep.subr.mxu0 0.0
        %4191 = vmatpush1.msra.mxu0 %v1756
        %4192 = vmatprep.subr.mxu0 0.0
        %4193 = vmatpush1.msra.mxu0 %v1757
        %4194 = vmatprep.subr.mxu0 0.0
        %4195 = vmatpush1.msra.mxu0 %v1758
        %4196 = vmatprep.subr.mxu0 0.0
        %4197 = vmatpush1.msra.mxu0 %v1759
        %4198 = vmatprep.subr.mxu0 0.0
        %4199 = vmatpush1.msra.mxu0 %v1760
        %4200 = vmatprep.subr.mxu0 0.0
        %4201 = vmatpush1.msra.mxu0 %v1761
        %4202 = vmatprep.subr.mxu0 0.0
        %4203 = vmatpush1.msra.mxu0 %v1762
        %4204 = vmatprep.subr.mxu0 0.0
        %4205 = vmatpush1.msra.mxu0 %v1763
        %4206 = vmatprep.subr.mxu0 0.0
        %4207 = vmatpush1.msra.mxu0 %v1764
        %4208 = vmatprep.subr.mxu0 0.0
        %4209 = vmatpush1.msra.mxu0 %v1765
        %4210 = vmatprep.subr.mxu0 0.0
        %4211 = vmatpush1.msra.mxu0 %v1766
        %4212 = vmatprep.subr.mxu0 0.0
        %4213 = vmatpush1.msra.mxu0 %v1767
        %4214 = vmatprep.subr.mxu0 0.0
        %4215 = vmatpush1.msra.mxu0 %v1768
        %4216 = vmatprep.subr.mxu0 0.0
        %4217 = vmatpush1.msra.mxu0 %v1769
        %4218 = vmatprep.subr.mxu0 0.0
        %4219 = vmatpush1.msra.mxu0 %v1770
        %4220 = vmatprep.subr.mxu0 0.0
        %4221 = vmatpush1.msra.mxu0 %v1771
        %4222 = vmatprep.subr.mxu0 0.0
        %4223 = vmatpush1.msra.mxu0 %v1772
        %4224 = vmatprep.subr.mxu0 0.0
        %4225 = vmatpush1.msra.mxu0 %v1773
        %4226 = vmatprep.subr.mxu0 0.0
        %4227 = vmatpush1.msra.mxu0 %v1774
        %4228 = vmatprep.subr.mxu0 0.0
        %4229 = vmatpush1.msra.mxu0 %v1775
        %4230 = vmatprep.subr.mxu0 0.0
        %4231 = vmatpush1.msra.mxu0 %v1776
        %4232 = vmatprep.subr.mxu0 0.0
        %4233 = vmatpush1.msra.mxu0 %v1777
        %4234 = vmatprep.subr.mxu0 0.0
        %4235 = vmatpush1.msra.mxu0 %v1778
        %4236 = vmatprep.subr.mxu0 0.0
        %4237 = vmatpush1.msra.mxu0 %v1779
        %4238 = vmatprep.subr.mxu0 0.0
        %4239 = vmatpush1.msra.mxu0 %v1780
        %4240 = vmatprep.subr.mxu0 0.0
        %4241 = vmatpush1.msra.mxu0 %v1781
        %4242 = vmatprep.subr.mxu0 0.0
        %4243 = vmatpush1.msra.mxu0 %v1782
        %4244 = vmatprep.mubr.f32.mxu0 %v4088
        %4245 = vmatmul.mubr.f32.gmra.mrb[0].mxu0 %v4086
        %v4246 = vpop.f32.mrb[0].mxu0
        %v4247 = vadd.f32 0.0, %v4246
        %v4248 = vpop.f32.mrb[0].mxu0
        %4249 = vmatprep.mubr.f32.mxu0 %v4177
        %4250 = vmatmul.mubr.f32.gmra.mrb[0].mxu0 %v4176
        %v4251 = vpop.f32.mrb[0].mxu0
        %v4252 = vadd.f32 0.0, %v4251
        %v4253 = vpop.f32.mrb[0].mxu0
        %4254 = vdwg.mxu0
        %4255 = vmatprep.subr.mxu0 0.0
        %4256 = vmatpush1.msra.mxu0 %v1783
        %4257 = vmatprep.subr.mxu0 0.0
        %4258 = vmatpush1.msra.mxu0 %v1784
        %4259 = vmatprep.subr.mxu0 0.0
        %4260 = vmatpush1.msra.mxu0 %v1785
        %4261 = vmatprep.subr.mxu0 0.0
        %4262 = vmatpush1.msra.mxu0 %v1786
        %4263 = vmatprep.subr.mxu0 0.0
        %4264 = vmatpush1.msra.mxu0 %v1787
        %4265 = vmatprep.subr.mxu0 0.0
        %4266 = vmatpush1.msra.mxu0 %v1788
        %4267 = vmatprep.subr.mxu0 0.0
        %4268 = vmatpush1.msra.mxu0 %v1789
        %4269 = vmatprep.subr.mxu0 0.0
        %4270 = vmatpush1.msra.mxu0 %v1790
        %4271 = vmatprep.subr.mxu0 0.0
        %4272 = vmatpush1.msra.mxu0 %v1791
        %4273 = vmatprep.subr.mxu0 0.0
        %4274 = vmatpush1.msra.mxu0 %v1792
        %4275 = vmatprep.subr.mxu0 0.0
        %4276 = vmatpush1.msra.mxu0 %v1793
        %4277 = vmatprep.subr.mxu0 0.0
        %4278 = vmatpush1.msra.mxu0 %v1794
        %4279 = vmatprep.subr.mxu0 0.0
        %4280 = vmatpush1.msra.mxu0 %v1795
        %4281 = vmatprep.subr.mxu0 0.0
        %4282 = vmatpush1.msra.mxu0 %v1796
        %4283 = vmatprep.subr.mxu0 0.0
        %4284 = vmatpush1.msra.mxu0 %v1797
        %4285 = vmatprep.subr.mxu0 0.0
        %4286 = vmatpush1.msra.mxu0 %v1798
        %4287 = vmatprep.subr.mxu0 0.0
        %4288 = vmatpush1.msra.mxu0 %v1799
        %4289 = vmatprep.subr.mxu0 0.0
        %4290 = vmatpush1.msra.mxu0 %v1800
        %4291 = vmatprep.subr.mxu0 0.0
        %4292 = vmatpush1.msra.mxu0 %v1801
        %4293 = vmatprep.subr.mxu0 0.0
        %4294 = vmatpush1.msra.mxu0 %v1802
        %4295 = vmatprep.subr.mxu0 0.0
        %4296 = vmatpush1.msra.mxu0 %v1803
        %4297 = vmatprep.subr.mxu0 0.0
        %4298 = vmatpush1.msra.mxu0 %v1804
        %4299 = vmatprep.subr.mxu0 0.0
        %4300 = vmatpush1.msra.mxu0 %v1805
        %4301 = vmatprep.subr.mxu0 0.0
        %4302 = vmatpush1.msra.mxu0 %v1806
        %4303 = vmatprep.subr.mxu0 0.0
        %4304 = vmatpush1.msra.mxu0 %v1807
        %4305 = vmatprep.subr.mxu0 0.0
        %4306 = vmatpush1.msra.mxu0 %v1808
        %4307 = vmatprep.subr.mxu0 0.0
        %4308 = vmatpush1.msra.mxu0 %v1809
        %4309 = vmatprep.subr.mxu0 0.0
        %4310 = vmatpush1.msra.mxu0 %v1810
        %4311 = vmatprep.subr.mxu0 0.0
        %4312 = vmatpush1.msra.mxu0 %v1811
        %4313 = vmatprep.subr.mxu0 0.0
        %4314 = vmatpush1.msra.mxu0 %v1812
        %4315 = vmatprep.subr.mxu0 0.0
        %4316 = vmatpush1.msra.mxu0 %v1813
        %4317 = vmatprep.subr.mxu0 0.0
        %4318 = vmatpush1.msra.mxu0 %v1814
        %4319 = vmatprep.mubr.f32.mxu0 %v4170
        %4320 = vmatmul.mubr.f32.gmra.mrb[0].mxu0 %v4168
        %v4321 = vpop.f32.mrb[0].mxu0
        %v4322 = vadd.f32 %v4247, %v4321
        %v4323 = vpop.f32.mrb[0].mxu0
        %4324 = vmatprep.mubr.f32.mxu0 %v4179
        %4325 = vmatmul.mubr.f32.gmra.mrb[0].mxu0 %v4178
        %v4326 = vpop.f32.mrb[0].mxu0
        %v4327 = vadd.f32 %v4252, %v4326
        %v4328 = vpop.f32.mrb[0].mxu0
        %4329 = vdwg.mxu0
        %v4331 = vsel %vm2949, %v4322, 0
        %v4334 = vsel %vm2949, %v4327, 0
        %4336 = vmatprep.subr.mxu0 %v1816
        %4337 = vmatpush1.msra.mxu0 %v1815
        %4338 = vmatprep.subr.mxu0 %v1820
        %4339 = vmatpush1.msra.mxu0 %v1819
        %4340 = vmatprep.subr.mxu0 %v1824
        %4341 = vmatpush1.msra.mxu0 %v1823
        %4342 = vmatprep.subr.mxu0 %v1828
        %4343 = vmatpush1.msra.mxu0 %v1827
        %4344 = vmatprep.subr.mxu0 0.0
        %4345 = vmatpush1.msra.mxu0 0.0
        %4346 = vmatprep.subr.mxu0 0.0
        %4347 = vmatpush1.msra.mxu0 0.0
        %4348 = vmatprep.subr.mxu0 0.0
        %4349 = vmatpush1.msra.mxu0 0.0
        %4350 = vmatprep.subr.mxu0 0.0
        %4351 = vmatpush1.msra.mxu0 0.0
        %4352 = vmatprep.subr.mxu0 0.0
        %4353 = vmatpush1.msra.mxu0 0.0
        %4354 = vmatprep.subr.mxu0 0.0
        %4355 = vmatpush1.msra.mxu0 0.0
        %4356 = vmatprep.subr.mxu0 0.0
        %4357 = vmatpush1.msra.mxu0 0.0
        %4358 = vmatprep.subr.mxu0 0.0
        %4359 = vmatpush1.msra.mxu0 0.0
        %4360 = vmatprep.subr.mxu0 0.0
        %4361 = vmatpush1.msra.mxu0 0.0
        %4362 = vmatprep.subr.mxu0 0.0
        %4363 = vmatpush1.msra.mxu0 0.0
        %4364 = vmatprep.subr.mxu0 0.0
        %4365 = vmatpush1.msra.mxu0 0.0
        %4366 = vmatprep.subr.mxu0 0.0
        %4367 = vmatpush1.msra.mxu0 0.0
        %4368 = vmatprep.subr.mxu0 0.0
        %4369 = vmatpush1.msra.mxu0 0.0
        %4370 = vmatprep.subr.mxu0 0.0
        %4371 = vmatpush1.msra.mxu0 0.0
        %4372 = vmatprep.subr.mxu0 0.0
        %4373 = vmatpush1.msra.mxu0 0.0
        %4374 = vmatprep.subr.mxu0 0.0
        %4375 = vmatpush1.msra.mxu0 0.0
        %4376 = vmatprep.subr.mxu0 0.0
        %4377 = vmatpush1.msra.mxu0 0.0
        %4378 = vmatprep.subr.mxu0 0.0
        %4379 = vmatpush1.msra.mxu0 0.0
        %4380 = vmatprep.subr.mxu0 0.0
        %4381 = vmatpush1.msra.mxu0 0.0
        %4382 = vmatprep.subr.mxu0 0.0
        %4383 = vmatpush1.msra.mxu0 0.0
        %4384 = vmatprep.subr.mxu0 0.0
        %4385 = vmatpush1.msra.mxu0 0.0
        %4386 = vmatprep.subr.mxu0 0.0
        %4387 = vmatpush1.msra.mxu0 0.0
        %4388 = vmatprep.subr.mxu0 0.0
        %4389 = vmatpush1.msra.mxu0 0.0
        %4390 = vmatprep.subr.mxu0 0.0
        %4391 = vmatpush1.msra.mxu0 0.0
        %4392 = vmatprep.subr.mxu0 0.0
        %4393 = vmatpush1.msra.mxu0 0.0
        %4394 = vmatprep.subr.mxu0 0.0
        %4395 = vmatpush1.msra.mxu0 0.0
        %4396 = vmatprep.subr.mxu0 0.0
        %4397 = vmatpush1.msra.mxu0 0.0
        %4398 = vmatprep.subr.mxu0 0.0
        %4399 = vmatpush1.msra.mxu0 0.0
        %4400 = vmatprep.mubr.f32.mxu0 0.0
        %4401 = vmatmul.mubr.f32.gmra.mrb[0].mxu0 %v4331
        %v4402 = vpop.f32.mrb[0].mxu0
        %v4403 = vadd.f32 0.0, %v4402
        %v4404 = vpop.f32.mrb[0].mxu0
        %v4405 = vadd.f32 0.0, %v4404
        %4406 = vmatprep.mubr.f32.mxu0 0.0
        %4407 = vmatmul.mubr.f32.gmra.mrb[0].mxu0 %v4334
        %v4408 = vpop.f32.mrb[0].mxu0
        %v4409 = vadd.f32 0.0, %v4408
        %v4410 = vpop.f32.mrb[0].mxu0
        %v4411 = vadd.f32 0.0, %v4410
        %4412 = vdwg.mxu0
        %4413 = vmatprep.subr.mxu0 %v1818
        %4414 = vmatpush1.msra.mxu0 %v1817
        %4415 = vmatprep.subr.mxu0 %v1822
        %4416 = vmatpush1.msra.mxu0 %v1821
        %4417 = vmatprep.subr.mxu0 %v1826
        %4418 = vmatpush1.msra.mxu0 %v1825
        %4419 = vmatprep.subr.mxu0 %v1830
        %4420 = vmatpush1.msra.mxu0 %v1829
        %4421 = vmatprep.subr.mxu0 0.0
        %4422 = vmatpush1.msra.mxu0 0.0
        %4423 = vmatprep.subr.mxu0 0.0
        %4424 = vmatpush1.msra.mxu0 0.0
        %4425 = vmatprep.subr.mxu0 0.0
        %4426 = vmatpush1.msra.mxu0 0.0
        %4427 = vmatprep.subr.mxu0 0.0
        %4428 = vmatpush1.msra.mxu0 0.0
        %4429 = vmatprep.subr.mxu0 0.0
        %4430 = vmatpush1.msra.mxu0 0.0
        %4431 = vmatprep.subr.mxu0 0.0
        %4432 = vmatpush1.msra.mxu0 0.0
        %4433 = vmatprep.subr.mxu0 0.0
        %4434 = vmatpush1.msra.mxu0 0.0
        %4435 = vmatprep.subr.mxu0 0.0
        %4436 = vmatpush1.msra.mxu0 0.0
        %4437 = vmatprep.subr.mxu0 0.0
        %4438 = vmatpush1.msra.mxu0 0.0
        %4439 = vmatprep.subr.mxu0 0.0
        %4440 = vmatpush1.msra.mxu0 0.0
        %4441 = vmatprep.subr.mxu0 0.0
        %4442 = vmatpush1.msra.mxu0 0.0
        %4443 = vmatprep.subr.mxu0 0.0
        %4444 = vmatpush1.msra.mxu0 0.0
        %4445 = vmatprep.subr.mxu0 0.0
        %4446 = vmatpush1.msra.mxu0 0.0
        %4447 = vmatprep.subr.mxu0 0.0
        %4448 = vmatpush1.msra.mxu0 0.0
        %4449 = vmatprep.subr.mxu0 0.0
        %4450 = vmatpush1.msra.mxu0 0.0
        %4451 = vmatprep.subr.mxu0 0.0
        %4452 = vmatpush1.msra.mxu0 0.0
        %4453 = vmatprep.subr.mxu0 0.0
        %4454 = vmatpush1.msra.mxu0 0.0
        %4455 = vmatprep.subr.mxu0 0.0
        %4456 = vmatpush1.msra.mxu0 0.0
        %4457 = vmatprep.subr.mxu0 0.0
        %4458 = vmatpush1.msra.mxu0 0.0
        %4459 = vmatprep.subr.mxu0 0.0
        %4460 = vmatpush1.msra.mxu0 0.0
        %4461 = vmatprep.subr.mxu0 0.0
        %4462 = vmatpush1.msra.mxu0 0.0
        %4463 = vmatprep.subr.mxu0 0.0
        %4464 = vmatpush1.msra.mxu0 0.0
        %4465 = vmatprep.subr.mxu0 0.0
        %4466 = vmatpush1.msra.mxu0 0.0
        %4467 = vmatprep.subr.mxu0 0.0
        %4468 = vmatpush1.msra.mxu0 0.0
        %4469 = vmatprep.subr.mxu0 0.0
        %4470 = vmatpush1.msra.mxu0 0.0
        %4471 = vmatprep.subr.mxu0 0.0
        %4472 = vmatpush1.msra.mxu0 0.0
        %4473 = vmatprep.subr.mxu0 0.0
        %4474 = vmatpush1.msra.mxu0 0.0
        %4475 = vmatprep.subr.mxu0 0.0
        %4476 = vmatpush1.msra.mxu0 0.0
        %4477 = vmatprep.mubr.f32.mxu0 0.0
        %4478 = vmatmul.mubr.f32.gmra.mrb[0].mxu0 %v4331
        %v4479 = vpop.f32.mrb[0].mxu0
        %v4480 = vadd.f32 0.0, %v4479
        %v4481 = vpop.f32.mrb[0].mxu0
        %v4482 = vadd.f32 0.0, %v4481
        %4483 = vmatprep.mubr.f32.mxu0 0.0
        %4484 = vmatmul.mubr.f32.gmra.mrb[0].mxu0 %v4334
        %v4485 = vpop.f32.mrb[0].mxu0
        %v4486 = vadd.f32 0.0, %v4485
        %v4487 = vpop.f32.mrb[0].mxu0
        %v4488 = vadd.f32 0.0, %v4487
        %4489 = vdwg.mxu0
        %v4490 = vmul.f32 %v4403, %v4403
        %v4491 = vmul.f32 %v4405, %v4405
        %v4492 = vmul.f32 %v4480, %v4480
        %v4493 = vmul.f32 %v4482, %v4482
        %v4494 = vsub.f32 %v4409, %v4490
        %v4495 = vsub.f32 %v4411, %v4491
        %v4496 = vsub.f32 %v4486, %v4492
        %v4497 = vsub.f32 %v4488, %v4493
        %v4498 = vmax.f32 %v4494, 0.0
        %v4499 = vmax.f32 %v4495, 0.0
        %v4500 = vmax.f32 %v4496, 0.0
        %v4501 = vmax.f32 %v4497, 0.0
        %v4502 = vsub.f32 %v4086, %v4403
        %v4503 = vsub.f32 %v4088, %v4405
        %v4504 = vsub.f32 %v4168, %v4480
        %v4505 = vsub.f32 %v4170, %v4482
        %v4506 = vadd.f32 %v4498, 1e-05
        %v4507 = vadd.f32 %v4499, 1e-05
        %v4508 = vadd.f32 %v4500, 1e-05
        %v4509 = vadd.f32 %v4501, 1e-05
        %v4510 = vrsqrt.pop %v4506
        %v4511 = vrsqrt.pop %v4507
        %v4512 = vrsqrt.pop %v4508
        %v4513 = vrsqrt.pop %v4509
        %v4514 = vmul.f32 %v4502, %v4510
        %v4515 = vmul.f32 %v4503, %v4511
        %v4516 = vmul.f32 %v4504, %v4512
        %v4517 = vmul.f32 %v4505, %v4513
        %v4519 = vlaneseq
        %v4520 = vshrl.u32 %v4519, 7
        %v4521 = vsub.s32 0, %v4520
        %v4522 = vrot.slane %v4174, %v4521
        %v4523 = vlaneseq
        %v4524 = vshrl.u32 %v4523, 7
        %v4525 = vsub.s32 1, %v4524
        %v4526 = vrot.slane %v4174, %v4525
        %v4527 = vlaneseq
        %v4528 = vshrl.u32 %v4527, 7
        %v4529 = vsub.s32 2, %v4528
        %v4530 = vrot.slane %v4174, %v4529
        %v4531 = vlaneseq
        %v4532 = vshrl.u32 %v4531, 7
        %v4533 = vsub.s32 3, %v4532
        %v4534 = vrot.slane %v4174, %v4533
        %v4539 = vmul.f32 %v4514, %v4522
        %v4540 = vmul.f32 %v4515, %v4526
        %v4541 = vmul.f32 %v4516, %v4530
        %v4542 = vmul.f32 %v4517, %v4534
        %v4544 = vlaneseq
        %v4545 = vshrl.u32 %v4544, 7
        %v4546 = vsub.s32 0, %v4545
        %v4547 = vrot.slane %v4175, %v4546
        %v4548 = vlaneseq
        %v4549 = vshrl.u32 %v4548, 7
        %v4550 = vsub.s32 1, %v4549
        %v4551 = vrot.slane %v4175, %v4550
        %v4552 = vlaneseq
        %v4553 = vshrl.u32 %v4552, 7
        %v4554 = vsub.s32 2, %v4553
        %v4555 = vrot.slane %v4175, %v4554
        %v4556 = vlaneseq
        %v4557 = vshrl.u32 %v4556, 7
        %v4558 = vsub.s32 3, %v4557
        %v4559 = vrot.slane %v4175, %v4558
        %v4564 = vadd.f32 %v4539, %v4547
        %v4565 = vadd.f32 %v4540, %v4551
        %v4566 = vadd.f32 %v4541, %v4555
        %v4567 = vadd.f32 %v4542, %v4559
        %v4568 = vadd.f32 %v4564, %v1831
        %v4569 = vadd.f32 %v4565, %v1832
        %v4570 = vadd.f32 %v4566, %v1833
        %v4571 = vadd.f32 %v4567, %v1834
        %v4572 = vxor.u32 %v4568, 2147483648
        %v4573 = vxor.u32 %v4569, 2147483648
        %v4574 = vxor.u32 %v4570, 2147483648
        %v4575 = vxor.u32 %v4571, 2147483648
        %v4576 = vmul.f32 %v4572, 1.442695
        %v4577 = vpow.pop %v4576
        %v4578 = vmul.f32 %v4573, 1.442695
        %v4579 = vpow.pop %v4578
        %v4580 = vmul.f32 %v4574, 1.442695
        %v4581 = vpow.pop %v4580
        %v4582 = vmul.f32 %v4575, 1.442695
        %v4583 = vpow.pop %v4582
        %v4584 = vadd.f32 %v4577, 1.0
        %v4585 = vadd.f32 %v4579, 1.0
        %v4586 = vadd.f32 %v4581, 1.0
        %v4587 = vadd.f32 %v4583, 1.0
        %v4588 = vrcp.pop %v4584
        %v4589 = vmul.f32 1.0, %v4588
        %v4590 = vrcp.pop %v4585
        %v4591 = vmul.f32 1.0, %v4590
        %v4592 = vrcp.pop %v4586
        %v4593 = vmul.f32 1.0, %v4592
        %v4594 = vrcp.pop %v4587
        %v4595 = vmul.f32 1.0, %v4594
        %v4596 = vmul.f32 %v4568, %v4589
        %v4597 = vmul.f32 %v4569, %v4591
        %v4598 = vmul.f32 %v4570, %v4593
        %v4599 = vmul.f32 %v4571, %v4595
        %4600 = vst [vmem:[#allocation2] sm:$0xff] %v4596
        %4601 = vst [vmem:[#allocation2 + $0x8] sm:$0xff] %v4597
        %4602 = vst [vmem:[#allocation2 + $0x10] sm:$0xff] %v4598
        %4603 = vst [vmem:[#allocation2 + $0x18] sm:$0xff] %v4599
        %p4604 = scmp.eq.s32.totalorder %s45, 2
        // Predicated region
        $region149: #{tpu_custom_call.1} parent=87 // pred_check
          %p4605 = pneg %p4604
        $region150: #{tpu_custom_call.1} parent=87 // pred_check_branch
          %4607 = sbr.rel (%p4605) target = $region152
        $region151: #{tpu_custom_call.1} parent=87 // pred_region
          %v4608 = vpack.c.bf16 %v4596, %v4596
          %v4609 = vpack.c.bf16 %v4597, %v4597
          %v4610 = vpack.c.bf16 %v4598, %v4598
          %v4611 = vpack.c.bf16 %v4599, %v4599
          %v4612 = vld [vmem:[%s15] sm:$0xf]
          %v4613 = vld [vmem:[%s15 + $0x4] sm:$0xf]
          %v4614 = vld [vmem:[%s15 + $0x8] sm:$0xf]
          %v4615 = vld [vmem:[%s15 + $0xc] sm:$0xf]
          %v4616 = vld [vmem:[%s15 + $0x10] sm:$0xf]
          %v4617 = vld [vmem:[%s15 + $0x14] sm:$0xf]
          %v4618 = vld [vmem:[%s15 + $0x18] sm:$0xf]
          %v4619 = vld [vmem:[%s15 + $0x1c] sm:$0xf]
          %v4620 = vld [vmem:[%s15 + $0x20] sm:$0xf]
          %v4621 = vld [vmem:[%s15 + $0x24] sm:$0xf]
          %v4622 = vld [vmem:[%s15 + $0x28] sm:$0xf]
          %v4623 = vld [vmem:[%s15 + $0x2c] sm:$0xf]
          %v4624 = vld [vmem:[%s15 + $0x30] sm:$0xf]
          %v4625 = vld [vmem:[%s15 + $0x34] sm:$0xf]
          %v4626 = vld [vmem:[%s15 + $0x38] sm:$0xf]
          %v4627 = vld [vmem:[%s15 + $0x3c] sm:$0xf]
          %v4628 = vld [vmem:[%s15 + $0x40] sm:$0xf]
          %v4629 = vld [vmem:[%s15 + $0x44] sm:$0xf]
          %v4630 = vld [vmem:[%s15 + $0x48] sm:$0xf]
          %v4631 = vld [vmem:[%s15 + $0x4c] sm:$0xf]
          %v4632 = vld [vmem:[%s15 + $0x50] sm:$0xf]
          %v4633 = vld [vmem:[%s15 + $0x54] sm:$0xf]
          %v4634 = vld [vmem:[%s15 + $0x58] sm:$0xf]
          %v4635 = vld [vmem:[%s15 + $0x5c] sm:$0xf]
          %v4636 = vld [vmem:[%s15 + $0x60] sm:$0xf]
          %v4637 = vld [vmem:[%s15 + $0x64] sm:$0xf]
          %v4638 = vld [vmem:[%s15 + $0x68] sm:$0xf]
          %v4639 = vld [vmem:[%s15 + $0x6c] sm:$0xf]
          %v4640 = vld [vmem:[%s15 + $0x70] sm:$0xf]
          %v4641 = vld [vmem:[%s15 + $0x74] sm:$0xf]
          %v4642 = vld [vmem:[%s15 + $0x78] sm:$0xf]
          %v4643 = vld [vmem:[%s15 + $0x7c] sm:$0xf]
          %v4644 = vld [vmem:[%s15 + $0x80] sm:$0xf]
          %v4645 = vld [vmem:[%s15 + $0x84] sm:$0xf]
          %v4646 = vld [vmem:[%s15 + $0x88] sm:$0xf]
          %v4647 = vld [vmem:[%s15 + $0x8c] sm:$0xf]
          %v4648 = vld [vmem:[%s15 + $0x90] sm:$0xf]
          %v4649 = vld [vmem:[%s15 + $0x94] sm:$0xf]
          %v4650 = vld [vmem:[%s15 + $0x98] sm:$0xf]
          %v4651 = vld [vmem:[%s15 + $0x9c] sm:$0xf]
          %v4652 = vld [vmem:[%s15 + $0xa0] sm:$0xf]
          %v4653 = vld [vmem:[%s15 + $0xa4] sm:$0xf]
          %v4654 = vld [vmem:[%s15 + $0xa8] sm:$0xf]
          %v4655 = vld [vmem:[%s15 + $0xac] sm:$0xf]
          %v4656 = vld [vmem:[%s15 + $0xb0] sm:$0xf]
          %v4657 = vld [vmem:[%s15 + $0xb4] sm:$0xf]
          %v4658 = vld [vmem:[%s15 + $0xb8] sm:$0xf]
          %v4659 = vld [vmem:[%s15 + $0xbc] sm:$0xf]
          %v4660 = vld [vmem:[%s15 + $0xc0] sm:$0xf]
          %v4661 = vld [vmem:[%s15 + $0xc4] sm:$0xf]
          %v4662 = vld [vmem:[%s15 + $0xc8] sm:$0xf]
          %v4663 = vld [vmem:[%s15 + $0xcc] sm:$0xf]
          %v4664 = vld [vmem:[%s15 + $0xd0] sm:$0xf]
          %v4665 = vld [vmem:[%s15 + $0xd4] sm:$0xf]
          %v4666 = vld [vmem:[%s15 + $0xd8] sm:$0xf]
          %v4667 = vld [vmem:[%s15 + $0xdc] sm:$0xf]
          %v4668 = vld [vmem:[%s15 + $0xe0] sm:$0xf]
          %v4669 = vld [vmem:[%s15 + $0xe4] sm:$0xf]
          %v4670 = vld [vmem:[%s15 + $0xe8] sm:$0xf]
          %v4671 = vld [vmem:[%s15 + $0xec] sm:$0xf]
          %v4672 = vld [vmem:[%s15 + $0xf0] sm:$0xf]
          %v4673 = vld [vmem:[%s15 + $0xf4] sm:$0xf]
          %v4674 = vld [vmem:[%s15 + $0xf8] sm:$0xf]
          %v4675 = vld [vmem:[%s15 + $0xfc] sm:$0xf]
          %v4676 = vld [vmem:[#allocation24] sm:$0x1]
          %v4678 = vlaneseq
          %v4679 = vshrl.u32 %v4678, 7
          %v4680 = vsub.s32 0, %v4679
          %v4681 = vrot.slane %v4676, %v4680
          %v4747 = vunpack.c.l.b16 %v4612
          %v4748 = vunpack.c.l.b16 %v4613
          %v4749 = vunpack.c.l.b16 %v4614
          %v4750 = vunpack.c.l.b16 %v4615
          %v4751 = vunpack.c.l.b16 %v4616
          %v4752 = vunpack.c.l.b16 %v4617
          %v4753 = vunpack.c.l.b16 %v4618
          %v4754 = vunpack.c.l.b16 %v4619
          %v4755 = vunpack.c.l.b16 %v4620
          %v4756 = vunpack.c.l.b16 %v4621
          %v4757 = vunpack.c.l.b16 %v4622
          %v4758 = vunpack.c.l.b16 %v4623
          %v4759 = vunpack.c.l.b16 %v4624
          %v4760 = vunpack.c.l.b16 %v4625
          %v4761 = vunpack.c.l.b16 %v4626
          %v4762 = vunpack.c.l.b16 %v4627
          %v4763 = vunpack.c.l.b16 %v4628
          %v4764 = vunpack.c.l.b16 %v4629
          %v4765 = vunpack.c.l.b16 %v4630
          %v4766 = vunpack.c.l.b16 %v4631
          %v4767 = vunpack.c.l.b16 %v4632
          %v4768 = vunpack.c.l.b16 %v4633
          %v4769 = vunpack.c.l.b16 %v4634
          %v4770 = vunpack.c.l.b16 %v4635
          %v4771 = vunpack.c.l.b16 %v4636
          %v4772 = vunpack.c.l.b16 %v4637
          %v4773 = vunpack.c.l.b16 %v4638
          %v4774 = vunpack.c.l.b16 %v4639
          %v4775 = vunpack.c.l.b16 %v4640
          %v4776 = vunpack.c.l.b16 %v4641
          %v4777 = vunpack.c.l.b16 %v4642
          %v4778 = vunpack.c.l.b16 %v4643
          %v4779 = vunpack.c.l.b16 %v4644
          %v4780 = vunpack.c.l.b16 %v4645
          %v4781 = vunpack.c.l.b16 %v4646
          %v4782 = vunpack.c.l.b16 %v4647
          %v4783 = vunpack.c.l.b16 %v4648
          %v4784 = vunpack.c.l.b16 %v4649
          %v4785 = vunpack.c.l.b16 %v4650
          %v4786 = vunpack.c.l.b16 %v4651
          %v4787 = vunpack.c.l.b16 %v4652
          %v4788 = vunpack.c.l.b16 %v4653
          %v4789 = vunpack.c.l.b16 %v4654
          %v4790 = vunpack.c.l.b16 %v4655
          %v4791 = vunpack.c.l.b16 %v4656
          %v4792 = vunpack.c.l.b16 %v4657
          %v4793 = vunpack.c.l.b16 %v4658
          %v4794 = vunpack.c.l.b16 %v4659
          %v4795 = vunpack.c.l.b16 %v4660
          %v4796 = vunpack.c.l.b16 %v4661
          %v4797 = vunpack.c.l.b16 %v4662
          %v4798 = vunpack.c.l.b16 %v4663
          %v4799 = vunpack.c.l.b16 %v4664
          %v4800 = vunpack.c.l.b16 %v4665
          %v4801 = vunpack.c.l.b16 %v4666
          %v4802 = vunpack.c.l.b16 %v4667
          %v4803 = vunpack.c.l.b16 %v4668
          %v4804 = vunpack.c.l.b16 %v4669
          %v4805 = vunpack.c.l.b16 %v4670
          %v4806 = vunpack.c.l.b16 %v4671
          %v4807 = vunpack.c.l.b16 %v4672
          %v4808 = vunpack.c.l.b16 %v4673
          %v4809 = vunpack.c.l.b16 %v4674
          %v4810 = vunpack.c.l.b16 %v4675
          %v4811 = vpack.c.b16 %v4748, %v4747
          %v4812 = vpack.c.b16 %v4750, %v4749
          %v4813 = vpack.c.b16 %v4752, %v4751
          %v4814 = vpack.c.b16 %v4754, %v4753
          %v4815 = vpack.c.b16 %v4756, %v4755
          %v4816 = vpack.c.b16 %v4758, %v4757
          %v4817 = vpack.c.b16 %v4760, %v4759
          %v4818 = vpack.c.b16 %v4762, %v4761
          %v4819 = vpack.c.b16 %v4764, %v4763
          %v4820 = vpack.c.b16 %v4766, %v4765
          %v4821 = vpack.c.b16 %v4768, %v4767
          %v4822 = vpack.c.b16 %v4770, %v4769
          %v4823 = vpack.c.b16 %v4772, %v4771
          %v4824 = vpack.c.b16 %v4774, %v4773
          %v4825 = vpack.c.b16 %v4776, %v4775
          %v4826 = vpack.c.b16 %v4778, %v4777
          %v4827 = vpack.c.b16 %v4780, %v4779
          %v4828 = vpack.c.b16 %v4782, %v4781
          %v4829 = vpack.c.b16 %v4784, %v4783
          %v4830 = vpack.c.b16 %v4786, %v4785
          %v4831 = vpack.c.b16 %v4788, %v4787
          %v4832 = vpack.c.b16 %v4790, %v4789
          %v4833 = vpack.c.b16 %v4792, %v4791
          %v4834 = vpack.c.b16 %v4794, %v4793
          %v4835 = vpack.c.b16 %v4796, %v4795
          %v4836 = vpack.c.b16 %v4798, %v4797
          %v4837 = vpack.c.b16 %v4800, %v4799
          %v4838 = vpack.c.b16 %v4802, %v4801
          %v4839 = vpack.c.b16 %v4804, %v4803
          %v4840 = vpack.c.b16 %v4806, %v4805
          %v4841 = vpack.c.b16 %v4808, %v4807
          %v4842 = vpack.c.b16 %v4810, %v4809
          %4875 = vmatprep.subr.bf16.mxu0 0
          %4876 = vmatpush1.bf16.msra.mxu0 %v4811
          %4877 = vmatprep.subr.bf16.mxu0 0
          %4878 = vmatpush1.bf16.msra.mxu0 %v4812
          %4879 = vmatprep.subr.bf16.mxu0 0
          %4880 = vmatpush1.bf16.msra.mxu0 %v4813
          %4881 = vmatprep.subr.bf16.mxu0 0
          %4882 = vmatpush1.bf16.msra.mxu0 %v4814
          %4883 = vmatprep.subr.bf16.mxu0 0
          %4884 = vmatpush1.bf16.msra.mxu0 %v4815
          %4885 = vmatprep.subr.bf16.mxu0 0
          %4886 = vmatpush1.bf16.msra.mxu0 %v4816
          %4887 = vmatprep.subr.bf16.mxu0 0
          %4888 = vmatpush1.bf16.msra.mxu0 %v4817
          %4889 = vmatprep.subr.bf16.mxu0 0
          %4890 = vmatpush1.bf16.msra.mxu0 %v4818
          %4891 = vmatprep.subr.bf16.mxu0 0
          %4892 = vmatpush1.bf16.msra.mxu0 %v4819
          %4893 = vmatprep.subr.bf16.mxu0 0
          %4894 = vmatpush1.bf16.msra.mxu0 %v4820
          %4895 = vmatprep.subr.bf16.mxu0 0
          %4896 = vmatpush1.bf16.msra.mxu0 %v4821
          %4897 = vmatprep.subr.bf16.mxu0 0
          %4898 = vmatpush1.bf16.msra.mxu0 %v4822
          %4899 = vmatprep.subr.bf16.mxu0 0
          %4900 = vmatpush1.bf16.msra.mxu0 %v4823
          %4901 = vmatprep.subr.bf16.mxu0 0
          %4902 = vmatpush1.bf16.msra.mxu0 %v4824
          %4903 = vmatprep.subr.bf16.mxu0 0
          %4904 = vmatpush1.bf16.msra.mxu0 %v4825
          %4905 = vmatprep.subr.bf16.mxu0 0
          %4906 = vmatpush1.bf16.msra.mxu0 %v4826
          %4907 = vmatprep.mubr.bf16.mxu0 %v4609
          %4908 = vmatmul.mubr.bf16.gmra.mrb[0].mxu0 %v4608
          %v4909 = vpop.f32.mrb[0].mxu0
          %v4910 = vadd.f32 %v4681, %v4909
          %v4911 = vpop.f32.mrb[0].mxu0
          %v4912 = vpop.f32.mrb[0].mxu0
          %v4913 = vpop.f32.mrb[0].mxu0
          %4914 = vdwg.mxu0
          %4915 = vmatprep.subr.bf16.mxu0 0
          %4916 = vmatpush1.bf16.msra.mxu0 %v4827
          %4917 = vmatprep.subr.bf16.mxu0 0
          %4918 = vmatpush1.bf16.msra.mxu0 %v4828
          %4919 = vmatprep.subr.bf16.mxu0 0
          %4920 = vmatpush1.bf16.msra.mxu0 %v4829
          %4921 = vmatprep.subr.bf16.mxu0 0
          %4922 = vmatpush1.bf16.msra.mxu0 %v4830
          %4923 = vmatprep.subr.bf16.mxu0 0
          %4924 = vmatpush1.bf16.msra.mxu0 %v4831
          %4925 = vmatprep.subr.bf16.mxu0 0
          %4926 = vmatpush1.bf16.msra.mxu0 %v4832
          %4927 = vmatprep.subr.bf16.mxu0 0
          %4928 = vmatpush1.bf16.msra.mxu0 %v4833
          %4929 = vmatprep.subr.bf16.mxu0 0
          %4930 = vmatpush1.bf16.msra.mxu0 %v4834
          %4931 = vmatprep.subr.bf16.mxu0 0
          %4932 = vmatpush1.bf16.msra.mxu0 %v4835
          %4933 = vmatprep.subr.bf16.mxu0 0
          %4934 = vmatpush1.bf16.msra.mxu0 %v4836
          %4935 = vmatprep.subr.bf16.mxu0 0
          %4936 = vmatpush1.bf16.msra.mxu0 %v4837
          %4937 = vmatprep.subr.bf16.mxu0 0
          %4938 = vmatpush1.bf16.msra.mxu0 %v4838
          %4939 = vmatprep.subr.bf16.mxu0 0
          %4940 = vmatpush1.bf16.msra.mxu0 %v4839
          %4941 = vmatprep.subr.bf16.mxu0 0
          %4942 = vmatpush1.bf16.msra.mxu0 %v4840
          %4943 = vmatprep.subr.bf16.mxu0 0
          %4944 = vmatpush1.bf16.msra.mxu0 %v4841
          %4945 = vmatprep.subr.bf16.mxu0 0
          %4946 = vmatpush1.bf16.msra.mxu0 %v4842
          %4947 = vmatprep.mubr.bf16.mxu0 %v4611
          %4948 = vmatmul.mubr.bf16.gmra.mrb[0].mxu0 %v4610
          %v4949 = vpop.f32.mrb[0].mxu0
          %v4950 = vadd.f32 %v4910, %v4949
          %v4951 = vpop.f32.mrb[0].mxu0
          %v4952 = vpop.f32.mrb[0].mxu0
          %v4953 = vpop.f32.mrb[0].mxu0
          %4954 = vdwg.mxu0
          %vm4955 = vcmask 130048
          %4956 = vst.msk [vmem:[#allocation26] sm:$0xff] %vm4955, %v4950
        $region152: #{tpu_custom_call.1} parent=87 // pred_fallthru
          _
        // Predicated region
        $region153: #{tpu_custom_call.1} parent=87 // pred_check
          %p4957 = pneg %p455
        $region154: #{tpu_custom_call.1} parent=87 // pred_check_branch
          %4959 = sbr.rel (%p4957) target = $region156
        $region155: #{tpu_custom_call.1} parent=87 // pred_region
          %s4961 = ssub.s32 128, 128
          %4962 = vsyncadd [#allocation5], %s4961
          %s4964 = sshll.u32 [#allocation26], 4
          %s4965 = int_to_ptr.vmem [resolvable:$true] %s4964
          %4967 = dma.vmem_to_hbm [thread:$0]  %s4965, 128, %s17, [#allocation5]
        $region156: #{tpu_custom_call.1} parent=87 // pred_fallthru
          _
        // Predicated region
        $region157: #{tpu_custom_call.1} parent=87 // pred_check
          %p4968 = pneg %p455
        $region158: #{tpu_custom_call.1} parent=87 // pred_check_branch
          %4970 = sbr.rel (%p4968) target = $region160
        $region159: #{tpu_custom_call.1} parent=87 // pred_region
          %4971 = dma.done [#allocation5], 128
        $region160: #{tpu_custom_call.1} parent=87 // pred_fallthru
          _
      $region88: #{tpu_custom_call.1} parent=5 // pred_fallthru
        _
      %p4972 = scmp.le.s32.totalorder 2, %s40
      // Predicated region
      $region161: #{tpu_custom_call.1} parent=5 // pred_check
        %p4973 = pneg %p4972
      $region162: #{tpu_custom_call.1} parent=5 // pred_check_branch
        %4975 = sbr.rel (%p4973) target = $region164
      $region163: #{tpu_custom_call.1} parent=5 // pred_region
        %s4976 = ssub.s32 %s40, 2
      $region164: #{tpu_custom_call.1} parent=5 // pred_fallthru
        _
    $region6: #{tpu_custom_call.1} parent=1 // loop_footer
      %s44 = sadd.s32 1, %s40
    $region7: #{tpu_custom_call.1} parent=1 // loop_footer_branch
      %39 = sbr.rel target = $region3
    $region8: #{tpu_custom_call.1} parent=1 // loop_exit
      _
    %4977 = vsyncpa [#allocation4], 1
    %s4978 = scalar_lea.sflag [#allocation4], 1
    %4979 = vsyncpa %s4978, 1
    %4980 = vsyncpa [#allocation7], 1
    %4981 = vsyncpa [#allocation10], 1
    %4982 = vsyncpa [#allocation13], 1
    %s4983 = scalar_lea.sflag [#allocation13], 1
    %4984 = vsyncpa %s4983, 1
    %4985 = vsyncpa [#allocation16], 1
    %s4986 = scalar_lea.sflag [#allocation16], 1
    %4987 = vsyncpa %s4986, 1
    %4988 = vsyncpa [#allocation19], 1
    %s4989 = scalar_lea.sflag [#allocation19], 1
    %4990 = vsyncpa %s4989, 1
    %4991 = vsyncpa [#allocation22], 1
    %s4992 = scalar_lea.sflag [#allocation22], 1
    %4993 = vsyncpa %s4992, 1
    %4994 = vsyncpa [#allocation25], 1
    %4995 = vsyncpa [#allocation5], 1
    %s4996 = scalar_lea.sflag [#allocation5], 1
    %4997 = vsyncpa %s4996, 1

</llo_original>
